<compile_context>
chip_gen: v7x
topology: tpu7x:2x2x1
jax: 0.10.0
libtpu: 0.0.40
codegen_flags: <defaults>
</compile_context>

<pallas_src>
import functools

import jax
import jax.numpy as jnp
from jax import lax
from jax.experimental import pallas as pl
from jax.experimental.pallas import tpu as pltpu

LN_EPS = 1e-5  # torch.nn.LayerNorm default


def _round_up(x, m):
    return ((x + m - 1) // m) * m


def _norm_mlp_kernel(x_ref, w1_ref, p_ref, w2_ref, b2_ref, o_ref, *,
                     hidden, hidden_pad, mxu_dtype):
    """Fused: h = x@W1+b1 ; h = LayerNorm(h)*gamma+beta ; h = relu(h) ; o = h@W2+b2.

    p_ref is the stacked (3, hid_pad) f32 [b1; gamma; beta].  x may arrive either
    already bf16 (padded wrapper path) or f32 (aligned path, cast here on the VPU).
    Padded hidden columns of h are exactly zero (zero-padded W1 columns / b1), and
    gamma/beta are zero-padded, so the LN statistics only need the analytic
    (hidden_pad - hidden)*mu^2 variance correction.
    """
    # ---- Linear 1 (MXU, f32 accumulate) ----
    xm = x_ref[...].astype(mxu_dtype)
    h = jnp.dot(xm, w1_ref[...], preferred_element_type=jnp.float32)
    h = h + p_ref[0:1, :]                               # + b1  (f32)

    # ---- LayerNorm over the (unpadded) hidden dim, f32 ----
    inv_h = 1.0 / hidden
    mu = jnp.sum(h, axis=-1, keepdims=True) * inv_h     # padded cols of h are exactly 0
    d = h - mu
    sq = jnp.sum(d * d, axis=-1, keepdims=True)
    if hidden_pad != hidden:
        # padded d columns are exactly -mu: remove their contribution exactly
        sq = sq - float(hidden_pad - hidden) * (mu * mu)
    var = sq * inv_h
    inv_std = lax.rsqrt(var + LN_EPS)                    # EUP rsqrt (no divide)
    # fused affine: (d * inv_std) * gamma + beta == d * (inv_std * gamma) + beta
    # gamma/beta padded columns are zero -> padded hn columns are zero.
    hn = d * (inv_std * p_ref[1:2, :]) + p_ref[2:3, :]

    # ---- ReLU ----
    hn = jnp.maximum(hn, 0.0)

    # ---- Linear 2 (MXU, f32 accumulate) ----
    out = jnp.dot(hn.astype(mxu_dtype), w2_ref[...],
                  preferred_element_type=jnp.float32)
    out = out + b2_ref[...]
    o_ref[...] = out.astype(o_ref.dtype)


def _usable_vmem_bytes():
    """Per-TensorCore VMEM budget minus headroom, hardware-aware with safe fallback."""
    cap = 64 << 20  # conservative default (v7x has 64 MiB / TC)
    try:
        cap = int(pltpu.get_tpu_info().vmem_capacity_bytes)
    except Exception:
        pass
    return max(cap - (8 << 20), 16 << 20)


def norm_mlp(x, w1, b1, gamma, beta, w2, b2, *, tile_n=512, use_bf16=True):
    """NormMLP forward.

    x: (..., inp_dim). Weights stored (in_features, out_features), i.e. w1 = W1_torch.T,
    so the kernel computes plain row-major x @ W + b.

    use_bf16=False is a verification-only path: f32 MXU operands cost multiple MXU
    passes and double the x/W DMA bytes on v5e/v6e/v7x, while bf16 operands with the
    f32 LN math used here lose almost nothing numerically.
    """
    assert tile_n % 16 == 0 and tile_n >= 16, "tile_n must be a multiple of 16"

    orig_lead = x.shape[:-1]
    inp_dim = x.shape[-1]
    hidden = w1.shape[1]
    out_dim = w2.shape[1]
    out_dtype = x.dtype

    x2 = x.reshape(-1, inp_dim)
    n = x2.shape[0]
    n_rows = max(n, 1)

    mxu_dtype = jnp.bfloat16 if use_bf16 else jnp.float32

    lane = 128
    inp_pad = _round_up(inp_dim, lane)
    hid_pad = _round_up(hidden, lane)
    out_pad = _round_up(out_dim, lane)

    bpe = jnp.dtype(mxu_dtype).itemsize
    obpe = jnp.dtype(out_dtype).itemsize
    usable_vmem = _usable_vmem_bytes()

    def vmem_bytes(tn, weight_bufs):
        x_tile = 2 * tn * inp_pad * 4                       # x tile (worst-case f32), 2-deep
        o_tile = 2 * tn * out_pad * obpe                    # out tile, 2-deep
        weights = weight_bufs * ((inp_pad * hid_pad + hid_pad * out_pad) * bpe
                                 + (3 * hid_pad + out_pad) * 4)
        interm = 4 * tn * hid_pad * 4 + tn * out_pad * 4    # f32 h/d/hn/cast + f32 out acc
        return x_tile + o_tile + weights + interm + (2 << 20)

    # ---- row-tile selection ----
    # (a) ensure >= 2 grid steps so v7x's two TensorCores both get work;
    # (b) shrink until the conservative (double-buffered-weights) estimate fits VMEM.
    while tile_n > 128 and pl.cdiv(n_rows, tile_n) < 2:
        tile_n //= 2
    while tile_n > 128 and vmem_bytes(tile_n, 2) > usable_vmem:
        tile_n //= 2

    n_pad = _round_up(n_rows, tile_n)

    # ---- inputs: pad only when needed (skip wrapper HBM passes when aligned) ----
    if n_pad != n or inp_pad != inp_dim:
        # Padding forces a wrapper pass anyway -> fuse the bf16 cast into it
        # (4B read + 2B write + 2B kernel read beats keeping it f32).
        xp = jnp.pad(x2, ((0, n_pad - n), (0, inp_pad - inp_dim))).astype(mxu_dtype)
    else:
        xp = x2  # kernel casts f32 -> bf16 on the VPU; saves an HBM round-trip

    def pad_w(w, r, c):
        return w if w.shape == (r, c) else jnp.pad(
            w, ((0, r - w.shape[0]), (0, c - w.shape[1])))

    def pad_v(v, m):
        return v if v.shape[0] == m else jnp.pad(v, (0, m - v.shape[0]))

    w1p = pad_w(w1, inp_pad, hid_pad).astype(mxu_dtype)
    w2p = pad_w(w2, hid_pad, out_pad).astype(mxu_dtype)
    # b1 / gamma / beta stacked into one (3, hid_pad) f32 operand (one DMA stream)
    p3 = jnp.stack([pad_v(b1, hid_pad), pad_v(gamma, hid_pad),
                    pad_v(beta, hid_pad)]).astype(jnp.float32)
    b2p = pad_v(b2, out_pad).reshape(1, out_pad).astype(jnp.float32)

    grid = (n_pad // tile_n,)
    kernel = functools.partial(_norm_mlp_kernel, hidden=hidden,
                               hidden_pad=hid_pad, mxu_dtype=mxu_dtype)

    def run(weight_bufs):
        # Constant-index-map operands never change across the grid: single-buffer
        # them so default double-buffering doesn't double their VMEM footprint.
        extra = {"pipeline_mode": pl.Buffered(1)} if weight_bufs == 1 else {}
        vmem_limit = int(min(max(vmem_bytes(tile_n, weight_bufs), 32 << 20),
                             usable_vmem))
        return pl.pallas_call(
            kernel,
            out_shape=jax.ShapeDtypeStruct((n_pad, out_pad), out_dtype),
            grid_spec=pltpu.PrefetchScalarGridSpec(
                num_scalar_prefetch=0,
                grid=grid,
                in_specs=[
                    pl.BlockSpec((tile_n, inp_pad), lambda i: (i, 0)),            # x rows
                    pl.BlockSpec((inp_pad, hid_pad), lambda i: (0, 0), **extra),  # W1
                    pl.BlockSpec((3, hid_pad), lambda i: (0, 0), **extra),        # b1/g/beta
                    pl.BlockSpec((hid_pad, out_pad), lambda i: (0, 0), **extra),  # W2
                    pl.BlockSpec((1, out_pad), lambda i: (0, 0), **extra),        # b2
                ],
                out_specs=pl.BlockSpec((tile_n, out_pad), lambda i: (i, 0)),
            ),
            compiler_params=pltpu.CompilerParams(
                dimension_semantics=("parallel",),
                vmem_limit_bytes=vmem_limit),
        )(xp, w1p, p3, w2p, b2p)

    try:
        out_full = run(1)       # single-buffered constant operands (preferred)
    except Exception:
        out_full = run(2)       # fallback: default double buffering

    if n_pad != n or out_pad != out_dim:
        out_full = out_full[:n, :out_dim]
    return out_full.reshape(*orig_lead, out_dim)


def norm_mlp_ref(x, w1, b1, gamma, beta, w2, b2, *, mxu_dtype=jnp.float32):
    """Pure-JAX reference matching torch semantics (optionally bf16 matmul operands)."""
    lead = x.shape[:-1]
    x2 = x.reshape(-1, x.shape[-1])
    h = jnp.dot(x2.astype(mxu_dtype), w1.astype(mxu_dtype),
                preferred_element_type=jnp.float32) + b1
    mu = jnp.mean(h, axis=-1, keepdims=True)
    var = jnp.mean((h - mu) ** 2, axis=-1, keepdims=True)
    h = (h - mu) * lax.rsqrt(var + LN_EPS)
    h = h * gamma + beta
    h = jnp.maximum(h, 0.0)
    out = jnp.dot(h.astype(mxu_dtype), w2.astype(mxu_dtype),
                  preferred_element_type=jnp.float32) + b2
    return out.reshape(*lead, w2.shape[1])


def _make_params(key, inp, hid, out):
    k_w1, k_b1, k_w2, k_b2 = jax.random.split(key, 4)
    lim1 = 1.0 / (inp ** 0.5)
    w1 = jax.random.uniform(k_w1, (inp, hid), minval=-lim1, maxval=lim1,
                            dtype=jnp.float32)
    b1 = jax.random.uniform(k_b1, (hid,), minval=-lim1, maxval=lim1,
                            dtype=jnp.float32)
    gamma = jnp.ones((hid,), dtype=jnp.float32)   # nn.LayerNorm defaults
    beta = jnp.zeros((hid,), dtype=jnp.float32)
    lim2 = 1.0 / (hid ** 0.5)
    w2 = jax.random.uniform(k_w2, (hid, out), minval=-lim2, maxval=lim2,
                            dtype=jnp.float32)
    b2 = jax.random.uniform(k_b2, (out,), minval=-lim2, maxval=lim2,
                            dtype=jnp.float32)
    return w1, b1, gamma, beta, w2, b2


if __name__ == "__main__":
    key = jax.random.PRNGKey(0)
    k_case1, k_case2 = jax.random.split(key, 2)

    # ---- Case 1: ragged / non-128 dims -> exercises padded path + masked-free LN ----
    B, S, INP, HID, OUT = 4, 96, 64, 64, 48       # 384 rows total
    k_x1, k_p1 = jax.random.split(k_case1)
    x1 = jax.random.normal(k_x1, (B, S, INP), dtype=jnp.float32)
    p1 = _make_params(k_p1, INP, HID, OUT)

    out_bf16 = jax.block_until_ready(norm_mlp(x1, *p1, use_bf16=True))
    ref_bf16 = norm_mlp_ref(x1, *p1, mxu_dtype=jnp.bfloat16)
    ref_f32 = norm_mlp_ref(x1, *p1)
    assert out_bf16.shape == (B, S, OUT)
    assert jnp.allclose(out_bf16, ref_bf16, atol=2e-3, rtol=2e-3), \
        "bf16 path mismatch vs bf16 reference (case 1)"
    assert jnp.allclose(out_bf16, ref_f32, atol=5e-2, rtol=5e-2), \
        "bf16 path mismatch vs f32 reference (case 1)"

    out_f32 = jax.block_until_ready(norm_mlp(x1, *p1, use_bf16=False))
    assert jnp.allclose(out_f32, ref_f32, atol=1e-4, rtol=1e-4), \
        "f32 path mismatch vs f32 reference (case 1)"

    # ---- Case 2: aligned dims -> exercises no-pad / in-kernel f32->bf16 cast path ----
    B2, S2, D2 = 2, 128, 128                      # 256 rows, all dims multiples of 128
    k_x2, k_p2 = jax.random.split(k_case2)
    x2 = jax.random.normal(k_x2, (B2, S2, D2), dtype=jnp.float32)
    p2 = _make_params(k_p2, D2, D2, D2)

    out2 = jax.block_until_ready(norm_mlp(x2, *p2, use_bf16=True))
    ref2 = norm_mlp_ref(x2, *p2, mxu_dtype=jnp.bfloat16)
    assert out2.shape == (B2, S2, D2)
    assert jnp.allclose(out2, ref2, atol=2e-3, rtol=2e-3), \
        "bf16 path mismatch vs bf16 reference (case 2, aligned)"

    print("KERNEL_OK")
</pallas_src>

<mosaic_0001>
module attributes {stable_mosaic.version = 11 : i64} {
  func.func @_norm_mlp_kernel(%arg0: i32, %arg1: memref<256x128xbf16, #tpu.memory_space<vmem>>, %arg2: memref<128x128xbf16, #tpu.memory_space<vmem>>, %arg3: memref<3x128xf32, #tpu.memory_space<vmem>>, %arg4: memref<128x128xbf16, #tpu.memory_space<vmem>>, %arg5: memref<1x128xf32, #tpu.memory_space<vmem>>, %arg6: memref<256x128xf32, #tpu.memory_space<vmem>>) attributes {dimension_semantics = [#tpu.dimension_semantics<parallel>], iteration_bounds = array<i64: 2>, scalar_prefetch = 0 : i64, scratch_operands = 0 : i64, tpu.core_type = #tpu.core_type<tc>, window_params = [{transform_indices = @transform_0, window_bounds = array<i64: 256, 128>}, {pipeline_mode = #tpu.pipeline_mode<synchronous>, transform_indices = @transform_1, window_bounds = array<i64: 128, 128>}, {pipeline_mode = #tpu.pipeline_mode<synchronous>, transform_indices = @transform_2, window_bounds = array<i64: 3, 128>}, {pipeline_mode = #tpu.pipeline_mode<synchronous>, transform_indices = @transform_3, window_bounds = array<i64: 128, 128>}, {pipeline_mode = #tpu.pipeline_mode<synchronous>, transform_indices = @transform_4, window_bounds = array<i64: 1, 128>}, {transform_indices = @transform_5, window_bounds = array<i64: 256, 128>}]} {
    %c0 = arith.constant 0 : index
    %c0_0 = arith.constant 0 : index
    %0 = vector.load %arg1[%c0, %c0_0] : memref<256x128xbf16, #tpu.memory_space<vmem>>, vector<256x128xbf16>
    %c0_1 = arith.constant 0 : index
    %c0_2 = arith.constant 0 : index
    %1 = vector.load %arg2[%c0_1, %c0_2] : memref<128x128xbf16, #tpu.memory_space<vmem>>, vector<128x128xbf16>
    %cst = arith.constant dense<0.000000e+00> : vector<256x128xf32>
    %2 = tpu.matmul %0, %1, %cst {dimension_numbers = #tpu.dot_dimension_numbers<[1], [0], [0], [1], [0, 0, 1, 1], [], []>} : vector<256x128xbf16>, vector<128x128xbf16>, vector<256x128xf32> -> vector<256x128xf32>
    %c0_3 = arith.constant 0 : index
    %c0_4 = arith.constant 0 : index
    %3 = vector.load %arg3[%c0_3, %c0_4] : memref<3x128xf32, #tpu.memory_space<vmem>>, vector<1x128xf32>
    %4 = vector.broadcast %3 : vector<1x128xf32> to vector<256x128xf32>
    %5 = arith.addf %2, %4 : vector<256x128xf32>
    %cst_5 = arith.constant dense<0.000000e+00> : vector<256xf32>
    %6 = vector.multi_reduction <add>, %5, %cst_5 [1] : vector<256x128xf32> to vector<256xf32>
    %7 = vector.shape_cast %6 : vector<256xf32> to vector<256x1xf32>
    %cst_6 = arith.constant 1.562500e-02 : f32
    %8 = vector.broadcast %cst_6 : f32 to vector<256x1xf32>
    %9 = arith.mulf %7, %8 : vector<256x1xf32>
    %10 = vector.broadcast %9 : vector<256x1xf32> to vector<256x128xf32>
    %11 = arith.subf %5, %10 : vector<256x128xf32>
    %12 = arith.mulf %11, %11 : vector<256x128xf32>
    %cst_7 = arith.constant dense<0.000000e+00> : vector<256xf32>
    %13 = vector.multi_reduction <add>, %12, %cst_7 [1] : vector<256x128xf32> to vector<256xf32>
    %14 = vector.shape_cast %13 : vector<256xf32> to vector<256x1xf32>
    %15 = arith.mulf %9, %9 : vector<256x1xf32>
    %cst_8 = arith.constant 6.400000e+01 : f32
    %16 = vector.broadcast %cst_8 : f32 to vector<256x1xf32>
    %17 = arith.mulf %16, %15 : vector<256x1xf32>
    %18 = arith.subf %14, %17 : vector<256x1xf32>
    %cst_9 = arith.constant 1.562500e-02 : f32
    %19 = vector.broadcast %cst_9 : f32 to vector<256x1xf32>
    %20 = arith.mulf %18, %19 : vector<256x1xf32>
    %cst_10 = arith.constant 9.99999974E-6 : f32
    %21 = vector.broadcast %cst_10 : f32 to vector<256x1xf32>
    %22 = arith.addf %20, %21 : vector<256x1xf32>
    %23 = math.rsqrt %22 : vector<256x1xf32>
    %c1 = arith.constant 1 : index
    %c0_11 = arith.constant 0 : index
    %24 = vector.load %arg3[%c1, %c0_11] : memref<3x128xf32, #tpu.memory_space<vmem>>, vector<1x128xf32>
    %25 = vector.broadcast %23 : vector<256x1xf32> to vector<256x128xf32>
    %26 = vector.broadcast %24 : vector<1x128xf32> to vector<256x128xf32>
    %27 = arith.mulf %25, %26 : vector<256x128xf32>
    %28 = arith.mulf %11, %27 : vector<256x128xf32>
    %c2 = arith.constant 2 : index
    %c0_12 = arith.constant 0 : index
    %29 = vector.load %arg3[%c2, %c0_12] : memref<3x128xf32, #tpu.memory_space<vmem>>, vector<1x128xf32>
    %30 = vector.broadcast %29 : vector<1x128xf32> to vector<256x128xf32>
    %31 = arith.addf %28, %30 : vector<256x128xf32>
    %cst_13 = arith.constant 0.000000e+00 : f32
    %32 = vector.broadcast %cst_13 : f32 to vector<256x128xf32>
    %33 = arith.maximumf %31, %32 : vector<256x128xf32>
    %34 = arith.truncf %33 : vector<256x128xf32> to vector<256x128xbf16>
    %c0_14 = arith.constant 0 : index
    %c0_15 = arith.constant 0 : index
    %35 = vector.load %arg4[%c0_14, %c0_15] : memref<128x128xbf16, #tpu.memory_space<vmem>>, vector<128x128xbf16>
    %cst_16 = arith.constant dense<0.000000e+00> : vector<256x128xf32>
    %36 = tpu.matmul %34, %35, %cst_16 {dimension_numbers = #tpu.dot_dimension_numbers<[1], [0], [0], [1], [0, 0, 1, 1], [], []>} : vector<256x128xbf16>, vector<128x128xbf16>, vector<256x128xf32> -> vector<256x128xf32>
    %c0_17 = arith.constant 0 : index
    %c0_18 = arith.constant 0 : index
    %37 = vector.load %arg5[%c0_17, %c0_18] : memref<1x128xf32, #tpu.memory_space<vmem>>, vector<1x128xf32>
    %38 = vector.broadcast %37 : vector<1x128xf32> to vector<256x128xf32>
    %39 = arith.addf %36, %38 : vector<256x128xf32>
    %c0_19 = arith.constant 0 : index
    %c0_20 = arith.constant 0 : index
    %40 = vector.load %arg6[%c0_19, %c0_20] : memref<256x128xf32, #tpu.memory_space<vmem>>, vector<256x128xf32>
    tpu.vector_store %arg6[%c0_19, %c0_20], %39 {strides = array<i32>} : memref<256x128xf32, #tpu.memory_space<vmem>>, vector<256x128xf32>,
    return
  }
  func.func @transform_0(%arg0: i32) -> (i32, i32) {
    %c0_i32 = arith.constant 0 : i32
    %c0_i32_0 = arith.constant 0 : i32
    return %arg0, %c0_i32 : i32, i32
  }
  func.func @transform_1(%arg0: i32) -> (i32, i32) {
    %c0_i32 = arith.constant 0 : i32
    %c0_i32_0 = arith.constant 0 : i32
    %c0_i32_1 = arith.constant 0 : i32
    return %c0_i32, %c0_i32_0 : i32, i32
  }
  func.func @transform_2(%arg0: i32) -> (i32, i32) {
    %c0_i32 = arith.constant 0 : i32
    %c0_i32_0 = arith.constant 0 : i32
    %c0_i32_1 = arith.constant 0 : i32
    return %c0_i32, %c0_i32_0 : i32, i32
  }
  func.func @transform_3(%arg0: i32) -> (i32, i32) {
    %c0_i32 = arith.constant 0 : i32
    %c0_i32_0 = arith.constant 0 : i32
    %c0_i32_1 = arith.constant 0 : i32
    return %c0_i32, %c0_i32_0 : i32, i32
  }
  func.func @transform_4(%arg0: i32) -> (i32, i32) {
    %c0_i32 = arith.constant 0 : i32
    %c0_i32_0 = arith.constant 0 : i32
    %c0_i32_1 = arith.constant 0 : i32
    return %c0_i32, %c0_i32_0 : i32, i32
  }
  func.func @transform_5(%arg0: i32) -> (i32, i32) {
    %c0_i32 = arith.constant 0 : i32
    %c0_i32_0 = arith.constant 0 : i32
    return %arg0, %c0_i32 : i32, i32
  }
}

module attributes {stable_mosaic.version = 11 : i64} {
  func.func @_norm_mlp_kernel(%arg0: i32, %arg1: memref<256x128xbf16, #tpu.memory_space<vmem>>, %arg2: memref<128x128xbf16, #tpu.memory_space<vmem>>, %arg3: memref<3x128xf32, #tpu.memory_space<vmem>>, %arg4: memref<128x128xbf16, #tpu.memory_space<vmem>>, %arg5: memref<1x128xf32, #tpu.memory_space<vmem>>, %arg6: memref<256x128xf32, #tpu.memory_space<vmem>>) attributes {dimension_semantics = [#tpu.dimension_semantics<parallel>], iteration_bounds = array<i64: 2>, scalar_prefetch = 0 : i64, scratch_operands = 0 : i64, tpu.core_type = #tpu.core_type<tc>, window_params = [{transform_indices = @transform_0, window_bounds = array<i64: 256, 128>}, {pipeline_mode = #tpu.pipeline_mode<synchronous>, transform_indices = @transform_1, window_bounds = array<i64: 128, 128>}, {pipeline_mode = #tpu.pipeline_mode<synchronous>, transform_indices = @transform_2, window_bounds = array<i64: 3, 128>}, {pipeline_mode = #tpu.pipeline_mode<synchronous>, transform_indices = @transform_3, window_bounds = array<i64: 128, 128>}, {pipeline_mode = #tpu.pipeline_mode<synchronous>, transform_indices = @transform_4, window_bounds = array<i64: 1, 128>}, {transform_indices = @transform_5, window_bounds = array<i64: 256, 128>}]} {
    %c0 = arith.constant 0 : index
    %c0_0 = arith.constant 0 : index
    %0 = vector.load %arg1[%c0, %c0_0] : memref<256x128xbf16, #tpu.memory_space<vmem>>, vector<256x128xbf16>
    %c0_1 = arith.constant 0 : index
    %c0_2 = arith.constant 0 : index
    %1 = vector.load %arg2[%c0_1, %c0_2] : memref<128x128xbf16, #tpu.memory_space<vmem>>, vector<128x128xbf16>
    %cst = arith.constant dense<0.000000e+00> : vector<256x128xf32>
    %2 = tpu.matmul %0, %1, %cst {dimension_numbers = #tpu.dot_dimension_numbers<[1], [0], [0], [1], [0, 0, 1, 1], [], []>} : vector<256x128xbf16>, vector<128x128xbf16>, vector<256x128xf32> -> vector<256x128xf32>
    %c0_3 = arith.constant 0 : index
    %c0_4 = arith.constant 0 : index
    %3 = vector.load %arg3[%c0_3, %c0_4] : memref<3x128xf32, #tpu.memory_space<vmem>>, vector<1x128xf32>
    %4 = vector.broadcast %3 : vector<1x128xf32> to vector<256x128xf32>
    %5 = arith.addf %2, %4 : vector<256x128xf32>
    %cst_5 = arith.constant dense<0.000000e+00> : vector<256xf32>
    %6 = vector.multi_reduction <add>, %5, %cst_5 [1] : vector<256x128xf32> to vector<256xf32>
    %7 = vector.shape_cast %6 : vector<256xf32> to vector<256x1xf32>
    %cst_6 = arith.constant 1.562500e-02 : f32
    %8 = vector.broadcast %cst_6 : f32 to vector<256x1xf32>
    %9 = arith.mulf %7, %8 : vector<256x1xf32>
    %10 = vector.broadcast %9 : vector<256x1xf32> to vector<256x128xf32>
    %11 = arith.subf %5, %10 : vector<256x128xf32>
    %12 = arith.mulf %11, %11 : vector<256x128xf32>
    %cst_7 = arith.constant dense<0.000000e+00> : vector<256xf32>
    %13 = vector.multi_reduction <add>, %12, %cst_7 [1] : vector<256x128xf32> to vector<256xf32>
    %14 = vector.shape_cast %13 : vector<256xf32> to vector<256x1xf32>
    %15 = arith.mulf %9, %9 : vector<256x1xf32>
    %cst_8 = arith.constant 6.400000e+01 : f32
    %16 = vector.broadcast %cst_8 : f32 to vector<256x1xf32>
    %17 = arith.mulf %16, %15 : vector<256x1xf32>
    %18 = arith.subf %14, %17 : vector<256x1xf32>
    %cst_9 = arith.constant 1.562500e-02 : f32
    %19 = vector.broadcast %cst_9 : f32 to vector<256x1xf32>
    %20 = arith.mulf %18, %19 : vector<256x1xf32>
    %cst_10 = arith.constant 9.99999974E-6 : f32
    %21 = vector.broadcast %cst_10 : f32 to vector<256x1xf32>
    %22 = arith.addf %20, %21 : vector<256x1xf32>
    %23 = math.rsqrt %22 : vector<256x1xf32>
    %c1 = arith.constant 1 : index
    %c0_11 = arith.constant 0 : index
    %24 = vector.load %arg3[%c1, %c0_11] : memref<3x128xf32, #tpu.memory_space<vmem>>, vector<1x128xf32>
    %25 = vector.broadcast %23 : vector<256x1xf32> to vector<256x128xf32>
    %26 = vector.broadcast %24 : vector<1x128xf32> to vector<256x128xf32>
    %27 = arith.mulf %25, %26 : vector<256x128xf32>
    %28 = arith.mulf %11, %27 : vector<256x128xf32>
    %c2 = arith.constant 2 : index
    %c0_12 = arith.constant 0 : index
    %29 = vector.load %arg3[%c2, %c0_12] : memref<3x128xf32, #tpu.memory_space<vmem>>, vector<1x128xf32>
    %30 = vector.broadcast %29 : vector<1x128xf32> to vector<256x128xf32>
    %31 = arith.addf %28, %30 : vector<256x128xf32>
    %cst_13 = arith.constant 0.000000e+00 : f32
    %32 = vector.broadcast %cst_13 : f32 to vector<256x128xf32>
    %33 = arith.maximumf %31, %32 : vector<256x128xf32>
    %34 = arith.truncf %33 : vector<256x128xf32> to vector<256x128xbf16>
    %c0_14 = arith.constant 0 : index
    %c0_15 = arith.constant 0 : index
    %35 = vector.load %arg4[%c0_14, %c0_15] : memref<128x128xbf16, #tpu.memory_space<vmem>>, vector<128x128xbf16>
    %cst_16 = arith.constant dense<0.000000e+00> : vector<256x128xf32>
    %36 = tpu.matmul %34, %35, %cst_16 {dimension_numbers = #tpu.dot_dimension_numbers<[1], [0], [0], [1], [0, 0, 1, 1], [], []>} : vector<256x128xbf16>, vector<128x128xbf16>, vector<256x128xf32> -> vector<256x128xf32>
    %c0_17 = arith.constant 0 : index
    %c0_18 = arith.constant 0 : index
    %37 = vector.load %arg5[%c0_17, %c0_18] : memref<1x128xf32, #tpu.memory_space<vmem>>, vector<1x128xf32>
    %38 = vector.broadcast %37 : vector<1x128xf32> to vector<256x128xf32>
    %39 = arith.addf %36, %38 : vector<256x128xf32>
    %c0_19 = arith.constant 0 : index
    %c0_20 = arith.constant 0 : index
    %40 = vector.load %arg6[%c0_19, %c0_20] : memref<256x128xf32, #tpu.memory_space<vmem>>, vector<256x128xf32>
    tpu.vector_store %arg6[%c0_19, %c0_20], %39 {strides = array<i32>} : memref<256x128xf32, #tpu.memory_space<vmem>>, vector<256x128xf32>,
    return
  }
  func.func @transform_0(%arg0: i32) -> (i32, i32) {
    %c0_i32 = arith.constant 0 : i32
    %c0_i32_0 = arith.constant 0 : i32
    return %arg0, %c0_i32 : i32, i32
  }
  func.func @transform_1(%arg0: i32) -> (i32, i32) {
    %c0_i32 = arith.constant 0 : i32
    %c0_i32_0 = arith.constant 0 : i32
    %c0_i32_1 = arith.constant 0 : i32
    return %c0_i32, %c0_i32_0 : i32, i32
  }
  func.func @transform_2(%arg0: i32) -> (i32, i32) {
    %c0_i32 = arith.constant 0 : i32
    %c0_i32_0 = arith.constant 0 : i32
    %c0_i32_1 = arith.constant 0 : i32
    return %c0_i32, %c0_i32_0 : i32, i32
  }
  func.func @transform_3(%arg0: i32) -> (i32, i32) {
    %c0_i32 = arith.constant 0 : i32
    %c0_i32_0 = arith.constant 0 : i32
    %c0_i32_1 = arith.constant 0 : i32
    return %c0_i32, %c0_i32_0 : i32, i32
  }
  func.func @transform_4(%arg0: i32) -> (i32, i32) {
    %c0_i32 = arith.constant 0 : i32
    %c0_i32_0 = arith.constant 0 : i32
    %c0_i32_1 = arith.constant 0 : i32
    return %c0_i32, %c0_i32_0 : i32, i32
  }
  func.func @transform_5(%arg0: i32) -> (i32, i32) {
    %c0_i32 = arith.constant 0 : i32
    %c0_i32_0 = arith.constant 0 : i32
    return %arg0, %c0_i32 : i32, i32
  }
}

</mosaic_0001>

<llo_original>
// kernel: tpu_custom_call.1
$region0: #{tpu_custom_call.1}
  #allocation0 [shape = 'u32[]', space=smem, size = 0x4, offset = 0x4, fixed_abs, tag = 'smem constant byte address 0x4 - core index']
  #allocation1 [shape = 'u32[144,128]{1,0:T(1,128)}', space=vmem, size = 0x12000, scoped, tag = 'internal scratch']
  %s0 = inlined_call_operand.hbm [shape: bf16[512,128], index: 0, kind: input, shape index: {}]
  %s1 = inlined_call_operand.hbm [shape: bf16[128,128], index: 1, kind: input, shape index: {}]
  %s2 = inlined_call_operand.vmem [shape: f32[3,128], index: 2, kind: input, shape index: {}]
  %s3 = inlined_call_operand.hbm [shape: bf16[128,128], index: 3, kind: input, shape index: {}]
  %s4 = inlined_call_operand.vmem [shape: f32[1,128], index: 4, kind: input, shape index: {}]
  %s5 = inlined_call_operand.hbm [shape: f32[512,128], index: 5, kind: output, shape index: {}]
  %s6 = sld [smem:[#allocation0]]
  $region65: #{tpu_custom_call.1} parent=0
    _
  %s8 = ssub.s32 1, %s6
  %s9 = scalar_select 0, %s8, %s6
  $region1: #{tpu_custom_call.1} parent=0
    #allocation2 [shape = 'u8[131072]{0}', space=vmem, size = 0x20000, scoped, tag = 'input window, operand 0']
    #allocation3 [shape = 's32[2]{0}', space=sflag, size = 0x8, scoped, tag = 'scoped memory for tpu_custom_call.1']
    #allocation4 [shape = 's32[2]{0}', space=sflag, size = 0x8, scoped, tag = 'scoped memory for tpu_custom_call.1']
    #allocation5 [shape = 'u8[32768]{0}', space=vmem, size = 0x8000, scoped, tag = 'input window, operand 1, single buffered']
    #allocation6 [shape = 's32[1]{0}', space=sflag, size = 0x4, scoped, tag = 'scoped memory for tpu_custom_call.1']
    #allocation7 [shape = 'u8[32768]{0}', space=vmem, size = 0x8000, scoped, tag = 'input window, operand 3, single buffered']
    #allocation8 [shape = 'u8[262144]{0}', space=vmem, size = 0x40000, scoped, tag = 'output window, operand 0']
    %10 = vsyncpa [#allocation3], 0
    %s11 = scalar_lea.sflag [#allocation3], 1
    %12 = vsyncpa %s11, 0
    %13 = vsyncpa [#allocation6], 0
    %14 = vsyncpa [#allocation4], 0
    %s15 = scalar_lea.sflag [#allocation4], 1
    %16 = vsyncpa %s15, 0
    loop: start=0, step=1, limit=4
    $region2: #{tpu_custom_call.1} parent=1 // loop_pre_header
      _
    $region3: #{tpu_custom_call.1} parent=1 // loop_header
      %s18 = sphi 0, %s22
      %p19 = scmp.ge.s32.totalorder %s18, 4
      %s28 = sphi 0, %s30
      %s31 = sphi 0, %s28
      %s32 = sphi 0, %s31
      %s48 = sphi 0, %s32
      %s52 = sphi 0, %s52
      %s54 = sphi 0, %s52
      %s55 = sphi 0, %s54
      %s69 = sphi 0, %s55
      %s73 = sphi 0, %s73
      %s75 = sphi 0, %s73
      %s76 = sphi 0, %s75
      %s90 = sphi 0, %s76
      %s94 = sphi 0, %s94
      %s96 = sphi 0, %s94
      %s97 = sphi 0, %s96
      %s111 = sphi 0, %s97
      %s115 = sphi 0, %s115
      %s117 = sphi 0, %s115
      %s118 = sphi 0, %s117
      %s132 = sphi 0, %s118
      %s138 = sphi 0, %s140
      %s141 = sphi 0, %s138
      %s142 = sphi 0, %s141
      %s158 = sphi 0, %s142
    $region4: #{tpu_custom_call.1} parent=1 // loop_header_branch
      %21 = sbr.rel (%p19) target = $region8
    $region5: #{tpu_custom_call.1} parent=1 // loop_body
      %s23 = ssub.s32 %s18, 1
      %s24 = ssub.s32 %s18, 2
      %s25 = sadd.s32 %s18, 1
      %s26 = ssub.s32 %s18, %s25
      %p27 = scmp.eq.s32.totalorder %s26, 0
      %s29 = sadd.s32 %s28, 1
      %s30 = scalar_select %p27, %s28, %s29
      %p33 = pneg %p27
      %p34 = scmp.eq.s32.totalorder %s18, 1
      %p35 = por %p33, %p34
      %p36 = scmp.ne.s32.totalorder %s28, %s31
      %p37 = scmp.eq.s32.totalorder %s18, 0
      %p38 = por %p36, %p37
      %p39 = scmp.ne.s32.totalorder %s28, %s31
      %p40 = scmp.eq.s32.totalorder %s23, 1
      %p41 = por %p39, %p40
      %p42 = scmp.ne.s32.totalorder %s31, %s32
      %p43 = scmp.eq.s32.totalorder %s23, 0
      %p44 = por %p42, %p43
      %p45 = scmp.ne.s32.totalorder %s31, %s32
      %p46 = scmp.eq.s32.totalorder %s24, 1
      %p47 = por %p45, %p46
      %p49 = scmp.ne.s32.totalorder %s32, %s48
      %p50 = scmp.eq.s32.totalorder %s24, 0
      %p51 = por %p49, %p50
      %s53 = sadd.s32 %s52, 1
      %p56 = scmp.eq.s32.totalorder %s18, 1
      %p57 = scmp.ne.s32.totalorder %s52, %s54
      %p58 = scmp.eq.s32.totalorder %s18, 0
      %p59 = por %p57, %p58
      %p60 = scmp.ne.s32.totalorder %s52, %s54
      %p61 = scmp.eq.s32.totalorder %s23, 1
      %p62 = por %p60, %p61
      %p63 = scmp.ne.s32.totalorder %s54, %s55
      %p64 = scmp.eq.s32.totalorder %s23, 0
      %p65 = por %p63, %p64
      %p66 = scmp.ne.s32.totalorder %s54, %s55
      %p67 = scmp.eq.s32.totalorder %s24, 1
      %p68 = por %p66, %p67
      %p70 = scmp.ne.s32.totalorder %s55, %s69
      %p71 = scmp.eq.s32.totalorder %s24, 0
      %p72 = por %p70, %p71
      %s74 = sadd.s32 %s73, 1
      %p77 = scmp.eq.s32.totalorder %s18, 1
      %p78 = scmp.ne.s32.totalorder %s73, %s75
      %p79 = scmp.eq.s32.totalorder %s18, 0
      %p80 = por %p78, %p79
      %p81 = scmp.ne.s32.totalorder %s73, %s75
      %p82 = scmp.eq.s32.totalorder %s23, 1
      %p83 = por %p81, %p82
      %p84 = scmp.ne.s32.totalorder %s75, %s76
      %p85 = scmp.eq.s32.totalorder %s23, 0
      %p86 = por %p84, %p85
      %p87 = scmp.ne.s32.totalorder %s75, %s76
      %p88 = scmp.eq.s32.totalorder %s24, 1
      %p89 = por %p87, %p88
      %p91 = scmp.ne.s32.totalorder %s76, %s90
      %p92 = scmp.eq.s32.totalorder %s24, 0
      %p93 = por %p91, %p92
      %s95 = sadd.s32 %s94, 1
      %p98 = scmp.eq.s32.totalorder %s18, 1
      %p99 = scmp.ne.s32.totalorder %s94, %s96
      %p100 = scmp.eq.s32.totalorder %s18, 0
      %p101 = por %p99, %p100
      %p102 = scmp.ne.s32.totalorder %s94, %s96
      %p103 = scmp.eq.s32.totalorder %s23, 1
      %p104 = por %p102, %p103
      %p105 = scmp.ne.s32.totalorder %s96, %s97
      %p106 = scmp.eq.s32.totalorder %s23, 0
      %p107 = por %p105, %p106
      %p108 = scmp.ne.s32.totalorder %s96, %s97
      %p109 = scmp.eq.s32.totalorder %s24, 1
      %p110 = por %p108, %p109
      %p112 = scmp.ne.s32.totalorder %s97, %s111
      %p113 = scmp.eq.s32.totalorder %s24, 0
      %p114 = por %p112, %p113
      %s116 = sadd.s32 %s115, 1
      %p119 = scmp.eq.s32.totalorder %s18, 1
      %p120 = scmp.ne.s32.totalorder %s115, %s117
      %p121 = scmp.eq.s32.totalorder %s18, 0
      %p122 = por %p120, %p121
      %p123 = scmp.ne.s32.totalorder %s115, %s117
      %p124 = scmp.eq.s32.totalorder %s23, 1
      %p125 = por %p123, %p124
      %p126 = scmp.ne.s32.totalorder %s117, %s118
      %p127 = scmp.eq.s32.totalorder %s23, 0
      %p128 = por %p126, %p127
      %p129 = scmp.ne.s32.totalorder %s117, %s118
      %p130 = scmp.eq.s32.totalorder %s24, 1
      %p131 = por %p129, %p130
      %p133 = scmp.ne.s32.totalorder %s118, %s132
      %p134 = scmp.eq.s32.totalorder %s24, 0
      %p135 = por %p133, %p134
      %s136 = ssub.s32 %s18, %s25
      %p137 = scmp.eq.s32.totalorder %s136, 0
      %s139 = sadd.s32 %s138, 1
      %s140 = scalar_select %p137, %s138, %s139
      %p143 = pneg %p137
      %p144 = scmp.eq.s32.totalorder %s18, 1
      %p145 = por %p143, %p144
      %p146 = scmp.ne.s32.totalorder %s138, %s141
      %p147 = scmp.eq.s32.totalorder %s18, 0
      %p148 = por %p146, %p147
      %p149 = scmp.ne.s32.totalorder %s138, %s141
      %p150 = scmp.eq.s32.totalorder %s23, 1
      %p151 = por %p149, %p150
      %p152 = scmp.ne.s32.totalorder %s141, %s142
      %p153 = scmp.eq.s32.totalorder %s23, 0
      %p154 = por %p152, %p153
      %p155 = scmp.ne.s32.totalorder %s141, %s142
      %p156 = scmp.eq.s32.totalorder %s24, 1
      %p157 = por %p155, %p156
      %p159 = scmp.ne.s32.totalorder %s142, %s158
      %p160 = scmp.eq.s32.totalorder %s24, 0
      %p161 = por %p159, %p160
      %p162 = scmp.le.s32.totalorder 1, %s18
      %p163 = scmp.lt.s32.totalorder %s18, 3
      %p164 = pnand %p162, %p163
      %p165 = pneg %p164
      // Predicated region
      $region9: #{tpu_custom_call.1} parent=5 // pred_check
        _
      $region10: #{tpu_custom_call.1} parent=5 // pred_check_branch
        %167 = sbr.rel (%p164) target = $region12
      $region11: #{tpu_custom_call.1} parent=5 // pred_region
        %s168 = ssub.s32 %s18, 1
        // Predicated region
        $region13: #{tpu_custom_call.1} parent=11 // pred_check
          %p169 = pneg %p65
        $region14: #{tpu_custom_call.1} parent=11 // pred_check_branch
          %171 = sbr.rel (%p169) target = $region16
        $region15: #{tpu_custom_call.1} parent=11 // pred_region
          %s173 = ssub.s32 1024, 1024
          %174 = vsyncadd [#allocation6], %s173
          %s175 = sshll.u32 [#allocation5], 4
          %s176 = int_to_ptr.vmem [resolvable:$true] %s175
          %181 = dma.hbm_to_vmem [thread:$0]  %s1, 1024, %s176, [#allocation6], 64, 64, 4
        $region16: #{tpu_custom_call.1} parent=11 // pred_fallthru
          _
        // Predicated region
        $region17: #{tpu_custom_call.1} parent=11 // pred_check
          %p182 = pneg %p86
        $region18: #{tpu_custom_call.1} parent=11 // pred_check_branch
          %184 = sbr.rel (%p182) target = $region20
        $region19: #{tpu_custom_call.1} parent=11 // pred_region
          _
        $region20: #{tpu_custom_call.1} parent=11 // pred_fallthru
          _
        // Predicated region
        $region21: #{tpu_custom_call.1} parent=11 // pred_check
          %p185 = pneg %p107
        $region22: #{tpu_custom_call.1} parent=11 // pred_check_branch
          %187 = sbr.rel (%p185) target = $region24
        $region23: #{tpu_custom_call.1} parent=11 // pred_region
          %s189 = ssub.s32 1024, 1024
          %190 = vsyncadd [#allocation6], %s189
          %s191 = sshll.u32 [#allocation7], 4
          %s192 = int_to_ptr.vmem [resolvable:$true] %s191
          %197 = dma.hbm_to_vmem [thread:$0]  %s3, 1024, %s192, [#allocation6], 64, 64, 4
        $region24: #{tpu_custom_call.1} parent=11 // pred_fallthru
          _
        // Predicated region
        $region25: #{tpu_custom_call.1} parent=11 // pred_check
          %p198 = pneg %p128
        $region26: #{tpu_custom_call.1} parent=11 // pred_check_branch
          %200 = sbr.rel (%p198) target = $region28
        $region27: #{tpu_custom_call.1} parent=11 // pred_region
          _
        $region28: #{tpu_custom_call.1} parent=11 // pred_fallthru
          _
      $region12: #{tpu_custom_call.1} parent=5 // pred_fallthru
        _
      %p201 = scmp.lt.s32.totalorder %s18, 2
      // Predicated region
      $region29: #{tpu_custom_call.1} parent=5 // pred_check
        %p202 = pneg %p201
      $region30: #{tpu_custom_call.1} parent=5 // pred_check_branch
        %204 = sbr.rel (%p202) target = $region32
      $region31: #{tpu_custom_call.1} parent=5 // pred_region
        // Predicated region
        $region33: #{tpu_custom_call.1} parent=31 // pred_check
          %p205 = pneg %p38
        $region34: #{tpu_custom_call.1} parent=31 // pred_check_branch
          %207 = sbr.rel (%p205) target = $region36
        $region35: #{tpu_custom_call.1} parent=31 // pred_region
          %s208 = sand.u32 %s28, 1
          %s209 = scalar_lea.sflag [#allocation3], %s208
          %s210 = sand.u32 %s28, 1
          %s211 = smul.addr %s210, 128
          %s212 = scalar_lea.vmem [#allocation2], %s211
          %s213 = smul.u32 32, %s18
          %s215 = ssub.s32 2048, 2048
          %216 = vsyncadd %s209, %s215
          %s217 = smul.addr %s213, 64
          %s218 = scalar_lea.hbm %s0, %s217
          %s219 = sshll.u32 %s212, 4
          %s220 = int_to_ptr.vmem [resolvable:$true] %s219
          %225 = dma.hbm_to_vmem [thread:$0]  %s218, 2048, %s220, %s209, 64, 64, 4
        $region36: #{tpu_custom_call.1} parent=31 // pred_fallthru
          _
      $region32: #{tpu_custom_call.1} parent=5 // pred_fallthru
        _
      %p226 = scmp.le.s32.totalorder 1, %s18
      %p227 = scmp.lt.s32.totalorder %s18, 3
      %p228 = pnand %p226, %p227
      %p229 = pneg %p228
      // Predicated region
      $region37: #{tpu_custom_call.1} parent=5 // pred_check
        _
      $region38: #{tpu_custom_call.1} parent=5 // pred_check_branch
        %231 = sbr.rel (%p228) target = $region40
      $region39: #{tpu_custom_call.1} parent=5 // pred_region
        %s232 = ssub.s32 %s18, 1
        %s233 = sand.u32 %s31, 1
        %s234 = scalar_lea.sflag [#allocation3], %s233
        %s235 = sand.u32 %s31, 1
        %s236 = smul.addr %s235, 128
        %s237 = scalar_lea.vmem [#allocation2], %s236
        // Predicated region
        $region41: #{tpu_custom_call.1} parent=39 // pred_check
          %p238 = pneg %p44
        $region42: #{tpu_custom_call.1} parent=39 // pred_check_branch
          %240 = sbr.rel (%p238) target = $region44
        $region43: #{tpu_custom_call.1} parent=39 // pred_region
          %241 = dma.done %s234, 2048
        $region44: #{tpu_custom_call.1} parent=39 // pred_fallthru
          _
        // Predicated region
        $region45: #{tpu_custom_call.1} parent=39 // pred_check
          %p242 = pneg %p65
        $region46: #{tpu_custom_call.1} parent=39 // pred_check_branch
          %244 = sbr.rel (%p242) target = $region48
        $region47: #{tpu_custom_call.1} parent=39 // pred_region
          %245 = dma.done [#allocation6], 1024
        $region48: #{tpu_custom_call.1} parent=39 // pred_fallthru
          _
        // Predicated region
        $region49: #{tpu_custom_call.1} parent=39 // pred_check
          %p246 = pneg %p107
        $region50: #{tpu_custom_call.1} parent=39 // pred_check_branch
          %248 = sbr.rel (%p246) target = $region52
        $region51: #{tpu_custom_call.1} parent=39 // pred_region
          %249 = dma.done [#allocation6], 1024
        $region52: #{tpu_custom_call.1} parent=39 // pred_fallthru
          _
        %s250 = sand.u32 %s31, 1
        %s251 = scalar_lea.sflag [#allocation3], %s250
        %s252 = sand.u32 %s31, 1
        %s253 = smul.addr %s252, 128
        %s254 = scalar_lea.vmem [#allocation2], %s253
        %p255 = pneg %p44
        %p256 = pneg %p41
        %p257 = pneg %p65
        %p258 = pneg %p62
        %p259 = pneg %p86
        %p260 = pneg %p83
        %p261 = pneg %p107
        %p262 = pneg %p104
        %p263 = pneg %p128
        %p264 = pneg %p125
        %p265 = pneg %p154
        %p266 = pneg %p151
        %s267 = sand.u32 %s141, 1
        %s268 = scalar_lea.sflag [#allocation4], %s267
        %s269 = sand.u32 %s141, 1
        %s270 = smul.addr %s269, 256
        %s271 = scalar_lea.vmem [#allocation8], %s270
        %s272 = smul.u32 32, %s23
        %s273 = smul.u32 32, %s23
        %v275 = vld [vmem:[%s237] sm:$0xf]
        %v276 = vld [vmem:[%s237 + $0x4] sm:$0xf]
        %v277 = vld [vmem:[%s237 + $0x8] sm:$0xf]
        %v278 = vld [vmem:[%s237 + $0xc] sm:$0xf]
        %v279 = vld [vmem:[%s237 + $0x10] sm:$0xf]
        %v280 = vld [vmem:[%s237 + $0x14] sm:$0xf]
        %v281 = vld [vmem:[%s237 + $0x18] sm:$0xf]
        %v282 = vld [vmem:[%s237 + $0x1c] sm:$0xf]
        %v283 = vld [vmem:[%s237 + $0x20] sm:$0xf]
        %v284 = vld [vmem:[%s237 + $0x24] sm:$0xf]
        %v285 = vld [vmem:[%s237 + $0x28] sm:$0xf]
        %v286 = vld [vmem:[%s237 + $0x2c] sm:$0xf]
        %v287 = vld [vmem:[%s237 + $0x30] sm:$0xf]
        %v288 = vld [vmem:[%s237 + $0x34] sm:$0xf]
        %v289 = vld [vmem:[%s237 + $0x38] sm:$0xf]
        %v290 = vld [vmem:[%s237 + $0x3c] sm:$0xf]
        %v291 = vld [vmem:[%s237 + $0x40] sm:$0xf]
        %v292 = vld [vmem:[%s237 + $0x44] sm:$0xf]
        %v293 = vld [vmem:[%s237 + $0x48] sm:$0xf]
        %v294 = vld [vmem:[%s237 + $0x4c] sm:$0xf]
        %v295 = vld [vmem:[%s237 + $0x50] sm:$0xf]
        %v296 = vld [vmem:[%s237 + $0x54] sm:$0xf]
        %v297 = vld [vmem:[%s237 + $0x58] sm:$0xf]
        %v298 = vld [vmem:[%s237 + $0x5c] sm:$0xf]
        %v299 = vld [vmem:[%s237 + $0x60] sm:$0xf]
        %v300 = vld [vmem:[%s237 + $0x64] sm:$0xf]
        %v301 = vld [vmem:[%s237 + $0x68] sm:$0xf]
        %v302 = vld [vmem:[%s237 + $0x6c] sm:$0xf]
        %v303 = vld [vmem:[%s237 + $0x70] sm:$0xf]
        %v304 = vld [vmem:[%s237 + $0x74] sm:$0xf]
        %v305 = vld [vmem:[%s237 + $0x78] sm:$0xf]
        %v306 = vld [vmem:[%s237 + $0x7c] sm:$0xf]
        %v307 = vld [vmem:[#allocation5] sm:$0xf]
        %v308 = vld [vmem:[#allocation5 + $0x4] sm:$0xf]
        %v309 = vld [vmem:[#allocation5 + $0x8] sm:$0xf]
        %v310 = vld [vmem:[#allocation5 + $0xc] sm:$0xf]
        %v311 = vld [vmem:[#allocation5 + $0x10] sm:$0xf]
        %v312 = vld [vmem:[#allocation5 + $0x14] sm:$0xf]
        %v313 = vld [vmem:[#allocation5 + $0x18] sm:$0xf]
        %v314 = vld [vmem:[#allocation5 + $0x1c] sm:$0xf]
        %v315 = vld [vmem:[#allocation5 + $0x20] sm:$0xf]
        %v316 = vld [vmem:[#allocation5 + $0x24] sm:$0xf]
        %v317 = vld [vmem:[#allocation5 + $0x28] sm:$0xf]
        %v318 = vld [vmem:[#allocation5 + $0x2c] sm:$0xf]
        %v319 = vld [vmem:[#allocation5 + $0x30] sm:$0xf]
        %v320 = vld [vmem:[#allocation5 + $0x34] sm:$0xf]
        %v321 = vld [vmem:[#allocation5 + $0x38] sm:$0xf]
        %v322 = vld [vmem:[#allocation5 + $0x3c] sm:$0xf]
        %v323 = vld [vmem:[%s2] sm:$0x1]
        %v324 = vlaneseq
        %v325 = vshrl.u32 %v324, 7
        %v326 = vsub.s32 0, %v325
        %v327 = vrot.slane %v323, %v326
        %v360 = vunpack.c.l.b16 %v275
        %v361 = vunpack.c.l.b16 %v276
        %v362 = vunpack.c.l.b16 %v277
        %v363 = vunpack.c.l.b16 %v278
        %v364 = vunpack.c.l.b16 %v279
        %v365 = vunpack.c.l.b16 %v280
        %v366 = vunpack.c.l.b16 %v281
        %v367 = vunpack.c.l.b16 %v282
        %v368 = vunpack.c.l.b16 %v283
        %v369 = vunpack.c.l.b16 %v284
        %v370 = vunpack.c.l.b16 %v285
        %v371 = vunpack.c.l.b16 %v286
        %v372 = vunpack.c.l.b16 %v287
        %v373 = vunpack.c.l.b16 %v288
        %v374 = vunpack.c.l.b16 %v289
        %v375 = vunpack.c.l.b16 %v290
        %v376 = vunpack.c.l.b16 %v291
        %v377 = vunpack.c.l.b16 %v292
        %v378 = vunpack.c.l.b16 %v293
        %v379 = vunpack.c.l.b16 %v294
        %v380 = vunpack.c.l.b16 %v295
        %v381 = vunpack.c.l.b16 %v296
        %v382 = vunpack.c.l.b16 %v297
        %v383 = vunpack.c.l.b16 %v298
        %v384 = vunpack.c.l.b16 %v299
        %v385 = vunpack.c.l.b16 %v300
        %v386 = vunpack.c.l.b16 %v301
        %v387 = vunpack.c.l.b16 %v302
        %v388 = vunpack.c.l.b16 %v303
        %v389 = vunpack.c.l.b16 %v304
        %v390 = vunpack.c.l.b16 %v305
        %v391 = vunpack.c.l.b16 %v306
        %v392 = vpack.c.b16 %v361, %v360
        %v393 = vpack.c.b16 %v363, %v362
        %v394 = vpack.c.b16 %v365, %v364
        %v395 = vpack.c.b16 %v367, %v366
        %v396 = vpack.c.b16 %v369, %v368
        %v397 = vpack.c.b16 %v371, %v370
        %v398 = vpack.c.b16 %v373, %v372
        %v399 = vpack.c.b16 %v375, %v374
        %v400 = vpack.c.b16 %v377, %v376
        %v401 = vpack.c.b16 %v379, %v378
        %v402 = vpack.c.b16 %v381, %v380
        %v403 = vpack.c.b16 %v383, %v382
        %v404 = vpack.c.b16 %v385, %v384
        %v405 = vpack.c.b16 %v387, %v386
        %v406 = vpack.c.b16 %v389, %v388
        %v407 = vpack.c.b16 %v391, %v390
        %v440 = vunpack.c.l.b16 %v307
        %v441 = vunpack.c.l.b16 %v308
        %v442 = vunpack.c.l.b16 %v309
        %v443 = vunpack.c.l.b16 %v310
        %v444 = vunpack.c.l.b16 %v311
        %v445 = vunpack.c.l.b16 %v312
        %v446 = vunpack.c.l.b16 %v313
        %v447 = vunpack.c.l.b16 %v314
        %v448 = vunpack.c.l.b16 %v315
        %v449 = vunpack.c.l.b16 %v316
        %v450 = vunpack.c.l.b16 %v317
        %v451 = vunpack.c.l.b16 %v318
        %v452 = vunpack.c.l.b16 %v319
        %v453 = vunpack.c.l.b16 %v320
        %v454 = vunpack.c.l.b16 %v321
        %v455 = vunpack.c.l.b16 %v322
        %v456 = vpack.c.b16 %v441, %v440
        %v457 = vpack.c.b16 %v443, %v442
        %v458 = vpack.c.b16 %v445, %v444
        %v459 = vpack.c.b16 %v447, %v446
        %v460 = vpack.c.b16 %v449, %v448
        %v461 = vpack.c.b16 %v451, %v450
        %v462 = vpack.c.b16 %v453, %v452
        %v463 = vpack.c.b16 %v455, %v454
        %472 = vmatprep.subr.bf16.mxu0 0
        %473 = vmatpush1.bf16.msra.mxu0 %v456
        %474 = vmatprep.subr.bf16.mxu0 0
        %475 = vmatpush1.bf16.msra.mxu0 %v457
        %476 = vmatprep.subr.bf16.mxu0 0
        %477 = vmatpush1.bf16.msra.mxu0 %v458
        %478 = vmatprep.subr.bf16.mxu0 0
        %479 = vmatpush1.bf16.msra.mxu0 %v459
        %480 = vmatprep.subr.bf16.mxu0 0
        %481 = vmatpush1.bf16.msra.mxu0 %v460
        %482 = vmatprep.subr.bf16.mxu0 0
        %483 = vmatpush1.bf16.msra.mxu0 %v461
        %484 = vmatprep.subr.bf16.mxu0 0
        %485 = vmatpush1.bf16.msra.mxu0 %v462
        %486 = vmatprep.subr.bf16.mxu0 0
        %487 = vmatpush1.bf16.msra.mxu0 %v463
        %488 = vmatprep.subr.bf16.mxu0 0
        %489 = vmatpush1.bf16.msra.mxu0 0
        %490 = vmatprep.subr.bf16.mxu0 0
        %491 = vmatpush1.bf16.msra.mxu0 0
        %492 = vmatprep.subr.bf16.mxu0 0
        %493 = vmatpush1.bf16.msra.mxu0 0
        %494 = vmatprep.subr.bf16.mxu0 0
        %495 = vmatpush1.bf16.msra.mxu0 0
        %496 = vmatprep.subr.bf16.mxu0 0
        %497 = vmatpush1.bf16.msra.mxu0 0
        %498 = vmatprep.subr.bf16.mxu0 0
        %499 = vmatpush1.bf16.msra.mxu0 0
        %500 = vmatprep.subr.bf16.mxu0 0
        %501 = vmatpush1.bf16.msra.mxu0 0
        %502 = vmatprep.subr.bf16.mxu0 0
        %503 = vmatpush1.bf16.msra.mxu0 0
        %504 = vmatprep.mubr.bf16.mxu0 0
        %505 = vmatmul.mubr.bf16.gmra.mrb[0].mxu0 %v392
        %v506 = vpop.f32.mrb[0].mxu0
        %v507 = vadd.f32 %v327, %v506
        %v508 = vpop.f32.mrb[0].mxu0
        %v509 = vpop.f32.mrb[0].mxu0
        %v510 = vadd.f32 %v327, %v509
        %v511 = vpop.f32.mrb[0].mxu0
        %512 = vmatprep.mubr.bf16.mxu0 0
        %513 = vmatmul.mubr.bf16.gmra.mrb[0].mxu0 %v393
        %v514 = vpop.f32.mrb[0].mxu0
        %v515 = vadd.f32 %v327, %v514
        %v516 = vpop.f32.mrb[0].mxu0
        %v517 = vpop.f32.mrb[0].mxu0
        %v518 = vadd.f32 %v327, %v517
        %v519 = vpop.f32.mrb[0].mxu0
        %520 = vmatprep.mubr.bf16.mxu0 0
        %521 = vmatmul.mubr.bf16.gmra.mrb[0].mxu0 %v394
        %v522 = vpop.f32.mrb[0].mxu0
        %v523 = vadd.f32 %v327, %v522
        %v524 = vpop.f32.mrb[0].mxu0
        %v525 = vpop.f32.mrb[0].mxu0
        %v526 = vadd.f32 %v327, %v525
        %v527 = vpop.f32.mrb[0].mxu0
        %528 = vmatprep.mubr.bf16.mxu0 0
        %529 = vmatmul.mubr.bf16.gmra.mrb[0].mxu0 %v395
        %v530 = vpop.f32.mrb[0].mxu0
        %v531 = vadd.f32 %v327, %v530
        %v532 = vpop.f32.mrb[0].mxu0
        %v533 = vpop.f32.mrb[0].mxu0
        %v534 = vadd.f32 %v327, %v533
        %v535 = vpop.f32.mrb[0].mxu0
        %536 = vmatprep.mubr.bf16.mxu0 0
        %537 = vmatmul.mubr.bf16.gmra.mrb[0].mxu0 %v396
        %v538 = vpop.f32.mrb[0].mxu0
        %v539 = vadd.f32 %v327, %v538
        %v540 = vpop.f32.mrb[0].mxu0
        %v541 = vpop.f32.mrb[0].mxu0
        %v542 = vadd.f32 %v327, %v541
        %v543 = vpop.f32.mrb[0].mxu0
        %544 = vmatprep.mubr.bf16.mxu0 0
        %545 = vmatmul.mubr.bf16.gmra.mrb[0].mxu0 %v397
        %v546 = vpop.f32.mrb[0].mxu0
        %v547 = vadd.f32 %v327, %v546
        %v548 = vpop.f32.mrb[0].mxu0
        %v549 = vpop.f32.mrb[0].mxu0
        %v550 = vadd.f32 %v327, %v549
        %v551 = vpop.f32.mrb[0].mxu0
        %552 = vmatprep.mubr.bf16.mxu0 0
        %553 = vmatmul.mubr.bf16.gmra.mrb[0].mxu0 %v398
        %v554 = vpop.f32.mrb[0].mxu0
        %v555 = vadd.f32 %v327, %v554
        %v556 = vpop.f32.mrb[0].mxu0
        %v557 = vpop.f32.mrb[0].mxu0
        %v558 = vadd.f32 %v327, %v557
        %v559 = vpop.f32.mrb[0].mxu0
        %560 = vmatprep.mubr.bf16.mxu0 0
        %561 = vmatmul.mubr.bf16.gmra.mrb[0].mxu0 %v399
        %v562 = vpop.f32.mrb[0].mxu0
        %v563 = vadd.f32 %v327, %v562
        %v564 = vpop.f32.mrb[0].mxu0
        %v565 = vpop.f32.mrb[0].mxu0
        %v566 = vadd.f32 %v327, %v565
        %v567 = vpop.f32.mrb[0].mxu0
        %568 = vmatprep.mubr.bf16.mxu0 0
        %569 = vmatmul.mubr.bf16.gmra.mrb[0].mxu0 %v400
        %v570 = vpop.f32.mrb[0].mxu0
        %v571 = vadd.f32 %v327, %v570
        %v572 = vpop.f32.mrb[0].mxu0
        %v573 = vpop.f32.mrb[0].mxu0
        %v574 = vadd.f32 %v327, %v573
        %v575 = vpop.f32.mrb[0].mxu0
        %576 = vmatprep.mubr.bf16.mxu0 0
        %577 = vmatmul.mubr.bf16.gmra.mrb[0].mxu0 %v401
        %v578 = vpop.f32.mrb[0].mxu0
        %v579 = vadd.f32 %v327, %v578
        %v580 = vpop.f32.mrb[0].mxu0
        %v581 = vpop.f32.mrb[0].mxu0
        %v582 = vadd.f32 %v327, %v581
        %v583 = vpop.f32.mrb[0].mxu0
        %584 = vmatprep.mubr.bf16.mxu0 0
        %585 = vmatmul.mubr.bf16.gmra.mrb[0].mxu0 %v402
        %v586 = vpop.f32.mrb[0].mxu0
        %v587 = vadd.f32 %v327, %v586
        %v588 = vpop.f32.mrb[0].mxu0
        %v589 = vpop.f32.mrb[0].mxu0
        %v590 = vadd.f32 %v327, %v589
        %v591 = vpop.f32.mrb[0].mxu0
        %592 = vmatprep.mubr.bf16.mxu0 0
        %593 = vmatmul.mubr.bf16.gmra.mrb[0].mxu0 %v403
        %v594 = vpop.f32.mrb[0].mxu0
        %v595 = vadd.f32 %v327, %v594
        %v596 = vpop.f32.mrb[0].mxu0
        %v597 = vpop.f32.mrb[0].mxu0
        %v598 = vadd.f32 %v327, %v597
        %v599 = vpop.f32.mrb[0].mxu0
        %600 = vmatprep.mubr.bf16.mxu0 0
        %601 = vmatmul.mubr.bf16.gmra.mrb[0].mxu0 %v404
        %v602 = vpop.f32.mrb[0].mxu0
        %v603 = vadd.f32 %v327, %v602
        %v604 = vpop.f32.mrb[0].mxu0
        %v605 = vpop.f32.mrb[0].mxu0
        %v606 = vadd.f32 %v327, %v605
        %v607 = vpop.f32.mrb[0].mxu0
        %608 = vmatprep.mubr.bf16.mxu0 0
        %609 = vmatmul.mubr.bf16.gmra.mrb[0].mxu0 %v405
        %v610 = vpop.f32.mrb[0].mxu0
        %v611 = vadd.f32 %v327, %v610
        %v612 = vpop.f32.mrb[0].mxu0
        %v613 = vpop.f32.mrb[0].mxu0
        %v614 = vadd.f32 %v327, %v613
        %v615 = vpop.f32.mrb[0].mxu0
        %616 = vmatprep.mubr.bf16.mxu0 0
        %617 = vmatmul.mubr.bf16.gmra.mrb[0].mxu0 %v406
        %v618 = vpop.f32.mrb[0].mxu0
        %v619 = vadd.f32 %v327, %v618
        %v620 = vpop.f32.mrb[0].mxu0
        %v621 = vpop.f32.mrb[0].mxu0
        %v622 = vadd.f32 %v327, %v621
        %v623 = vpop.f32.mrb[0].mxu0
        %624 = vmatprep.mubr.bf16.mxu0 0
        %625 = vmatmul.mubr.bf16.gmra.mrb[0].mxu0 %v407
        %v626 = vpop.f32.mrb[0].mxu0
        %v627 = vadd.f32 %v327, %v626
        %v628 = vpop.f32.mrb[0].mxu0
        %v629 = vpop.f32.mrb[0].mxu0
        %v630 = vadd.f32 %v327, %v629
        %v631 = vpop.f32.mrb[0].mxu0
        %632 = vdwg.mxu0
        %633 = vadd.xlane.f32.xlu0 %v507
        %v634 = vpop.xlane.xlu0 %633
        %635 = vadd.xlane.f32.xlu0 %v510
        %v636 = vpop.xlane.xlu0 %635
        %637 = vadd.xlane.f32.xlu0 %v515
        %v638 = vpop.xlane.xlu0 %637
        %639 = vadd.xlane.f32.xlu0 %v518
        %v640 = vpop.xlane.xlu0 %639
        %641 = vadd.xlane.f32.xlu0 %v523
        %v642 = vpop.xlane.xlu0 %641
        %643 = vadd.xlane.f32.xlu0 %v526
        %v644 = vpop.xlane.xlu0 %643
        %645 = vadd.xlane.f32.xlu0 %v531
        %v646 = vpop.xlane.xlu0 %645
        %647 = vadd.xlane.f32.xlu0 %v534
        %v648 = vpop.xlane.xlu0 %647
        %649 = vadd.xlane.f32.xlu0 %v539
        %v650 = vpop.xlane.xlu0 %649
        %651 = vadd.xlane.f32.xlu0 %v542
        %v652 = vpop.xlane.xlu0 %651
        %653 = vadd.xlane.f32.xlu0 %v547
        %v654 = vpop.xlane.xlu0 %653
        %655 = vadd.xlane.f32.xlu0 %v550
        %v656 = vpop.xlane.xlu0 %655
        %657 = vadd.xlane.f32.xlu0 %v555
        %v658 = vpop.xlane.xlu0 %657
        %659 = vadd.xlane.f32.xlu0 %v558
        %v660 = vpop.xlane.xlu0 %659
        %661 = vadd.xlane.f32.xlu0 %v563
        %v662 = vpop.xlane.xlu0 %661
        %663 = vadd.xlane.f32.xlu0 %v566
        %v664 = vpop.xlane.xlu0 %663
        %665 = vadd.xlane.f32.xlu0 %v571
        %v666 = vpop.xlane.xlu0 %665
        %667 = vadd.xlane.f32.xlu0 %v574
        %v668 = vpop.xlane.xlu0 %667
        %669 = vadd.xlane.f32.xlu0 %v579
        %v670 = vpop.xlane.xlu0 %669
        %671 = vadd.xlane.f32.xlu0 %v582
        %v672 = vpop.xlane.xlu0 %671
        %673 = vadd.xlane.f32.xlu0 %v587
        %v674 = vpop.xlane.xlu0 %673
        %675 = vadd.xlane.f32.xlu0 %v590
        %v676 = vpop.xlane.xlu0 %675
        %677 = vadd.xlane.f32.xlu0 %v595
        %v678 = vpop.xlane.xlu0 %677
        %679 = vadd.xlane.f32.xlu0 %v598
        %v680 = vpop.xlane.xlu0 %679
        %681 = vadd.xlane.f32.xlu0 %v603
        %v682 = vpop.xlane.xlu0 %681
        %683 = vadd.xlane.f32.xlu0 %v606
        %v684 = vpop.xlane.xlu0 %683
        %685 = vadd.xlane.f32.xlu0 %v611
        %v686 = vpop.xlane.xlu0 %685
        %687 = vadd.xlane.f32.xlu0 %v614
        %v688 = vpop.xlane.xlu0 %687
        %689 = vadd.xlane.f32.xlu0 %v619
        %v690 = vpop.xlane.xlu0 %689
        %691 = vadd.xlane.f32.xlu0 %v622
        %v692 = vpop.xlane.xlu0 %691
        %693 = vadd.xlane.f32.xlu0 %v627
        %v694 = vpop.xlane.xlu0 %693
        %695 = vadd.xlane.f32.xlu0 %v630
        %v696 = vpop.xlane.xlu0 %695
        %v697 = vmul.f32 %v634, 0.015625
        %v698 = vmul.f32 %v636, 0.015625
        %v699 = vmul.f32 %v638, 0.015625
        %v700 = vmul.f32 %v640, 0.015625
        %v701 = vmul.f32 %v642, 0.015625
        %v702 = vmul.f32 %v644, 0.015625
        %v703 = vmul.f32 %v646, 0.015625
        %v704 = vmul.f32 %v648, 0.015625
        %v705 = vmul.f32 %v650, 0.015625
        %v706 = vmul.f32 %v652, 0.015625
        %v707 = vmul.f32 %v654, 0.015625
        %v708 = vmul.f32 %v656, 0.015625
        %v709 = vmul.f32 %v658, 0.015625
        %v710 = vmul.f32 %v660, 0.015625
        %v711 = vmul.f32 %v662, 0.015625
        %v712 = vmul.f32 %v664, 0.015625
        %v713 = vmul.f32 %v666, 0.015625
        %v714 = vmul.f32 %v668, 0.015625
        %v715 = vmul.f32 %v670, 0.015625
        %v716 = vmul.f32 %v672, 0.015625
        %v717 = vmul.f32 %v674, 0.015625
        %v718 = vmul.f32 %v676, 0.015625
        %v719 = vmul.f32 %v678, 0.015625
        %v720 = vmul.f32 %v680, 0.015625
        %v721 = vmul.f32 %v682, 0.015625
        %v722 = vmul.f32 %v684, 0.015625
        %v723 = vmul.f32 %v686, 0.015625
        %v724 = vmul.f32 %v688, 0.015625
        %v725 = vmul.f32 %v690, 0.015625
        %v726 = vmul.f32 %v692, 0.015625
        %v727 = vmul.f32 %v694, 0.015625
        %v728 = vmul.f32 %v696, 0.015625
        %v729 = vsub.f32 %v507, %v697
        %v730 = vsub.f32 %v510, %v698
        %v731 = vsub.f32 %v515, %v699
        %v732 = vsub.f32 %v518, %v700
        %v733 = vsub.f32 %v523, %v701
        %v734 = vsub.f32 %v526, %v702
        %v735 = vsub.f32 %v531, %v703
        %v736 = vsub.f32 %v534, %v704
        %v737 = vsub.f32 %v539, %v705
        %v738 = vsub.f32 %v542, %v706
        %v739 = vsub.f32 %v547, %v707
        %v740 = vsub.f32 %v550, %v708
        %v741 = vsub.f32 %v555, %v709
        %v742 = vsub.f32 %v558, %v710
        %v743 = vsub.f32 %v563, %v711
        %v744 = vsub.f32 %v566, %v712
        %v745 = vsub.f32 %v571, %v713
        %v746 = vsub.f32 %v574, %v714
        %v747 = vsub.f32 %v579, %v715
        %v748 = vsub.f32 %v582, %v716
        %v749 = vsub.f32 %v587, %v717
        %v750 = vsub.f32 %v590, %v718
        %v751 = vsub.f32 %v595, %v719
        %v752 = vsub.f32 %v598, %v720
        %v753 = vsub.f32 %v603, %v721
        %v754 = vsub.f32 %v606, %v722
        %v755 = vsub.f32 %v611, %v723
        %v756 = vsub.f32 %v614, %v724
        %v757 = vsub.f32 %v619, %v725
        %v758 = vsub.f32 %v622, %v726
        %v759 = vsub.f32 %v627, %v727
        %v760 = vsub.f32 %v630, %v728
        %v761 = vmul.f32 %v729, %v729
        %v762 = vmul.f32 %v730, %v730
        %v763 = vmul.f32 %v731, %v731
        %v764 = vmul.f32 %v732, %v732
        %v765 = vmul.f32 %v733, %v733
        %v766 = vmul.f32 %v734, %v734
        %v767 = vmul.f32 %v735, %v735
        %v768 = vmul.f32 %v736, %v736
        %v769 = vmul.f32 %v737, %v737
        %v770 = vmul.f32 %v738, %v738
        %v771 = vmul.f32 %v739, %v739
        %v772 = vmul.f32 %v740, %v740
        %v773 = vmul.f32 %v741, %v741
        %v774 = vmul.f32 %v742, %v742
        %v775 = vmul.f32 %v743, %v743
        %v776 = vmul.f32 %v744, %v744
        %v777 = vmul.f32 %v745, %v745
        %v778 = vmul.f32 %v746, %v746
        %v779 = vmul.f32 %v747, %v747
        %v780 = vmul.f32 %v748, %v748
        %v781 = vmul.f32 %v749, %v749
        %v782 = vmul.f32 %v750, %v750
        %v783 = vmul.f32 %v751, %v751
        %v784 = vmul.f32 %v752, %v752
        %v785 = vmul.f32 %v753, %v753
        %v786 = vmul.f32 %v754, %v754
        %v787 = vmul.f32 %v755, %v755
        %v788 = vmul.f32 %v756, %v756
        %v789 = vmul.f32 %v757, %v757
        %v790 = vmul.f32 %v758, %v758
        %v791 = vmul.f32 %v759, %v759
        %v792 = vmul.f32 %v760, %v760
        %793 = vadd.xlane.f32.xlu0 %v761
        %v794 = vpop.xlane.xlu0 %793
        %795 = vadd.xlane.f32.xlu0 %v762
        %v796 = vpop.xlane.xlu0 %795
        %797 = vadd.xlane.f32.xlu0 %v763
        %v798 = vpop.xlane.xlu0 %797
        %799 = vadd.xlane.f32.xlu0 %v764
        %v800 = vpop.xlane.xlu0 %799
        %801 = vadd.xlane.f32.xlu0 %v765
        %v802 = vpop.xlane.xlu0 %801
        %803 = vadd.xlane.f32.xlu0 %v766
        %v804 = vpop.xlane.xlu0 %803
        %805 = vadd.xlane.f32.xlu0 %v767
        %v806 = vpop.xlane.xlu0 %805
        %807 = vadd.xlane.f32.xlu0 %v768
        %v808 = vpop.xlane.xlu0 %807
        %809 = vadd.xlane.f32.xlu0 %v769
        %v810 = vpop.xlane.xlu0 %809
        %811 = vadd.xlane.f32.xlu0 %v770
        %v812 = vpop.xlane.xlu0 %811
        %813 = vadd.xlane.f32.xlu0 %v771
        %v814 = vpop.xlane.xlu0 %813
        %815 = vadd.xlane.f32.xlu0 %v772
        %v816 = vpop.xlane.xlu0 %815
        %817 = vadd.xlane.f32.xlu0 %v773
        %v818 = vpop.xlane.xlu0 %817
        %819 = vadd.xlane.f32.xlu0 %v774
        %v820 = vpop.xlane.xlu0 %819
        %821 = vadd.xlane.f32.xlu0 %v775
        %v822 = vpop.xlane.xlu0 %821
        %823 = vadd.xlane.f32.xlu0 %v776
        %v824 = vpop.xlane.xlu0 %823
        %825 = vadd.xlane.f32.xlu0 %v777
        %v826 = vpop.xlane.xlu0 %825
        %827 = vadd.xlane.f32.xlu0 %v778
        %v828 = vpop.xlane.xlu0 %827
        %829 = vadd.xlane.f32.xlu0 %v779
        %v830 = vpop.xlane.xlu0 %829
        %831 = vadd.xlane.f32.xlu0 %v780
        %v832 = vpop.xlane.xlu0 %831
        %833 = vadd.xlane.f32.xlu0 %v781
        %v834 = vpop.xlane.xlu0 %833
        %835 = vadd.xlane.f32.xlu0 %v782
        %v836 = vpop.xlane.xlu0 %835
        %837 = vadd.xlane.f32.xlu0 %v783
        %v838 = vpop.xlane.xlu0 %837
        %839 = vadd.xlane.f32.xlu0 %v784
        %v840 = vpop.xlane.xlu0 %839
        %841 = vadd.xlane.f32.xlu0 %v785
        %v842 = vpop.xlane.xlu0 %841
        %843 = vadd.xlane.f32.xlu0 %v786
        %v844 = vpop.xlane.xlu0 %843
        %845 = vadd.xlane.f32.xlu0 %v787
        %v846 = vpop.xlane.xlu0 %845
        %847 = vadd.xlane.f32.xlu0 %v788
        %v848 = vpop.xlane.xlu0 %847
        %849 = vadd.xlane.f32.xlu0 %v789
        %v850 = vpop.xlane.xlu0 %849
        %851 = vadd.xlane.f32.xlu0 %v790
        %v852 = vpop.xlane.xlu0 %851
        %853 = vadd.xlane.f32.xlu0 %v791
        %v854 = vpop.xlane.xlu0 %853
        %855 = vadd.xlane.f32.xlu0 %v792
        %v856 = vpop.xlane.xlu0 %855
        %v857 = vmul.f32 %v697, %v697
        %v858 = vmul.f32 %v698, %v698
        %v859 = vmul.f32 %v699, %v699
        %v860 = vmul.f32 %v700, %v700
        %v861 = vmul.f32 %v701, %v701
        %v862 = vmul.f32 %v702, %v702
        %v863 = vmul.f32 %v703, %v703
        %v864 = vmul.f32 %v704, %v704
        %v865 = vmul.f32 %v705, %v705
        %v866 = vmul.f32 %v706, %v706
        %v867 = vmul.f32 %v707, %v707
        %v868 = vmul.f32 %v708, %v708
        %v869 = vmul.f32 %v709, %v709
        %v870 = vmul.f32 %v710, %v710
        %v871 = vmul.f32 %v711, %v711
        %v872 = vmul.f32 %v712, %v712
        %v873 = vmul.f32 %v713, %v713
        %v874 = vmul.f32 %v714, %v714
        %v875 = vmul.f32 %v715, %v715
        %v876 = vmul.f32 %v716, %v716
        %v877 = vmul.f32 %v717, %v717
        %v878 = vmul.f32 %v718, %v718
        %v879 = vmul.f32 %v719, %v719
        %v880 = vmul.f32 %v720, %v720
        %v881 = vmul.f32 %v721, %v721
        %v882 = vmul.f32 %v722, %v722
        %v883 = vmul.f32 %v723, %v723
        %v884 = vmul.f32 %v724, %v724
        %v885 = vmul.f32 %v725, %v725
        %v886 = vmul.f32 %v726, %v726
        %v887 = vmul.f32 %v727, %v727
        %v888 = vmul.f32 %v728, %v728
        %v889 = vmul.f32 %v857, 64.0
        %v890 = vmul.f32 %v858, 64.0
        %v891 = vmul.f32 %v859, 64.0
        %v892 = vmul.f32 %v860, 64.0
        %v893 = vmul.f32 %v861, 64.0
        %v894 = vmul.f32 %v862, 64.0
        %v895 = vmul.f32 %v863, 64.0
        %v896 = vmul.f32 %v864, 64.0
        %v897 = vmul.f32 %v865, 64.0
        %v898 = vmul.f32 %v866, 64.0
        %v899 = vmul.f32 %v867, 64.0
        %v900 = vmul.f32 %v868, 64.0
        %v901 = vmul.f32 %v869, 64.0
        %v902 = vmul.f32 %v870, 64.0
        %v903 = vmul.f32 %v871, 64.0
        %v904 = vmul.f32 %v872, 64.0
        %v905 = vmul.f32 %v873, 64.0
        %v906 = vmul.f32 %v874, 64.0
        %v907 = vmul.f32 %v875, 64.0
        %v908 = vmul.f32 %v876, 64.0
        %v909 = vmul.f32 %v877, 64.0
        %v910 = vmul.f32 %v878, 64.0
        %v911 = vmul.f32 %v879, 64.0
        %v912 = vmul.f32 %v880, 64.0
        %v913 = vmul.f32 %v881, 64.0
        %v914 = vmul.f32 %v882, 64.0
        %v915 = vmul.f32 %v883, 64.0
        %v916 = vmul.f32 %v884, 64.0
        %v917 = vmul.f32 %v885, 64.0
        %v918 = vmul.f32 %v886, 64.0
        %v919 = vmul.f32 %v887, 64.0
        %v920 = vmul.f32 %v888, 64.0
        %v921 = vsub.f32 %v794, %v889
        %v922 = vsub.f32 %v796, %v890
        %v923 = vsub.f32 %v798, %v891
        %v924 = vsub.f32 %v800, %v892
        %v925 = vsub.f32 %v802, %v893
        %v926 = vsub.f32 %v804, %v894
        %v927 = vsub.f32 %v806, %v895
        %v928 = vsub.f32 %v808, %v896
        %v929 = vsub.f32 %v810, %v897
        %v930 = vsub.f32 %v812, %v898
        %v931 = vsub.f32 %v814, %v899
        %v932 = vsub.f32 %v816, %v900
        %v933 = vsub.f32 %v818, %v901
        %v934 = vsub.f32 %v820, %v902
        %v935 = vsub.f32 %v822, %v903
        %v936 = vsub.f32 %v824, %v904
        %v937 = vsub.f32 %v826, %v905
        %v938 = vsub.f32 %v828, %v906
        %v939 = vsub.f32 %v830, %v907
        %v940 = vsub.f32 %v832, %v908
        %v941 = vsub.f32 %v834, %v909
        %v942 = vsub.f32 %v836, %v910
        %v943 = vsub.f32 %v838, %v911
        %v944 = vsub.f32 %v840, %v912
        %v945 = vsub.f32 %v842, %v913
        %v946 = vsub.f32 %v844, %v914
        %v947 = vsub.f32 %v846, %v915
        %v948 = vsub.f32 %v848, %v916
        %v949 = vsub.f32 %v850, %v917
        %v950 = vsub.f32 %v852, %v918
        %v951 = vsub.f32 %v854, %v919
        %v952 = vsub.f32 %v856, %v920
        %v953 = vmul.f32 %v921, 0.015625
        %v954 = vmul.f32 %v922, 0.015625
        %v955 = vmul.f32 %v923, 0.015625
        %v956 = vmul.f32 %v924, 0.015625
        %v957 = vmul.f32 %v925, 0.015625
        %v958 = vmul.f32 %v926, 0.015625
        %v959 = vmul.f32 %v927, 0.015625
        %v960 = vmul.f32 %v928, 0.015625
        %v961 = vmul.f32 %v929, 0.015625
        %v962 = vmul.f32 %v930, 0.015625
        %v963 = vmul.f32 %v931, 0.015625
        %v964 = vmul.f32 %v932, 0.015625
        %v965 = vmul.f32 %v933, 0.015625
        %v966 = vmul.f32 %v934, 0.015625
        %v967 = vmul.f32 %v935, 0.015625
        %v968 = vmul.f32 %v936, 0.015625
        %v969 = vmul.f32 %v937, 0.015625
        %v970 = vmul.f32 %v938, 0.015625
        %v971 = vmul.f32 %v939, 0.015625
        %v972 = vmul.f32 %v940, 0.015625
        %v973 = vmul.f32 %v941, 0.015625
        %v974 = vmul.f32 %v942, 0.015625
        %v975 = vmul.f32 %v943, 0.015625
        %v976 = vmul.f32 %v944, 0.015625
        %v977 = vmul.f32 %v945, 0.015625
        %v978 = vmul.f32 %v946, 0.015625
        %v979 = vmul.f32 %v947, 0.015625
        %v980 = vmul.f32 %v948, 0.015625
        %v981 = vmul.f32 %v949, 0.015625
        %v982 = vmul.f32 %v950, 0.015625
        %v983 = vmul.f32 %v951, 0.015625
        %v984 = vmul.f32 %v952, 0.015625
        %v985 = vadd.f32 %v953, 1e-05
        %v986 = vadd.f32 %v954, 1e-05
        %v987 = vadd.f32 %v955, 1e-05
        %v988 = vadd.f32 %v956, 1e-05
        %v989 = vadd.f32 %v957, 1e-05
        %v990 = vadd.f32 %v958, 1e-05
        %v991 = vadd.f32 %v959, 1e-05
        %v992 = vadd.f32 %v960, 1e-05
        %v993 = vadd.f32 %v961, 1e-05
        %v994 = vadd.f32 %v962, 1e-05
        %v995 = vadd.f32 %v963, 1e-05
        %v996 = vadd.f32 %v964, 1e-05
        %v997 = vadd.f32 %v965, 1e-05
        %v998 = vadd.f32 %v966, 1e-05
        %v999 = vadd.f32 %v967, 1e-05
        %v1000 = vadd.f32 %v968, 1e-05
        %v1001 = vadd.f32 %v969, 1e-05
        %v1002 = vadd.f32 %v970, 1e-05
        %v1003 = vadd.f32 %v971, 1e-05
        %v1004 = vadd.f32 %v972, 1e-05
        %v1005 = vadd.f32 %v973, 1e-05
        %v1006 = vadd.f32 %v974, 1e-05
        %v1007 = vadd.f32 %v975, 1e-05
        %v1008 = vadd.f32 %v976, 1e-05
        %v1009 = vadd.f32 %v977, 1e-05
        %v1010 = vadd.f32 %v978, 1e-05
        %v1011 = vadd.f32 %v979, 1e-05
        %v1012 = vadd.f32 %v980, 1e-05
        %v1013 = vadd.f32 %v981, 1e-05
        %v1014 = vadd.f32 %v982, 1e-05
        %v1015 = vadd.f32 %v983, 1e-05
        %v1016 = vadd.f32 %v984, 1e-05
        %v1017 = vrsqrt.pop %v985
        %v1018 = vrsqrt.pop %v986
        %v1019 = vrsqrt.pop %v987
        %v1020 = vrsqrt.pop %v988
        %v1021 = vrsqrt.pop %v989
        %v1022 = vrsqrt.pop %v990
        %v1023 = vrsqrt.pop %v991
        %v1024 = vrsqrt.pop %v992
        %v1025 = vrsqrt.pop %v993
        %v1026 = vrsqrt.pop %v994
        %v1027 = vrsqrt.pop %v995
        %v1028 = vrsqrt.pop %v996
        %v1029 = vrsqrt.pop %v997
        %v1030 = vrsqrt.pop %v998
        %v1031 = vrsqrt.pop %v999
        %v1032 = vrsqrt.pop %v1000
        %v1033 = vrsqrt.pop %v1001
        %v1034 = vrsqrt.pop %v1002
        %v1035 = vrsqrt.pop %v1003
        %v1036 = vrsqrt.pop %v1004
        %v1037 = vrsqrt.pop %v1005
        %v1038 = vrsqrt.pop %v1006
        %v1039 = vrsqrt.pop %v1007
        %v1040 = vrsqrt.pop %v1008
        %v1041 = vrsqrt.pop %v1009
        %v1042 = vrsqrt.pop %v1010
        %v1043 = vrsqrt.pop %v1011
        %v1044 = vrsqrt.pop %v1012
        %v1045 = vrsqrt.pop %v1013
        %v1046 = vrsqrt.pop %v1014
        %v1047 = vrsqrt.pop %v1015
        %v1048 = vrsqrt.pop %v1016
        %v1049 = vld [vmem:[%s2 + $0x1] sm:$0x1]
        %v1050 = vlaneseq
        %v1051 = vshrl.u32 %v1050, 7
        %v1052 = vsub.s32 0, %v1051
        %v1053 = vrot.slane %v1049, %v1052
        %v1054 = vmul.f32 %v1017, %v1053
        %v1055 = vmul.f32 %v1018, %v1053
        %v1056 = vmul.f32 %v1019, %v1053
        %v1057 = vmul.f32 %v1020, %v1053
        %v1058 = vmul.f32 %v1021, %v1053
        %v1059 = vmul.f32 %v1022, %v1053
        %v1060 = vmul.f32 %v1023, %v1053
        %v1061 = vmul.f32 %v1024, %v1053
        %v1062 = vmul.f32 %v1025, %v1053
        %v1063 = vmul.f32 %v1026, %v1053
        %v1064 = vmul.f32 %v1027, %v1053
        %v1065 = vmul.f32 %v1028, %v1053
        %v1066 = vmul.f32 %v1029, %v1053
        %v1067 = vmul.f32 %v1030, %v1053
        %v1068 = vmul.f32 %v1031, %v1053
        %v1069 = vmul.f32 %v1032, %v1053
        %v1070 = vmul.f32 %v1033, %v1053
        %v1071 = vmul.f32 %v1034, %v1053
        %v1072 = vmul.f32 %v1035, %v1053
        %v1073 = vmul.f32 %v1036, %v1053
        %v1074 = vmul.f32 %v1037, %v1053
        %v1075 = vmul.f32 %v1038, %v1053
        %v1076 = vmul.f32 %v1039, %v1053
        %v1077 = vmul.f32 %v1040, %v1053
        %v1078 = vmul.f32 %v1041, %v1053
        %v1079 = vmul.f32 %v1042, %v1053
        %v1080 = vmul.f32 %v1043, %v1053
        %v1081 = vmul.f32 %v1044, %v1053
        %v1082 = vmul.f32 %v1045, %v1053
        %v1083 = vmul.f32 %v1046, %v1053
        %v1084 = vmul.f32 %v1047, %v1053
        %v1085 = vmul.f32 %v1048, %v1053
        %v1086 = vmul.f32 %v729, %v1054
        %v1087 = vmul.f32 %v730, %v1055
        %v1088 = vmul.f32 %v731, %v1056
        %v1089 = vmul.f32 %v732, %v1057
        %v1090 = vmul.f32 %v733, %v1058
        %v1091 = vmul.f32 %v734, %v1059
        %v1092 = vmul.f32 %v735, %v1060
        %v1093 = vmul.f32 %v736, %v1061
        %v1094 = vmul.f32 %v737, %v1062
        %v1095 = vmul.f32 %v738, %v1063
        %v1096 = vmul.f32 %v739, %v1064
        %v1097 = vmul.f32 %v740, %v1065
        %v1098 = vmul.f32 %v741, %v1066
        %v1099 = vmul.f32 %v742, %v1067
        %v1100 = vmul.f32 %v743, %v1068
        %v1101 = vmul.f32 %v744, %v1069
        %v1102 = vmul.f32 %v745, %v1070
        %v1103 = vmul.f32 %v746, %v1071
        %v1104 = vmul.f32 %v747, %v1072
        %v1105 = vmul.f32 %v748, %v1073
        %v1106 = vmul.f32 %v749, %v1074
        %v1107 = vmul.f32 %v750, %v1075
        %v1108 = vmul.f32 %v751, %v1076
        %v1109 = vmul.f32 %v752, %v1077
        %v1110 = vmul.f32 %v753, %v1078
        %v1111 = vmul.f32 %v754, %v1079
        %v1112 = vmul.f32 %v755, %v1080
        %v1113 = vmul.f32 %v756, %v1081
        %v1114 = vmul.f32 %v757, %v1082
        %v1115 = vmul.f32 %v758, %v1083
        %v1116 = vmul.f32 %v759, %v1084
        %v1117 = vmul.f32 %v760, %v1085
        %v1118 = vld [vmem:[%s2 + $0x2] sm:$0x1]
        %v1119 = vlaneseq
        %v1120 = vshrl.u32 %v1119, 7
        %v1121 = vsub.s32 0, %v1120
        %v1122 = vrot.slane %v1118, %v1121
        %v1123 = vadd.f32 %v1086, %v1122
        %v1124 = vadd.f32 %v1087, %v1122
        %v1125 = vadd.f32 %v1088, %v1122
        %v1126 = vadd.f32 %v1089, %v1122
        %v1127 = vadd.f32 %v1090, %v1122
        %v1128 = vadd.f32 %v1091, %v1122
        %v1129 = vadd.f32 %v1092, %v1122
        %v1130 = vadd.f32 %v1093, %v1122
        %v1131 = vadd.f32 %v1094, %v1122
        %v1132 = vadd.f32 %v1095, %v1122
        %v1133 = vadd.f32 %v1096, %v1122
        %v1134 = vadd.f32 %v1097, %v1122
        %v1135 = vadd.f32 %v1098, %v1122
        %v1136 = vadd.f32 %v1099, %v1122
        %v1137 = vadd.f32 %v1100, %v1122
        %v1138 = vadd.f32 %v1101, %v1122
        %v1139 = vadd.f32 %v1102, %v1122
        %v1140 = vadd.f32 %v1103, %v1122
        %v1141 = vadd.f32 %v1104, %v1122
        %v1142 = vadd.f32 %v1105, %v1122
        %v1143 = vadd.f32 %v1106, %v1122
        %v1144 = vadd.f32 %v1107, %v1122
        %v1145 = vadd.f32 %v1108, %v1122
        %v1146 = vadd.f32 %v1109, %v1122
        %v1147 = vadd.f32 %v1110, %v1122
        %v1148 = vadd.f32 %v1111, %v1122
        %v1149 = vadd.f32 %v1112, %v1122
        %v1150 = vadd.f32 %v1113, %v1122
        %v1151 = vadd.f32 %v1114, %v1122
        %v1152 = vadd.f32 %v1115, %v1122
        %v1153 = vadd.f32 %v1116, %v1122
        %v1154 = vadd.f32 %v1117, %v1122
        %v1155 = vmax.f32 %v1123, 0.0
        %v1156 = vmax.f32 %v1124, 0.0
        %v1157 = vmax.f32 %v1125, 0.0
        %v1158 = vmax.f32 %v1126, 0.0
        %v1159 = vmax.f32 %v1127, 0.0
        %v1160 = vmax.f32 %v1128, 0.0
        %v1161 = vmax.f32 %v1129, 0.0
        %v1162 = vmax.f32 %v1130, 0.0
        %v1163 = vmax.f32 %v1131, 0.0
        %v1164 = vmax.f32 %v1132, 0.0
        %v1165 = vmax.f32 %v1133, 0.0
        %v1166 = vmax.f32 %v1134, 0.0
        %v1167 = vmax.f32 %v1135, 0.0
        %v1168 = vmax.f32 %v1136, 0.0
        %v1169 = vmax.f32 %v1137, 0.0
        %v1170 = vmax.f32 %v1138, 0.0
        %v1171 = vmax.f32 %v1139, 0.0
        %v1172 = vmax.f32 %v1140, 0.0
        %v1173 = vmax.f32 %v1141, 0.0
        %v1174 = vmax.f32 %v1142, 0.0
        %v1175 = vmax.f32 %v1143, 0.0
        %v1176 = vmax.f32 %v1144, 0.0
        %v1177 = vmax.f32 %v1145, 0.0
        %v1178 = vmax.f32 %v1146, 0.0
        %v1179 = vmax.f32 %v1147, 0.0
        %v1180 = vmax.f32 %v1148, 0.0
        %v1181 = vmax.f32 %v1149, 0.0
        %v1182 = vmax.f32 %v1150, 0.0
        %v1183 = vmax.f32 %v1151, 0.0
        %v1184 = vmax.f32 %v1152, 0.0
        %v1185 = vmax.f32 %v1153, 0.0
        %v1186 = vmax.f32 %v1154, 0.0
        %v1187 = vpack.c.bf16 %v1156, %v1155
        %v1188 = vpack.c.bf16 %v1158, %v1157
        %v1189 = vpack.c.bf16 %v1160, %v1159
        %v1190 = vpack.c.bf16 %v1162, %v1161
        %v1191 = vpack.c.bf16 %v1164, %v1163
        %v1192 = vpack.c.bf16 %v1166, %v1165
        %v1193 = vpack.c.bf16 %v1168, %v1167
        %v1194 = vpack.c.bf16 %v1170, %v1169
        %v1195 = vpack.c.bf16 %v1172, %v1171
        %v1196 = vpack.c.bf16 %v1174, %v1173
        %v1197 = vpack.c.bf16 %v1176, %v1175
        %v1198 = vpack.c.bf16 %v1178, %v1177
        %v1199 = vpack.c.bf16 %v1180, %v1179
        %v1200 = vpack.c.bf16 %v1182, %v1181
        %v1201 = vpack.c.bf16 %v1184, %v1183
        %v1202 = vpack.c.bf16 %v1186, %v1185
        %v1203 = vld [vmem:[#allocation7] sm:$0xf]
        %v1204 = vld [vmem:[#allocation7 + $0x4] sm:$0xf]
        %v1205 = vld [vmem:[#allocation7 + $0x8] sm:$0xf]
        %v1206 = vld [vmem:[#allocation7 + $0xc] sm:$0xf]
        %v1207 = vld [vmem:[#allocation7 + $0x10] sm:$0xf]
        %v1208 = vld [vmem:[#allocation7 + $0x14] sm:$0xf]
        %v1209 = vld [vmem:[#allocation7 + $0x18] sm:$0xf]
        %v1210 = vld [vmem:[#allocation7 + $0x1c] sm:$0xf]
        %v1211 = vld [vmem:[#allocation7 + $0x20] sm:$0xf]
        %v1212 = vld [vmem:[#allocation7 + $0x24] sm:$0xf]
        %v1213 = vld [vmem:[#allocation7 + $0x28] sm:$0xf]
        %v1214 = vld [vmem:[#allocation7 + $0x2c] sm:$0xf]
        %v1215 = vld [vmem:[#allocation7 + $0x30] sm:$0xf]
        %v1216 = vld [vmem:[#allocation7 + $0x34] sm:$0xf]
        %v1217 = vld [vmem:[#allocation7 + $0x38] sm:$0xf]
        %v1218 = vld [vmem:[#allocation7 + $0x3c] sm:$0xf]
        %v1219 = vld [vmem:[%s4] sm:$0x1]
        %v1221 = vlaneseq
        %v1222 = vshrl.u32 %v1221, 7
        %v1223 = vsub.s32 0, %v1222
        %v1224 = vrot.slane %v1219, %v1223
        %v1242 = vunpack.c.l.b16 %v1203
        %v1243 = vunpack.c.l.b16 %v1204
        %v1244 = vunpack.c.l.b16 %v1205
        %v1245 = vunpack.c.l.b16 %v1206
        %v1246 = vunpack.c.l.b16 %v1207
        %v1247 = vunpack.c.l.b16 %v1208
        %v1248 = vunpack.c.l.b16 %v1209
        %v1249 = vunpack.c.l.b16 %v1210
        %v1250 = vunpack.c.l.b16 %v1211
        %v1251 = vunpack.c.l.b16 %v1212
        %v1252 = vunpack.c.l.b16 %v1213
        %v1253 = vunpack.c.l.b16 %v1214
        %v1254 = vunpack.c.l.b16 %v1215
        %v1255 = vunpack.c.l.b16 %v1216
        %v1256 = vunpack.c.l.b16 %v1217
        %v1257 = vunpack.c.l.b16 %v1218
        %v1258 = vpack.c.b16 %v1243, %v1242
        %v1259 = vpack.c.b16 %v1245, %v1244
        %v1260 = vpack.c.b16 %v1247, %v1246
        %v1261 = vpack.c.b16 %v1249, %v1248
        %v1262 = vpack.c.b16 %v1251, %v1250
        %v1263 = vpack.c.b16 %v1253, %v1252
        %v1264 = vpack.c.b16 %v1255, %v1254
        %v1265 = vpack.c.b16 %v1257, %v1256
        %1274 = vmatprep.subr.bf16.mxu0 0
        %1275 = vmatpush1.bf16.msra.mxu0 %v1258
        %1276 = vmatprep.subr.bf16.mxu0 0
        %1277 = vmatpush1.bf16.msra.mxu0 %v1259
        %1278 = vmatprep.subr.bf16.mxu0 0
        %1279 = vmatpush1.bf16.msra.mxu0 %v1260
        %1280 = vmatprep.subr.bf16.mxu0 0
        %1281 = vmatpush1.bf16.msra.mxu0 %v1261
        %1282 = vmatprep.subr.bf16.mxu0 0
        %1283 = vmatpush1.bf16.msra.mxu0 %v1262
        %1284 = vmatprep.subr.bf16.mxu0 0
        %1285 = vmatpush1.bf16.msra.mxu0 %v1263
        %1286 = vmatprep.subr.bf16.mxu0 0
        %1287 = vmatpush1.bf16.msra.mxu0 %v1264
        %1288 = vmatprep.subr.bf16.mxu0 0
        %1289 = vmatpush1.bf16.msra.mxu0 %v1265
        %1290 = vmatprep.subr.bf16.mxu0 0
        %1291 = vmatpush1.bf16.msra.mxu0 0
        %1292 = vmatprep.subr.bf16.mxu0 0
        %1293 = vmatpush1.bf16.msra.mxu0 0
        %1294 = vmatprep.subr.bf16.mxu0 0
        %1295 = vmatpush1.bf16.msra.mxu0 0
        %1296 = vmatprep.subr.bf16.mxu0 0
        %1297 = vmatpush1.bf16.msra.mxu0 0
        %1298 = vmatprep.subr.bf16.mxu0 0
        %1299 = vmatpush1.bf16.msra.mxu0 0
        %1300 = vmatprep.subr.bf16.mxu0 0
        %1301 = vmatpush1.bf16.msra.mxu0 0
        %1302 = vmatprep.subr.bf16.mxu0 0
        %1303 = vmatpush1.bf16.msra.mxu0 0
        %1304 = vmatprep.subr.bf16.mxu0 0
        %1305 = vmatpush1.bf16.msra.mxu0 0
        %1306 = vmatprep.mubr.bf16.mxu0 0
        %1307 = vmatmul.mubr.bf16.gmra.mrb[0].mxu0 %v1187
        %v1308 = vpop.f32.mrb[0].mxu0
        %v1309 = vadd.f32 %v1224, %v1308
        %v1310 = vpop.f32.mrb[0].mxu0
        %v1311 = vpop.f32.mrb[0].mxu0
        %v1312 = vadd.f32 %v1224, %v1311
        %v1313 = vpop.f32.mrb[0].mxu0
        %1314 = vmatprep.mubr.bf16.mxu0 0
        %1315 = vmatmul.mubr.bf16.gmra.mrb[0].mxu0 %v1188
        %v1316 = vpop.f32.mrb[0].mxu0
        %v1317 = vadd.f32 %v1224, %v1316
        %v1318 = vpop.f32.mrb[0].mxu0
        %v1319 = vpop.f32.mrb[0].mxu0
        %v1320 = vadd.f32 %v1224, %v1319
        %v1321 = vpop.f32.mrb[0].mxu0
        %1322 = vmatprep.mubr.bf16.mxu0 0
        %1323 = vmatmul.mubr.bf16.gmra.mrb[0].mxu0 %v1189
        %v1324 = vpop.f32.mrb[0].mxu0
        %v1325 = vadd.f32 %v1224, %v1324
        %v1326 = vpop.f32.mrb[0].mxu0
        %v1327 = vpop.f32.mrb[0].mxu0
        %v1328 = vadd.f32 %v1224, %v1327
        %v1329 = vpop.f32.mrb[0].mxu0
        %1330 = vmatprep.mubr.bf16.mxu0 0
        %1331 = vmatmul.mubr.bf16.gmra.mrb[0].mxu0 %v1190
        %v1332 = vpop.f32.mrb[0].mxu0
        %v1333 = vadd.f32 %v1224, %v1332
        %v1334 = vpop.f32.mrb[0].mxu0
        %v1335 = vpop.f32.mrb[0].mxu0
        %v1336 = vadd.f32 %v1224, %v1335
        %v1337 = vpop.f32.mrb[0].mxu0
        %1338 = vmatprep.mubr.bf16.mxu0 0
        %1339 = vmatmul.mubr.bf16.gmra.mrb[0].mxu0 %v1191
        %v1340 = vpop.f32.mrb[0].mxu0
        %v1341 = vadd.f32 %v1224, %v1340
        %v1342 = vpop.f32.mrb[0].mxu0
        %v1343 = vpop.f32.mrb[0].mxu0
        %v1344 = vadd.f32 %v1224, %v1343
        %v1345 = vpop.f32.mrb[0].mxu0
        %1346 = vmatprep.mubr.bf16.mxu0 0
        %1347 = vmatmul.mubr.bf16.gmra.mrb[0].mxu0 %v1192
        %v1348 = vpop.f32.mrb[0].mxu0
        %v1349 = vadd.f32 %v1224, %v1348
        %v1350 = vpop.f32.mrb[0].mxu0
        %v1351 = vpop.f32.mrb[0].mxu0
        %v1352 = vadd.f32 %v1224, %v1351
        %v1353 = vpop.f32.mrb[0].mxu0
        %1354 = vmatprep.mubr.bf16.mxu0 0
        %1355 = vmatmul.mubr.bf16.gmra.mrb[0].mxu0 %v1193
        %v1356 = vpop.f32.mrb[0].mxu0
        %v1357 = vadd.f32 %v1224, %v1356
        %v1358 = vpop.f32.mrb[0].mxu0
        %v1359 = vpop.f32.mrb[0].mxu0
        %v1360 = vadd.f32 %v1224, %v1359
        %v1361 = vpop.f32.mrb[0].mxu0
        %1362 = vmatprep.mubr.bf16.mxu0 0
        %1363 = vmatmul.mubr.bf16.gmra.mrb[0].mxu0 %v1194
        %v1364 = vpop.f32.mrb[0].mxu0
        %v1365 = vadd.f32 %v1224, %v1364
        %v1366 = vpop.f32.mrb[0].mxu0
        %v1367 = vpop.f32.mrb[0].mxu0
        %v1368 = vadd.f32 %v1224, %v1367
        %v1369 = vpop.f32.mrb[0].mxu0
        %1370 = vmatprep.mubr.bf16.mxu0 0
        %1371 = vmatmul.mubr.bf16.gmra.mrb[0].mxu0 %v1195
        %v1372 = vpop.f32.mrb[0].mxu0
        %v1373 = vadd.f32 %v1224, %v1372
        %v1374 = vpop.f32.mrb[0].mxu0
        %v1375 = vpop.f32.mrb[0].mxu0
        %v1376 = vadd.f32 %v1224, %v1375
        %v1377 = vpop.f32.mrb[0].mxu0
        %1378 = vmatprep.mubr.bf16.mxu0 0
        %1379 = vmatmul.mubr.bf16.gmra.mrb[0].mxu0 %v1196
        %v1380 = vpop.f32.mrb[0].mxu0
        %v1381 = vadd.f32 %v1224, %v1380
        %v1382 = vpop.f32.mrb[0].mxu0
        %v1383 = vpop.f32.mrb[0].mxu0
        %v1384 = vadd.f32 %v1224, %v1383
        %v1385 = vpop.f32.mrb[0].mxu0
        %1386 = vmatprep.mubr.bf16.mxu0 0
        %1387 = vmatmul.mubr.bf16.gmra.mrb[0].mxu0 %v1197
        %v1388 = vpop.f32.mrb[0].mxu0
        %v1389 = vadd.f32 %v1224, %v1388
        %v1390 = vpop.f32.mrb[0].mxu0
        %v1391 = vpop.f32.mrb[0].mxu0
        %v1392 = vadd.f32 %v1224, %v1391
        %v1393 = vpop.f32.mrb[0].mxu0
        %1394 = vmatprep.mubr.bf16.mxu0 0
        %1395 = vmatmul.mubr.bf16.gmra.mrb[0].mxu0 %v1198
        %v1396 = vpop.f32.mrb[0].mxu0
        %v1397 = vadd.f32 %v1224, %v1396
        %v1398 = vpop.f32.mrb[0].mxu0
        %v1399 = vpop.f32.mrb[0].mxu0
        %v1400 = vadd.f32 %v1224, %v1399
        %v1401 = vpop.f32.mrb[0].mxu0
        %1402 = vmatprep.mubr.bf16.mxu0 0
        %1403 = vmatmul.mubr.bf16.gmra.mrb[0].mxu0 %v1199
        %v1404 = vpop.f32.mrb[0].mxu0
        %v1405 = vadd.f32 %v1224, %v1404
        %v1406 = vpop.f32.mrb[0].mxu0
        %v1407 = vpop.f32.mrb[0].mxu0
        %v1408 = vadd.f32 %v1224, %v1407
        %v1409 = vpop.f32.mrb[0].mxu0
        %1410 = vmatprep.mubr.bf16.mxu0 0
        %1411 = vmatmul.mubr.bf16.gmra.mrb[0].mxu0 %v1200
        %v1412 = vpop.f32.mrb[0].mxu0
        %v1413 = vadd.f32 %v1224, %v1412
        %v1414 = vpop.f32.mrb[0].mxu0
        %v1415 = vpop.f32.mrb[0].mxu0
        %v1416 = vadd.f32 %v1224, %v1415
        %v1417 = vpop.f32.mrb[0].mxu0
        %1418 = vmatprep.mubr.bf16.mxu0 0
        %1419 = vmatmul.mubr.bf16.gmra.mrb[0].mxu0 %v1201
        %v1420 = vpop.f32.mrb[0].mxu0
        %v1421 = vadd.f32 %v1224, %v1420
        %v1422 = vpop.f32.mrb[0].mxu0
        %v1423 = vpop.f32.mrb[0].mxu0
        %v1424 = vadd.f32 %v1224, %v1423
        %v1425 = vpop.f32.mrb[0].mxu0
        %1426 = vmatprep.mubr.bf16.mxu0 0
        %1427 = vmatmul.mubr.bf16.gmra.mrb[0].mxu0 %v1202
        %v1428 = vpop.f32.mrb[0].mxu0
        %v1429 = vadd.f32 %v1224, %v1428
        %v1430 = vpop.f32.mrb[0].mxu0
        %v1431 = vpop.f32.mrb[0].mxu0
        %v1432 = vadd.f32 %v1224, %v1431
        %v1433 = vpop.f32.mrb[0].mxu0
        %1434 = vdwg.mxu0
        %1435 = vst [vmem:[%s271] sm:$0xff] %v1309
        %1436 = vst [vmem:[%s271 + $0x8] sm:$0xff] %v1312
        %1437 = vst [vmem:[%s271 + $0x10] sm:$0xff] %v1317
        %1438 = vst [vmem:[%s271 + $0x18] sm:$0xff] %v1320
        %1439 = vst [vmem:[%s271 + $0x20] sm:$0xff] %v1325
        %1440 = vst [vmem:[%s271 + $0x28] sm:$0xff] %v1328
        %1441 = vst [vmem:[%s271 + $0x30] sm:$0xff] %v1333
        %1442 = vst [vmem:[%s271 + $0x38] sm:$0xff] %v1336
        %1443 = vst [vmem:[%s271 + $0x40] sm:$0xff] %v1341
        %1444 = vst [vmem:[%s271 + $0x48] sm:$0xff] %v1344
        %1445 = vst [vmem:[%s271 + $0x50] sm:$0xff] %v1349
        %1446 = vst [vmem:[%s271 + $0x58] sm:$0xff] %v1352
        %1447 = vst [vmem:[%s271 + $0x60] sm:$0xff] %v1357
        %1448 = vst [vmem:[%s271 + $0x68] sm:$0xff] %v1360
        %1449 = vst [vmem:[%s271 + $0x70] sm:$0xff] %v1365
        %1450 = vst [vmem:[%s271 + $0x78] sm:$0xff] %v1368
        %1451 = vst [vmem:[%s271 + $0x80] sm:$0xff] %v1373
        %1452 = vst [vmem:[%s271 + $0x88] sm:$0xff] %v1376
        %1453 = vst [vmem:[%s271 + $0x90] sm:$0xff] %v1381
        %1454 = vst [vmem:[%s271 + $0x98] sm:$0xff] %v1384
        %1455 = vst [vmem:[%s271 + $0xa0] sm:$0xff] %v1389
        %1456 = vst [vmem:[%s271 + $0xa8] sm:$0xff] %v1392
        %1457 = vst [vmem:[%s271 + $0xb0] sm:$0xff] %v1397
        %1458 = vst [vmem:[%s271 + $0xb8] sm:$0xff] %v1400
        %1459 = vst [vmem:[%s271 + $0xc0] sm:$0xff] %v1405
        %1460 = vst [vmem:[%s271 + $0xc8] sm:$0xff] %v1408
        %1461 = vst [vmem:[%s271 + $0xd0] sm:$0xff] %v1413
        %1462 = vst [vmem:[%s271 + $0xd8] sm:$0xff] %v1416
        %1463 = vst [vmem:[%s271 + $0xe0] sm:$0xff] %v1421
        %1464 = vst [vmem:[%s271 + $0xe8] sm:$0xff] %v1424
        %1465 = vst [vmem:[%s271 + $0xf0] sm:$0xff] %v1429
        %1466 = vst [vmem:[%s271 + $0xf8] sm:$0xff] %v1432
        %s1467 = sand.u32 %s141, 1
        %s1468 = scalar_lea.sflag [#allocation4], %s1467
        %s1469 = sand.u32 %s141, 1
        %s1470 = smul.addr %s1469, 256
        %s1471 = scalar_lea.vmem [#allocation8], %s1470
        // Predicated region
        $region53: #{tpu_custom_call.1} parent=39 // pred_check
          %p1472 = pneg %p151
        $region54: #{tpu_custom_call.1} parent=39 // pred_check_branch
          %1474 = sbr.rel (%p1472) target = $region56
        $region55: #{tpu_custom_call.1} parent=39 // pred_region
          %s1475 = smul.u32 32, %s23
          %s1477 = ssub.s32 4096, 4096
          %1478 = vsyncadd %s1468, %s1477
          %s1479 = smul.addr %s1475, 128
          %s1480 = scalar_lea.hbm %s5, %s1479
          %s1481 = sshll.u32 %s1471, 4
          %s1482 = int_to_ptr.vmem [resolvable:$true] %s1481
          %1487 = dma.vmem_to_hbm [thread:$0]  %s1482, 4096, %s1480, %s1468, 128, 128, 8
        $region56: #{tpu_custom_call.1} parent=39 // pred_fallthru
          _
      $region40: #{tpu_custom_call.1} parent=5 // pred_fallthru
        _
      %p1488 = scmp.le.s32.totalorder 2, %s18
      // Predicated region
      $region57: #{tpu_custom_call.1} parent=5 // pred_check
        %p1489 = pneg %p1488
      $region58: #{tpu_custom_call.1} parent=5 // pred_check_branch
        %1491 = sbr.rel (%p1489) target = $region60
      $region59: #{tpu_custom_call.1} parent=5 // pred_region
        %s1492 = ssub.s32 %s18, 2
        // Predicated region
        $region61: #{tpu_custom_call.1} parent=59 // pred_check
          %p1493 = pneg %p157
        $region62: #{tpu_custom_call.1} parent=59 // pred_check_branch
          %1495 = sbr.rel (%p1493) target = $region64
        $region63: #{tpu_custom_call.1} parent=59 // pred_region
          %s1496 = sand.u32 %s142, 1
          %s1497 = scalar_lea.sflag [#allocation4], %s1496
          %s1498 = sand.u32 %s142, 1
          %s1499 = smul.addr %s1498, 256
          %s1500 = scalar_lea.vmem [#allocation8], %s1499
          %1501 = dma.done %s1497, 4096
        $region64: #{tpu_custom_call.1} parent=59 // pred_fallthru
          _
      $region60: #{tpu_custom_call.1} parent=5 // pred_fallthru
        _
    $region6: #{tpu_custom_call.1} parent=1 // loop_footer
      %s22 = sadd.s32 1, %s18
    $region7: #{tpu_custom_call.1} parent=1 // loop_footer_branch
      %17 = sbr.rel target = $region3
    $region8: #{tpu_custom_call.1} parent=1 // loop_exit
      _
    %1502 = vsyncpa [#allocation3], 1
    %s1503 = scalar_lea.sflag [#allocation3], 1
    %1504 = vsyncpa %s1503, 1
    %1505 = vsyncpa [#allocation6], 1
    %1506 = vsyncpa [#allocation4], 1
    %s1507 = scalar_lea.sflag [#allocation4], 1
    %1508 = vsyncpa %s1507, 1

// kernel: tpu_custom_call.1
$region0: #{tpu_custom_call.1}
  #allocation0 [shape = 'u32[]', space=smem, size = 0x4, offset = 0x4, fixed_abs, tag = 'smem constant byte address 0x4 - core index']
  #allocation1 [shape = 'u32[144,128]{1,0:T(1,128)}', space=vmem, size = 0x12000, scoped, tag = 'internal scratch']
  %s0 = inlined_call_operand.hbm [shape: bf16[512,128], index: 0, kind: input, shape index: {}]
  %s1 = inlined_call_operand.hbm [shape: bf16[128,128], index: 1, kind: input, shape index: {}]
  %s2 = inlined_call_operand.vmem [shape: f32[3,128], index: 2, kind: input, shape index: {}]
  %s3 = inlined_call_operand.hbm [shape: bf16[128,128], index: 3, kind: input, shape index: {}]
  %s4 = inlined_call_operand.vmem [shape: f32[1,128], index: 4, kind: input, shape index: {}]
  %s5 = inlined_call_operand.hbm [shape: f32[512,128], index: 5, kind: output, shape index: {}]
  %s6 = sld [smem:[#allocation0]]
  $region65: #{tpu_custom_call.1} parent=0
    _
  %s8 = ssub.s32 1, %s6
  %s9 = scalar_select 0, %s8, %s6
  $region1: #{tpu_custom_call.1} parent=0
    #allocation2 [shape = 'u8[131072]{0}', space=vmem, size = 0x20000, scoped, tag = 'input window, operand 0']
    #allocation3 [shape = 's32[2]{0}', space=sflag, size = 0x8, scoped, tag = 'scoped memory for tpu_custom_call.1']
    #allocation4 [shape = 's32[2]{0}', space=sflag, size = 0x8, scoped, tag = 'scoped memory for tpu_custom_call.1']
    #allocation5 [shape = 'u8[32768]{0}', space=vmem, size = 0x8000, scoped, tag = 'input window, operand 1, single buffered']
    #allocation6 [shape = 's32[1]{0}', space=sflag, size = 0x4, scoped, tag = 'scoped memory for tpu_custom_call.1']
    #allocation7 [shape = 'u8[32768]{0}', space=vmem, size = 0x8000, scoped, tag = 'input window, operand 3, single buffered']
    #allocation8 [shape = 'u8[262144]{0}', space=vmem, size = 0x40000, scoped, tag = 'output window, operand 0']
    %10 = vsyncpa [#allocation3], 0
    %s11 = scalar_lea.sflag [#allocation3], 1
    %12 = vsyncpa %s11, 0
    %13 = vsyncpa [#allocation6], 0
    %14 = vsyncpa [#allocation4], 0
    %s15 = scalar_lea.sflag [#allocation4], 1
    %16 = vsyncpa %s15, 0
    loop: start=0, step=1, limit=4
    $region2: #{tpu_custom_call.1} parent=1 // loop_pre_header
      _
    $region3: #{tpu_custom_call.1} parent=1 // loop_header
      %s18 = sphi 0, %s22
      %p19 = scmp.ge.s32.totalorder %s18, 4
      %s28 = sphi 0, %s30
      %s31 = sphi 0, %s28
      %s32 = sphi 0, %s31
      %s48 = sphi 0, %s32
      %s52 = sphi 0, %s52
      %s54 = sphi 0, %s52
      %s55 = sphi 0, %s54
      %s69 = sphi 0, %s55
      %s73 = sphi 0, %s73
      %s75 = sphi 0, %s73
      %s76 = sphi 0, %s75
      %s90 = sphi 0, %s76
      %s94 = sphi 0, %s94
      %s96 = sphi 0, %s94
      %s97 = sphi 0, %s96
      %s111 = sphi 0, %s97
      %s115 = sphi 0, %s115
      %s117 = sphi 0, %s115
      %s118 = sphi 0, %s117
      %s132 = sphi 0, %s118
      %s138 = sphi 0, %s140
      %s141 = sphi 0, %s138
      %s142 = sphi 0, %s141
      %s158 = sphi 0, %s142
    $region4: #{tpu_custom_call.1} parent=1 // loop_header_branch
      %21 = sbr.rel (%p19) target = $region8
    $region5: #{tpu_custom_call.1} parent=1 // loop_body
      %s23 = ssub.s32 %s18, 1
      %s24 = ssub.s32 %s18, 2
      %s25 = sadd.s32 %s18, 1
      %s26 = ssub.s32 %s18, %s25
      %p27 = scmp.eq.s32.totalorder %s26, 0
      %s29 = sadd.s32 %s28, 1
      %s30 = scalar_select %p27, %s28, %s29
      %p33 = pneg %p27
      %p34 = scmp.eq.s32.totalorder %s18, 1
      %p35 = por %p33, %p34
      %p36 = scmp.ne.s32.totalorder %s28, %s31
      %p37 = scmp.eq.s32.totalorder %s18, 0
      %p38 = por %p36, %p37
      %p39 = scmp.ne.s32.totalorder %s28, %s31
      %p40 = scmp.eq.s32.totalorder %s23, 1
      %p41 = por %p39, %p40
      %p42 = scmp.ne.s32.totalorder %s31, %s32
      %p43 = scmp.eq.s32.totalorder %s23, 0
      %p44 = por %p42, %p43
      %p45 = scmp.ne.s32.totalorder %s31, %s32
      %p46 = scmp.eq.s32.totalorder %s24, 1
      %p47 = por %p45, %p46
      %p49 = scmp.ne.s32.totalorder %s32, %s48
      %p50 = scmp.eq.s32.totalorder %s24, 0
      %p51 = por %p49, %p50
      %s53 = sadd.s32 %s52, 1
      %p56 = scmp.eq.s32.totalorder %s18, 1
      %p57 = scmp.ne.s32.totalorder %s52, %s54
      %p58 = scmp.eq.s32.totalorder %s18, 0
      %p59 = por %p57, %p58
      %p60 = scmp.ne.s32.totalorder %s52, %s54
      %p61 = scmp.eq.s32.totalorder %s23, 1
      %p62 = por %p60, %p61
      %p63 = scmp.ne.s32.totalorder %s54, %s55
      %p64 = scmp.eq.s32.totalorder %s23, 0
      %p65 = por %p63, %p64
      %p66 = scmp.ne.s32.totalorder %s54, %s55
      %p67 = scmp.eq.s32.totalorder %s24, 1
      %p68 = por %p66, %p67
      %p70 = scmp.ne.s32.totalorder %s55, %s69
      %p71 = scmp.eq.s32.totalorder %s24, 0
      %p72 = por %p70, %p71
      %s74 = sadd.s32 %s73, 1
      %p77 = scmp.eq.s32.totalorder %s18, 1
      %p78 = scmp.ne.s32.totalorder %s73, %s75
      %p79 = scmp.eq.s32.totalorder %s18, 0
      %p80 = por %p78, %p79
      %p81 = scmp.ne.s32.totalorder %s73, %s75
      %p82 = scmp.eq.s32.totalorder %s23, 1
      %p83 = por %p81, %p82
      %p84 = scmp.ne.s32.totalorder %s75, %s76
      %p85 = scmp.eq.s32.totalorder %s23, 0
      %p86 = por %p84, %p85
      %p87 = scmp.ne.s32.totalorder %s75, %s76
      %p88 = scmp.eq.s32.totalorder %s24, 1
      %p89 = por %p87, %p88
      %p91 = scmp.ne.s32.totalorder %s76, %s90
      %p92 = scmp.eq.s32.totalorder %s24, 0
      %p93 = por %p91, %p92
      %s95 = sadd.s32 %s94, 1
      %p98 = scmp.eq.s32.totalorder %s18, 1
      %p99 = scmp.ne.s32.totalorder %s94, %s96
      %p100 = scmp.eq.s32.totalorder %s18, 0
      %p101 = por %p99, %p100
      %p102 = scmp.ne.s32.totalorder %s94, %s96
      %p103 = scmp.eq.s32.totalorder %s23, 1
      %p104 = por %p102, %p103
      %p105 = scmp.ne.s32.totalorder %s96, %s97
      %p106 = scmp.eq.s32.totalorder %s23, 0
      %p107 = por %p105, %p106
      %p108 = scmp.ne.s32.totalorder %s96, %s97
      %p109 = scmp.eq.s32.totalorder %s24, 1
      %p110 = por %p108, %p109
      %p112 = scmp.ne.s32.totalorder %s97, %s111
      %p113 = scmp.eq.s32.totalorder %s24, 0
      %p114 = por %p112, %p113
      %s116 = sadd.s32 %s115, 1
      %p119 = scmp.eq.s32.totalorder %s18, 1
      %p120 = scmp.ne.s32.totalorder %s115, %s117
      %p121 = scmp.eq.s32.totalorder %s18, 0
      %p122 = por %p120, %p121
      %p123 = scmp.ne.s32.totalorder %s115, %s117
      %p124 = scmp.eq.s32.totalorder %s23, 1
      %p125 = por %p123, %p124
      %p126 = scmp.ne.s32.totalorder %s117, %s118
      %p127 = scmp.eq.s32.totalorder %s23, 0
      %p128 = por %p126, %p127
      %p129 = scmp.ne.s32.totalorder %s117, %s118
      %p130 = scmp.eq.s32.totalorder %s24, 1
      %p131 = por %p129, %p130
      %p133 = scmp.ne.s32.totalorder %s118, %s132
      %p134 = scmp.eq.s32.totalorder %s24, 0
      %p135 = por %p133, %p134
      %s136 = ssub.s32 %s18, %s25
      %p137 = scmp.eq.s32.totalorder %s136, 0
      %s139 = sadd.s32 %s138, 1
      %s140 = scalar_select %p137, %s138, %s139
      %p143 = pneg %p137
      %p144 = scmp.eq.s32.totalorder %s18, 1
      %p145 = por %p143, %p144
      %p146 = scmp.ne.s32.totalorder %s138, %s141
      %p147 = scmp.eq.s32.totalorder %s18, 0
      %p148 = por %p146, %p147
      %p149 = scmp.ne.s32.totalorder %s138, %s141
      %p150 = scmp.eq.s32.totalorder %s23, 1
      %p151 = por %p149, %p150
      %p152 = scmp.ne.s32.totalorder %s141, %s142
      %p153 = scmp.eq.s32.totalorder %s23, 0
      %p154 = por %p152, %p153
      %p155 = scmp.ne.s32.totalorder %s141, %s142
      %p156 = scmp.eq.s32.totalorder %s24, 1
      %p157 = por %p155, %p156
      %p159 = scmp.ne.s32.totalorder %s142, %s158
      %p160 = scmp.eq.s32.totalorder %s24, 0
      %p161 = por %p159, %p160
      %p162 = scmp.le.s32.totalorder 1, %s18
      %p163 = scmp.lt.s32.totalorder %s18, 3
      %p164 = pnand %p162, %p163
      %p165 = pneg %p164
      // Predicated region
      $region9: #{tpu_custom_call.1} parent=5 // pred_check
        _
      $region10: #{tpu_custom_call.1} parent=5 // pred_check_branch
        %167 = sbr.rel (%p164) target = $region12
      $region11: #{tpu_custom_call.1} parent=5 // pred_region
        %s168 = ssub.s32 %s18, 1
        // Predicated region
        $region13: #{tpu_custom_call.1} parent=11 // pred_check
          %p169 = pneg %p65
        $region14: #{tpu_custom_call.1} parent=11 // pred_check_branch
          %171 = sbr.rel (%p169) target = $region16
        $region15: #{tpu_custom_call.1} parent=11 // pred_region
          %s173 = ssub.s32 1024, 1024
          %174 = vsyncadd [#allocation6], %s173
          %s175 = sshll.u32 [#allocation5], 4
          %s176 = int_to_ptr.vmem [resolvable:$true] %s175
          %181 = dma.hbm_to_vmem [thread:$0]  %s1, 1024, %s176, [#allocation6], 64, 64, 4
        $region16: #{tpu_custom_call.1} parent=11 // pred_fallthru
          _
        // Predicated region
        $region17: #{tpu_custom_call.1} parent=11 // pred_check
          %p182 = pneg %p86
        $region18: #{tpu_custom_call.1} parent=11 // pred_check_branch
          %184 = sbr.rel (%p182) target = $region20
        $region19: #{tpu_custom_call.1} parent=11 // pred_region
          _
        $region20: #{tpu_custom_call.1} parent=11 // pred_fallthru
          _
        // Predicated region
        $region21: #{tpu_custom_call.1} parent=11 // pred_check
          %p185 = pneg %p107
        $region22: #{tpu_custom_call.1} parent=11 // pred_check_branch
          %187 = sbr.rel (%p185) target = $region24
        $region23: #{tpu_custom_call.1} parent=11 // pred_region
          %s189 = ssub.s32 1024, 1024
          %190 = vsyncadd [#allocation6], %s189
          %s191 = sshll.u32 [#allocation7], 4
          %s192 = int_to_ptr.vmem [resolvable:$true] %s191
          %197 = dma.hbm_to_vmem [thread:$0]  %s3, 1024, %s192, [#allocation6], 64, 64, 4
        $region24: #{tpu_custom_call.1} parent=11 // pred_fallthru
          _
        // Predicated region
        $region25: #{tpu_custom_call.1} parent=11 // pred_check
          %p198 = pneg %p128
        $region26: #{tpu_custom_call.1} parent=11 // pred_check_branch
          %200 = sbr.rel (%p198) target = $region28
        $region27: #{tpu_custom_call.1} parent=11 // pred_region
          _
        $region28: #{tpu_custom_call.1} parent=11 // pred_fallthru
          _
      $region12: #{tpu_custom_call.1} parent=5 // pred_fallthru
        _
      %p201 = scmp.lt.s32.totalorder %s18, 2
      // Predicated region
      $region29: #{tpu_custom_call.1} parent=5 // pred_check
        %p202 = pneg %p201
      $region30: #{tpu_custom_call.1} parent=5 // pred_check_branch
        %204 = sbr.rel (%p202) target = $region32
      $region31: #{tpu_custom_call.1} parent=5 // pred_region
        // Predicated region
        $region33: #{tpu_custom_call.1} parent=31 // pred_check
          %p205 = pneg %p38
        $region34: #{tpu_custom_call.1} parent=31 // pred_check_branch
          %207 = sbr.rel (%p205) target = $region36
        $region35: #{tpu_custom_call.1} parent=31 // pred_region
          %s208 = sand.u32 %s28, 1
          %s209 = scalar_lea.sflag [#allocation3], %s208
          %s210 = sand.u32 %s28, 1
          %s211 = smul.addr %s210, 128
          %s212 = scalar_lea.vmem [#allocation2], %s211
          %s213 = smul.u32 32, %s18
          %s215 = ssub.s32 2048, 2048
          %216 = vsyncadd %s209, %s215
          %s217 = smul.addr %s213, 64
          %s218 = scalar_lea.hbm %s0, %s217
          %s219 = sshll.u32 %s212, 4
          %s220 = int_to_ptr.vmem [resolvable:$true] %s219
          %225 = dma.hbm_to_vmem [thread:$0]  %s218, 2048, %s220, %s209, 64, 64, 4
        $region36: #{tpu_custom_call.1} parent=31 // pred_fallthru
          _
      $region32: #{tpu_custom_call.1} parent=5 // pred_fallthru
        _
      %p226 = scmp.le.s32.totalorder 1, %s18
      %p227 = scmp.lt.s32.totalorder %s18, 3
      %p228 = pnand %p226, %p227
      %p229 = pneg %p228
      // Predicated region
      $region37: #{tpu_custom_call.1} parent=5 // pred_check
        _
      $region38: #{tpu_custom_call.1} parent=5 // pred_check_branch
        %231 = sbr.rel (%p228) target = $region40
      $region39: #{tpu_custom_call.1} parent=5 // pred_region
        %s232 = ssub.s32 %s18, 1
        %s233 = sand.u32 %s31, 1
        %s234 = scalar_lea.sflag [#allocation3], %s233
        %s235 = sand.u32 %s31, 1
        %s236 = smul.addr %s235, 128
        %s237 = scalar_lea.vmem [#allocation2], %s236
        // Predicated region
        $region41: #{tpu_custom_call.1} parent=39 // pred_check
          %p238 = pneg %p44
        $region42: #{tpu_custom_call.1} parent=39 // pred_check_branch
          %240 = sbr.rel (%p238) target = $region44
        $region43: #{tpu_custom_call.1} parent=39 // pred_region
          %241 = dma.done %s234, 2048
        $region44: #{tpu_custom_call.1} parent=39 // pred_fallthru
          _
        // Predicated region
        $region45: #{tpu_custom_call.1} parent=39 // pred_check
          %p242 = pneg %p65
        $region46: #{tpu_custom_call.1} parent=39 // pred_check_branch
          %244 = sbr.rel (%p242) target = $region48
        $region47: #{tpu_custom_call.1} parent=39 // pred_region
          %245 = dma.done [#allocation6], 1024
        $region48: #{tpu_custom_call.1} parent=39 // pred_fallthru
          _
        // Predicated region
        $region49: #{tpu_custom_call.1} parent=39 // pred_check
          %p246 = pneg %p107
        $region50: #{tpu_custom_call.1} parent=39 // pred_check_branch
          %248 = sbr.rel (%p246) target = $region52
        $region51: #{tpu_custom_call.1} parent=39 // pred_region
          %249 = dma.done [#allocation6], 1024
        $region52: #{tpu_custom_call.1} parent=39 // pred_fallthru
          _
        %s250 = sand.u32 %s31, 1
        %s251 = scalar_lea.sflag [#allocation3], %s250
        %s252 = sand.u32 %s31, 1
        %s253 = smul.addr %s252, 128
        %s254 = scalar_lea.vmem [#allocation2], %s253
        %p255 = pneg %p44
        %p256 = pneg %p41
        %p257 = pneg %p65
        %p258 = pneg %p62
        %p259 = pneg %p86
        %p260 = pneg %p83
        %p261 = pneg %p107
        %p262 = pneg %p104
        %p263 = pneg %p128
        %p264 = pneg %p125
        %p265 = pneg %p154
        %p266 = pneg %p151
        %s267 = sand.u32 %s141, 1
        %s268 = scalar_lea.sflag [#allocation4], %s267
        %s269 = sand.u32 %s141, 1
        %s270 = smul.addr %s269, 256
        %s271 = scalar_lea.vmem [#allocation8], %s270
        %s272 = smul.u32 32, %s23
        %s273 = smul.u32 32, %s23
        %v275 = vld [vmem:[%s237] sm:$0xf]
        %v276 = vld [vmem:[%s237 + $0x4] sm:$0xf]
        %v277 = vld [vmem:[%s237 + $0x8] sm:$0xf]
        %v278 = vld [vmem:[%s237 + $0xc] sm:$0xf]
        %v279 = vld [vmem:[%s237 + $0x10] sm:$0xf]
        %v280 = vld [vmem:[%s237 + $0x14] sm:$0xf]
        %v281 = vld [vmem:[%s237 + $0x18] sm:$0xf]
        %v282 = vld [vmem:[%s237 + $0x1c] sm:$0xf]
        %v283 = vld [vmem:[%s237 + $0x20] sm:$0xf]
        %v284 = vld [vmem:[%s237 + $0x24] sm:$0xf]
        %v285 = vld [vmem:[%s237 + $0x28] sm:$0xf]
        %v286 = vld [vmem:[%s237 + $0x2c] sm:$0xf]
        %v287 = vld [vmem:[%s237 + $0x30] sm:$0xf]
        %v288 = vld [vmem:[%s237 + $0x34] sm:$0xf]
        %v289 = vld [vmem:[%s237 + $0x38] sm:$0xf]
        %v290 = vld [vmem:[%s237 + $0x3c] sm:$0xf]
        %v291 = vld [vmem:[%s237 + $0x40] sm:$0xf]
        %v292 = vld [vmem:[%s237 + $0x44] sm:$0xf]
        %v293 = vld [vmem:[%s237 + $0x48] sm:$0xf]
        %v294 = vld [vmem:[%s237 + $0x4c] sm:$0xf]
        %v295 = vld [vmem:[%s237 + $0x50] sm:$0xf]
        %v296 = vld [vmem:[%s237 + $0x54] sm:$0xf]
        %v297 = vld [vmem:[%s237 + $0x58] sm:$0xf]
        %v298 = vld [vmem:[%s237 + $0x5c] sm:$0xf]
        %v299 = vld [vmem:[%s237 + $0x60] sm:$0xf]
        %v300 = vld [vmem:[%s237 + $0x64] sm:$0xf]
        %v301 = vld [vmem:[%s237 + $0x68] sm:$0xf]
        %v302 = vld [vmem:[%s237 + $0x6c] sm:$0xf]
        %v303 = vld [vmem:[%s237 + $0x70] sm:$0xf]
        %v304 = vld [vmem:[%s237 + $0x74] sm:$0xf]
        %v305 = vld [vmem:[%s237 + $0x78] sm:$0xf]
        %v306 = vld [vmem:[%s237 + $0x7c] sm:$0xf]
        %v307 = vld [vmem:[#allocation5] sm:$0xf]
        %v308 = vld [vmem:[#allocation5 + $0x4] sm:$0xf]
        %v309 = vld [vmem:[#allocation5 + $0x8] sm:$0xf]
        %v310 = vld [vmem:[#allocation5 + $0xc] sm:$0xf]
        %v311 = vld [vmem:[#allocation5 + $0x10] sm:$0xf]
        %v312 = vld [vmem:[#allocation5 + $0x14] sm:$0xf]
        %v313 = vld [vmem:[#allocation5 + $0x18] sm:$0xf]
        %v314 = vld [vmem:[#allocation5 + $0x1c] sm:$0xf]
        %v315 = vld [vmem:[#allocation5 + $0x20] sm:$0xf]
        %v316 = vld [vmem:[#allocation5 + $0x24] sm:$0xf]
        %v317 = vld [vmem:[#allocation5 + $0x28] sm:$0xf]
        %v318 = vld [vmem:[#allocation5 + $0x2c] sm:$0xf]
        %v319 = vld [vmem:[#allocation5 + $0x30] sm:$0xf]
        %v320 = vld [vmem:[#allocation5 + $0x34] sm:$0xf]
        %v321 = vld [vmem:[#allocation5 + $0x38] sm:$0xf]
        %v322 = vld [vmem:[#allocation5 + $0x3c] sm:$0xf]
        %v323 = vld [vmem:[%s2] sm:$0x1]
        %v324 = vlaneseq
        %v325 = vshrl.u32 %v324, 7
        %v326 = vsub.s32 0, %v325
        %v327 = vrot.slane %v323, %v326
        %v360 = vunpack.c.l.b16 %v275
        %v361 = vunpack.c.l.b16 %v276
        %v362 = vunpack.c.l.b16 %v277
        %v363 = vunpack.c.l.b16 %v278
        %v364 = vunpack.c.l.b16 %v279
        %v365 = vunpack.c.l.b16 %v280
        %v366 = vunpack.c.l.b16 %v281
        %v367 = vunpack.c.l.b16 %v282
        %v368 = vunpack.c.l.b16 %v283
        %v369 = vunpack.c.l.b16 %v284
        %v370 = vunpack.c.l.b16 %v285
        %v371 = vunpack.c.l.b16 %v286
        %v372 = vunpack.c.l.b16 %v287
        %v373 = vunpack.c.l.b16 %v288
        %v374 = vunpack.c.l.b16 %v289
        %v375 = vunpack.c.l.b16 %v290
        %v376 = vunpack.c.l.b16 %v291
        %v377 = vunpack.c.l.b16 %v292
        %v378 = vunpack.c.l.b16 %v293
        %v379 = vunpack.c.l.b16 %v294
        %v380 = vunpack.c.l.b16 %v295
        %v381 = vunpack.c.l.b16 %v296
        %v382 = vunpack.c.l.b16 %v297
        %v383 = vunpack.c.l.b16 %v298
        %v384 = vunpack.c.l.b16 %v299
        %v385 = vunpack.c.l.b16 %v300
        %v386 = vunpack.c.l.b16 %v301
        %v387 = vunpack.c.l.b16 %v302
        %v388 = vunpack.c.l.b16 %v303
        %v389 = vunpack.c.l.b16 %v304
        %v390 = vunpack.c.l.b16 %v305
        %v391 = vunpack.c.l.b16 %v306
        %v392 = vpack.c.b16 %v361, %v360
        %v393 = vpack.c.b16 %v363, %v362
        %v394 = vpack.c.b16 %v365, %v364
        %v395 = vpack.c.b16 %v367, %v366
        %v396 = vpack.c.b16 %v369, %v368
        %v397 = vpack.c.b16 %v371, %v370
        %v398 = vpack.c.b16 %v373, %v372
        %v399 = vpack.c.b16 %v375, %v374
        %v400 = vpack.c.b16 %v377, %v376
        %v401 = vpack.c.b16 %v379, %v378
        %v402 = vpack.c.b16 %v381, %v380
        %v403 = vpack.c.b16 %v383, %v382
        %v404 = vpack.c.b16 %v385, %v384
        %v405 = vpack.c.b16 %v387, %v386
        %v406 = vpack.c.b16 %v389, %v388
        %v407 = vpack.c.b16 %v391, %v390
        %v440 = vunpack.c.l.b16 %v307
        %v441 = vunpack.c.l.b16 %v308
        %v442 = vunpack.c.l.b16 %v309
        %v443 = vunpack.c.l.b16 %v310
        %v444 = vunpack.c.l.b16 %v311
        %v445 = vunpack.c.l.b16 %v312
        %v446 = vunpack.c.l.b16 %v313
        %v447 = vunpack.c.l.b16 %v314
        %v448 = vunpack.c.l.b16 %v315
        %v449 = vunpack.c.l.b16 %v316
        %v450 = vunpack.c.l.b16 %v317
        %v451 = vunpack.c.l.b16 %v318
        %v452 = vunpack.c.l.b16 %v319
        %v453 = vunpack.c.l.b16 %v320
        %v454 = vunpack.c.l.b16 %v321
        %v455 = vunpack.c.l.b16 %v322
        %v456 = vpack.c.b16 %v441, %v440
        %v457 = vpack.c.b16 %v443, %v442
        %v458 = vpack.c.b16 %v445, %v444
        %v459 = vpack.c.b16 %v447, %v446
        %v460 = vpack.c.b16 %v449, %v448
        %v461 = vpack.c.b16 %v451, %v450
        %v462 = vpack.c.b16 %v453, %v452
        %v463 = vpack.c.b16 %v455, %v454
        %472 = vmatprep.subr.bf16.mxu0 0
        %473 = vmatpush1.bf16.msra.mxu0 %v456
        %474 = vmatprep.subr.bf16.mxu0 0
        %475 = vmatpush1.bf16.msra.mxu0 %v457
        %476 = vmatprep.subr.bf16.mxu0 0
        %477 = vmatpush1.bf16.msra.mxu0 %v458
        %478 = vmatprep.subr.bf16.mxu0 0
        %479 = vmatpush1.bf16.msra.mxu0 %v459
        %480 = vmatprep.subr.bf16.mxu0 0
        %481 = vmatpush1.bf16.msra.mxu0 %v460
        %482 = vmatprep.subr.bf16.mxu0 0
        %483 = vmatpush1.bf16.msra.mxu0 %v461
        %484 = vmatprep.subr.bf16.mxu0 0
        %485 = vmatpush1.bf16.msra.mxu0 %v462
        %486 = vmatprep.subr.bf16.mxu0 0
        %487 = vmatpush1.bf16.msra.mxu0 %v463
        %488 = vmatprep.subr.bf16.mxu0 0
        %489 = vmatpush1.bf16.msra.mxu0 0
        %490 = vmatprep.subr.bf16.mxu0 0
        %491 = vmatpush1.bf16.msra.mxu0 0
        %492 = vmatprep.subr.bf16.mxu0 0
        %493 = vmatpush1.bf16.msra.mxu0 0
        %494 = vmatprep.subr.bf16.mxu0 0
        %495 = vmatpush1.bf16.msra.mxu0 0
        %496 = vmatprep.subr.bf16.mxu0 0
        %497 = vmatpush1.bf16.msra.mxu0 0
        %498 = vmatprep.subr.bf16.mxu0 0
        %499 = vmatpush1.bf16.msra.mxu0 0
        %500 = vmatprep.subr.bf16.mxu0 0
        %501 = vmatpush1.bf16.msra.mxu0 0
        %502 = vmatprep.subr.bf16.mxu0 0
        %503 = vmatpush1.bf16.msra.mxu0 0
        %504 = vmatprep.mubr.bf16.mxu0 0
        %505 = vmatmul.mubr.bf16.gmra.mrb[0].mxu0 %v392
        %v506 = vpop.f32.mrb[0].mxu0
        %v507 = vadd.f32 %v327, %v506
        %v508 = vpop.f32.mrb[0].mxu0
        %v509 = vpop.f32.mrb[0].mxu0
        %v510 = vadd.f32 %v327, %v509
        %v511 = vpop.f32.mrb[0].mxu0
        %512 = vmatprep.mubr.bf16.mxu0 0
        %513 = vmatmul.mubr.bf16.gmra.mrb[0].mxu0 %v393
        %v514 = vpop.f32.mrb[0].mxu0
        %v515 = vadd.f32 %v327, %v514
        %v516 = vpop.f32.mrb[0].mxu0
        %v517 = vpop.f32.mrb[0].mxu0
        %v518 = vadd.f32 %v327, %v517
        %v519 = vpop.f32.mrb[0].mxu0
        %520 = vmatprep.mubr.bf16.mxu0 0
        %521 = vmatmul.mubr.bf16.gmra.mrb[0].mxu0 %v394
        %v522 = vpop.f32.mrb[0].mxu0
        %v523 = vadd.f32 %v327, %v522
        %v524 = vpop.f32.mrb[0].mxu0
        %v525 = vpop.f32.mrb[0].mxu0
        %v526 = vadd.f32 %v327, %v525
        %v527 = vpop.f32.mrb[0].mxu0
        %528 = vmatprep.mubr.bf16.mxu0 0
        %529 = vmatmul.mubr.bf16.gmra.mrb[0].mxu0 %v395
        %v530 = vpop.f32.mrb[0].mxu0
        %v531 = vadd.f32 %v327, %v530
        %v532 = vpop.f32.mrb[0].mxu0
        %v533 = vpop.f32.mrb[0].mxu0
        %v534 = vadd.f32 %v327, %v533
        %v535 = vpop.f32.mrb[0].mxu0
        %536 = vmatprep.mubr.bf16.mxu0 0
        %537 = vmatmul.mubr.bf16.gmra.mrb[0].mxu0 %v396
        %v538 = vpop.f32.mrb[0].mxu0
        %v539 = vadd.f32 %v327, %v538
        %v540 = vpop.f32.mrb[0].mxu0
        %v541 = vpop.f32.mrb[0].mxu0
        %v542 = vadd.f32 %v327, %v541
        %v543 = vpop.f32.mrb[0].mxu0
        %544 = vmatprep.mubr.bf16.mxu0 0
        %545 = vmatmul.mubr.bf16.gmra.mrb[0].mxu0 %v397
        %v546 = vpop.f32.mrb[0].mxu0
        %v547 = vadd.f32 %v327, %v546
        %v548 = vpop.f32.mrb[0].mxu0
        %v549 = vpop.f32.mrb[0].mxu0
        %v550 = vadd.f32 %v327, %v549
        %v551 = vpop.f32.mrb[0].mxu0
        %552 = vmatprep.mubr.bf16.mxu0 0
        %553 = vmatmul.mubr.bf16.gmra.mrb[0].mxu0 %v398
        %v554 = vpop.f32.mrb[0].mxu0
        %v555 = vadd.f32 %v327, %v554
        %v556 = vpop.f32.mrb[0].mxu0
        %v557 = vpop.f32.mrb[0].mxu0
        %v558 = vadd.f32 %v327, %v557
        %v559 = vpop.f32.mrb[0].mxu0
        %560 = vmatprep.mubr.bf16.mxu0 0
        %561 = vmatmul.mubr.bf16.gmra.mrb[0].mxu0 %v399
        %v562 = vpop.f32.mrb[0].mxu0
        %v563 = vadd.f32 %v327, %v562
        %v564 = vpop.f32.mrb[0].mxu0
        %v565 = vpop.f32.mrb[0].mxu0
        %v566 = vadd.f32 %v327, %v565
        %v567 = vpop.f32.mrb[0].mxu0
        %568 = vmatprep.mubr.bf16.mxu0 0
        %569 = vmatmul.mubr.bf16.gmra.mrb[0].mxu0 %v400
        %v570 = vpop.f32.mrb[0].mxu0
        %v571 = vadd.f32 %v327, %v570
        %v572 = vpop.f32.mrb[0].mxu0
        %v573 = vpop.f32.mrb[0].mxu0
        %v574 = vadd.f32 %v327, %v573
        %v575 = vpop.f32.mrb[0].mxu0
        %576 = vmatprep.mubr.bf16.mxu0 0
        %577 = vmatmul.mubr.bf16.gmra.mrb[0].mxu0 %v401
        %v578 = vpop.f32.mrb[0].mxu0
        %v579 = vadd.f32 %v327, %v578
        %v580 = vpop.f32.mrb[0].mxu0
        %v581 = vpop.f32.mrb[0].mxu0
        %v582 = vadd.f32 %v327, %v581
        %v583 = vpop.f32.mrb[0].mxu0
        %584 = vmatprep.mubr.bf16.mxu0 0
        %585 = vmatmul.mubr.bf16.gmra.mrb[0].mxu0 %v402
        %v586 = vpop.f32.mrb[0].mxu0
        %v587 = vadd.f32 %v327, %v586
        %v588 = vpop.f32.mrb[0].mxu0
        %v589 = vpop.f32.mrb[0].mxu0
        %v590 = vadd.f32 %v327, %v589
        %v591 = vpop.f32.mrb[0].mxu0
        %592 = vmatprep.mubr.bf16.mxu0 0
        %593 = vmatmul.mubr.bf16.gmra.mrb[0].mxu0 %v403
        %v594 = vpop.f32.mrb[0].mxu0
        %v595 = vadd.f32 %v327, %v594
        %v596 = vpop.f32.mrb[0].mxu0
        %v597 = vpop.f32.mrb[0].mxu0
        %v598 = vadd.f32 %v327, %v597
        %v599 = vpop.f32.mrb[0].mxu0
        %600 = vmatprep.mubr.bf16.mxu0 0
        %601 = vmatmul.mubr.bf16.gmra.mrb[0].mxu0 %v404
        %v602 = vpop.f32.mrb[0].mxu0
        %v603 = vadd.f32 %v327, %v602
        %v604 = vpop.f32.mrb[0].mxu0
        %v605 = vpop.f32.mrb[0].mxu0
        %v606 = vadd.f32 %v327, %v605
        %v607 = vpop.f32.mrb[0].mxu0
        %608 = vmatprep.mubr.bf16.mxu0 0
        %609 = vmatmul.mubr.bf16.gmra.mrb[0].mxu0 %v405
        %v610 = vpop.f32.mrb[0].mxu0
        %v611 = vadd.f32 %v327, %v610
        %v612 = vpop.f32.mrb[0].mxu0
        %v613 = vpop.f32.mrb[0].mxu0
        %v614 = vadd.f32 %v327, %v613
        %v615 = vpop.f32.mrb[0].mxu0
        %616 = vmatprep.mubr.bf16.mxu0 0
        %617 = vmatmul.mubr.bf16.gmra.mrb[0].mxu0 %v406
        %v618 = vpop.f32.mrb[0].mxu0
        %v619 = vadd.f32 %v327, %v618
        %v620 = vpop.f32.mrb[0].mxu0
        %v621 = vpop.f32.mrb[0].mxu0
        %v622 = vadd.f32 %v327, %v621
        %v623 = vpop.f32.mrb[0].mxu0
        %624 = vmatprep.mubr.bf16.mxu0 0
        %625 = vmatmul.mubr.bf16.gmra.mrb[0].mxu0 %v407
        %v626 = vpop.f32.mrb[0].mxu0
        %v627 = vadd.f32 %v327, %v626
        %v628 = vpop.f32.mrb[0].mxu0
        %v629 = vpop.f32.mrb[0].mxu0
        %v630 = vadd.f32 %v327, %v629
        %v631 = vpop.f32.mrb[0].mxu0
        %632 = vdwg.mxu0
        %633 = vadd.xlane.f32.xlu0 %v507
        %v634 = vpop.xlane.xlu0 %633
        %635 = vadd.xlane.f32.xlu0 %v510
        %v636 = vpop.xlane.xlu0 %635
        %637 = vadd.xlane.f32.xlu0 %v515
        %v638 = vpop.xlane.xlu0 %637
        %639 = vadd.xlane.f32.xlu0 %v518
        %v640 = vpop.xlane.xlu0 %639
        %641 = vadd.xlane.f32.xlu0 %v523
        %v642 = vpop.xlane.xlu0 %641
        %643 = vadd.xlane.f32.xlu0 %v526
        %v644 = vpop.xlane.xlu0 %643
        %645 = vadd.xlane.f32.xlu0 %v531
        %v646 = vpop.xlane.xlu0 %645
        %647 = vadd.xlane.f32.xlu0 %v534
        %v648 = vpop.xlane.xlu0 %647
        %649 = vadd.xlane.f32.xlu0 %v539
        %v650 = vpop.xlane.xlu0 %649
        %651 = vadd.xlane.f32.xlu0 %v542
        %v652 = vpop.xlane.xlu0 %651
        %653 = vadd.xlane.f32.xlu0 %v547
        %v654 = vpop.xlane.xlu0 %653
        %655 = vadd.xlane.f32.xlu0 %v550
        %v656 = vpop.xlane.xlu0 %655
        %657 = vadd.xlane.f32.xlu0 %v555
        %v658 = vpop.xlane.xlu0 %657
        %659 = vadd.xlane.f32.xlu0 %v558
        %v660 = vpop.xlane.xlu0 %659
        %661 = vadd.xlane.f32.xlu0 %v563
        %v662 = vpop.xlane.xlu0 %661
        %663 = vadd.xlane.f32.xlu0 %v566
        %v664 = vpop.xlane.xlu0 %663
        %665 = vadd.xlane.f32.xlu0 %v571
        %v666 = vpop.xlane.xlu0 %665
        %667 = vadd.xlane.f32.xlu0 %v574
        %v668 = vpop.xlane.xlu0 %667
        %669 = vadd.xlane.f32.xlu0 %v579
        %v670 = vpop.xlane.xlu0 %669
        %671 = vadd.xlane.f32.xlu0 %v582
        %v672 = vpop.xlane.xlu0 %671
        %673 = vadd.xlane.f32.xlu0 %v587
        %v674 = vpop.xlane.xlu0 %673
        %675 = vadd.xlane.f32.xlu0 %v590
        %v676 = vpop.xlane.xlu0 %675
        %677 = vadd.xlane.f32.xlu0 %v595
        %v678 = vpop.xlane.xlu0 %677
        %679 = vadd.xlane.f32.xlu0 %v598
        %v680 = vpop.xlane.xlu0 %679
        %681 = vadd.xlane.f32.xlu0 %v603
        %v682 = vpop.xlane.xlu0 %681
        %683 = vadd.xlane.f32.xlu0 %v606
        %v684 = vpop.xlane.xlu0 %683
        %685 = vadd.xlane.f32.xlu0 %v611
        %v686 = vpop.xlane.xlu0 %685
        %687 = vadd.xlane.f32.xlu0 %v614
        %v688 = vpop.xlane.xlu0 %687
        %689 = vadd.xlane.f32.xlu0 %v619
        %v690 = vpop.xlane.xlu0 %689
        %691 = vadd.xlane.f32.xlu0 %v622
        %v692 = vpop.xlane.xlu0 %691
        %693 = vadd.xlane.f32.xlu0 %v627
        %v694 = vpop.xlane.xlu0 %693
        %695 = vadd.xlane.f32.xlu0 %v630
        %v696 = vpop.xlane.xlu0 %695
        %v697 = vmul.f32 %v634, 0.015625
        %v698 = vmul.f32 %v636, 0.015625
        %v699 = vmul.f32 %v638, 0.015625
        %v700 = vmul.f32 %v640, 0.015625
        %v701 = vmul.f32 %v642, 0.015625
        %v702 = vmul.f32 %v644, 0.015625
        %v703 = vmul.f32 %v646, 0.015625
        %v704 = vmul.f32 %v648, 0.015625
        %v705 = vmul.f32 %v650, 0.015625
        %v706 = vmul.f32 %v652, 0.015625
        %v707 = vmul.f32 %v654, 0.015625
        %v708 = vmul.f32 %v656, 0.015625
        %v709 = vmul.f32 %v658, 0.015625
        %v710 = vmul.f32 %v660, 0.015625
        %v711 = vmul.f32 %v662, 0.015625
        %v712 = vmul.f32 %v664, 0.015625
        %v713 = vmul.f32 %v666, 0.015625
        %v714 = vmul.f32 %v668, 0.015625
        %v715 = vmul.f32 %v670, 0.015625
        %v716 = vmul.f32 %v672, 0.015625
        %v717 = vmul.f32 %v674, 0.015625
        %v718 = vmul.f32 %v676, 0.015625
        %v719 = vmul.f32 %v678, 0.015625
        %v720 = vmul.f32 %v680, 0.015625
        %v721 = vmul.f32 %v682, 0.015625
        %v722 = vmul.f32 %v684, 0.015625
        %v723 = vmul.f32 %v686, 0.015625
        %v724 = vmul.f32 %v688, 0.015625
        %v725 = vmul.f32 %v690, 0.015625
        %v726 = vmul.f32 %v692, 0.015625
        %v727 = vmul.f32 %v694, 0.015625
        %v728 = vmul.f32 %v696, 0.015625
        %v729 = vsub.f32 %v507, %v697
        %v730 = vsub.f32 %v510, %v698
        %v731 = vsub.f32 %v515, %v699
        %v732 = vsub.f32 %v518, %v700
        %v733 = vsub.f32 %v523, %v701
        %v734 = vsub.f32 %v526, %v702
        %v735 = vsub.f32 %v531, %v703
        %v736 = vsub.f32 %v534, %v704
        %v737 = vsub.f32 %v539, %v705
        %v738 = vsub.f32 %v542, %v706
        %v739 = vsub.f32 %v547, %v707
        %v740 = vsub.f32 %v550, %v708
        %v741 = vsub.f32 %v555, %v709
        %v742 = vsub.f32 %v558, %v710
        %v743 = vsub.f32 %v563, %v711
        %v744 = vsub.f32 %v566, %v712
        %v745 = vsub.f32 %v571, %v713
        %v746 = vsub.f32 %v574, %v714
        %v747 = vsub.f32 %v579, %v715
        %v748 = vsub.f32 %v582, %v716
        %v749 = vsub.f32 %v587, %v717
        %v750 = vsub.f32 %v590, %v718
        %v751 = vsub.f32 %v595, %v719
        %v752 = vsub.f32 %v598, %v720
        %v753 = vsub.f32 %v603, %v721
        %v754 = vsub.f32 %v606, %v722
        %v755 = vsub.f32 %v611, %v723
        %v756 = vsub.f32 %v614, %v724
        %v757 = vsub.f32 %v619, %v725
        %v758 = vsub.f32 %v622, %v726
        %v759 = vsub.f32 %v627, %v727
        %v760 = vsub.f32 %v630, %v728
        %v761 = vmul.f32 %v729, %v729
        %v762 = vmul.f32 %v730, %v730
        %v763 = vmul.f32 %v731, %v731
        %v764 = vmul.f32 %v732, %v732
        %v765 = vmul.f32 %v733, %v733
        %v766 = vmul.f32 %v734, %v734
        %v767 = vmul.f32 %v735, %v735
        %v768 = vmul.f32 %v736, %v736
        %v769 = vmul.f32 %v737, %v737
        %v770 = vmul.f32 %v738, %v738
        %v771 = vmul.f32 %v739, %v739
        %v772 = vmul.f32 %v740, %v740
        %v773 = vmul.f32 %v741, %v741
        %v774 = vmul.f32 %v742, %v742
        %v775 = vmul.f32 %v743, %v743
        %v776 = vmul.f32 %v744, %v744
        %v777 = vmul.f32 %v745, %v745
        %v778 = vmul.f32 %v746, %v746
        %v779 = vmul.f32 %v747, %v747
        %v780 = vmul.f32 %v748, %v748
        %v781 = vmul.f32 %v749, %v749
        %v782 = vmul.f32 %v750, %v750
        %v783 = vmul.f32 %v751, %v751
        %v784 = vmul.f32 %v752, %v752
        %v785 = vmul.f32 %v753, %v753
        %v786 = vmul.f32 %v754, %v754
        %v787 = vmul.f32 %v755, %v755
        %v788 = vmul.f32 %v756, %v756
        %v789 = vmul.f32 %v757, %v757
        %v790 = vmul.f32 %v758, %v758
        %v791 = vmul.f32 %v759, %v759
        %v792 = vmul.f32 %v760, %v760
        %793 = vadd.xlane.f32.xlu0 %v761
        %v794 = vpop.xlane.xlu0 %793
        %795 = vadd.xlane.f32.xlu0 %v762
        %v796 = vpop.xlane.xlu0 %795
        %797 = vadd.xlane.f32.xlu0 %v763
        %v798 = vpop.xlane.xlu0 %797
        %799 = vadd.xlane.f32.xlu0 %v764
        %v800 = vpop.xlane.xlu0 %799
        %801 = vadd.xlane.f32.xlu0 %v765
        %v802 = vpop.xlane.xlu0 %801
        %803 = vadd.xlane.f32.xlu0 %v766
        %v804 = vpop.xlane.xlu0 %803
        %805 = vadd.xlane.f32.xlu0 %v767
        %v806 = vpop.xlane.xlu0 %805
        %807 = vadd.xlane.f32.xlu0 %v768
        %v808 = vpop.xlane.xlu0 %807
        %809 = vadd.xlane.f32.xlu0 %v769
        %v810 = vpop.xlane.xlu0 %809
        %811 = vadd.xlane.f32.xlu0 %v770
        %v812 = vpop.xlane.xlu0 %811
        %813 = vadd.xlane.f32.xlu0 %v771
        %v814 = vpop.xlane.xlu0 %813
        %815 = vadd.xlane.f32.xlu0 %v772
        %v816 = vpop.xlane.xlu0 %815
        %817 = vadd.xlane.f32.xlu0 %v773
        %v818 = vpop.xlane.xlu0 %817
        %819 = vadd.xlane.f32.xlu0 %v774
        %v820 = vpop.xlane.xlu0 %819
        %821 = vadd.xlane.f32.xlu0 %v775
        %v822 = vpop.xlane.xlu0 %821
        %823 = vadd.xlane.f32.xlu0 %v776
        %v824 = vpop.xlane.xlu0 %823
        %825 = vadd.xlane.f32.xlu0 %v777
        %v826 = vpop.xlane.xlu0 %825
        %827 = vadd.xlane.f32.xlu0 %v778
        %v828 = vpop.xlane.xlu0 %827
        %829 = vadd.xlane.f32.xlu0 %v779
        %v830 = vpop.xlane.xlu0 %829
        %831 = vadd.xlane.f32.xlu0 %v780
        %v832 = vpop.xlane.xlu0 %831
        %833 = vadd.xlane.f32.xlu0 %v781
        %v834 = vpop.xlane.xlu0 %833
        %835 = vadd.xlane.f32.xlu0 %v782
        %v836 = vpop.xlane.xlu0 %835
        %837 = vadd.xlane.f32.xlu0 %v783
        %v838 = vpop.xlane.xlu0 %837
        %839 = vadd.xlane.f32.xlu0 %v784
        %v840 = vpop.xlane.xlu0 %839
        %841 = vadd.xlane.f32.xlu0 %v785
        %v842 = vpop.xlane.xlu0 %841
        %843 = vadd.xlane.f32.xlu0 %v786
        %v844 = vpop.xlane.xlu0 %843
        %845 = vadd.xlane.f32.xlu0 %v787
        %v846 = vpop.xlane.xlu0 %845
        %847 = vadd.xlane.f32.xlu0 %v788
        %v848 = vpop.xlane.xlu0 %847
        %849 = vadd.xlane.f32.xlu0 %v789
        %v850 = vpop.xlane.xlu0 %849
        %851 = vadd.xlane.f32.xlu0 %v790
        %v852 = vpop.xlane.xlu0 %851
        %853 = vadd.xlane.f32.xlu0 %v791
        %v854 = vpop.xlane.xlu0 %853
        %855 = vadd.xlane.f32.xlu0 %v792
        %v856 = vpop.xlane.xlu0 %855
        %v857 = vmul.f32 %v697, %v697
        %v858 = vmul.f32 %v698, %v698
        %v859 = vmul.f32 %v699, %v699
        %v860 = vmul.f32 %v700, %v700
        %v861 = vmul.f32 %v701, %v701
        %v862 = vmul.f32 %v702, %v702
        %v863 = vmul.f32 %v703, %v703
        %v864 = vmul.f32 %v704, %v704
        %v865 = vmul.f32 %v705, %v705
        %v866 = vmul.f32 %v706, %v706
        %v867 = vmul.f32 %v707, %v707
        %v868 = vmul.f32 %v708, %v708
        %v869 = vmul.f32 %v709, %v709
        %v870 = vmul.f32 %v710, %v710
        %v871 = vmul.f32 %v711, %v711
        %v872 = vmul.f32 %v712, %v712
        %v873 = vmul.f32 %v713, %v713
        %v874 = vmul.f32 %v714, %v714
        %v875 = vmul.f32 %v715, %v715
        %v876 = vmul.f32 %v716, %v716
        %v877 = vmul.f32 %v717, %v717
        %v878 = vmul.f32 %v718, %v718
        %v879 = vmul.f32 %v719, %v719
        %v880 = vmul.f32 %v720, %v720
        %v881 = vmul.f32 %v721, %v721
        %v882 = vmul.f32 %v722, %v722
        %v883 = vmul.f32 %v723, %v723
        %v884 = vmul.f32 %v724, %v724
        %v885 = vmul.f32 %v725, %v725
        %v886 = vmul.f32 %v726, %v726
        %v887 = vmul.f32 %v727, %v727
        %v888 = vmul.f32 %v728, %v728
        %v889 = vmul.f32 %v857, 64.0
        %v890 = vmul.f32 %v858, 64.0
        %v891 = vmul.f32 %v859, 64.0
        %v892 = vmul.f32 %v860, 64.0
        %v893 = vmul.f32 %v861, 64.0
        %v894 = vmul.f32 %v862, 64.0
        %v895 = vmul.f32 %v863, 64.0
        %v896 = vmul.f32 %v864, 64.0
        %v897 = vmul.f32 %v865, 64.0
        %v898 = vmul.f32 %v866, 64.0
        %v899 = vmul.f32 %v867, 64.0
        %v900 = vmul.f32 %v868, 64.0
        %v901 = vmul.f32 %v869, 64.0
        %v902 = vmul.f32 %v870, 64.0
        %v903 = vmul.f32 %v871, 64.0
        %v904 = vmul.f32 %v872, 64.0
        %v905 = vmul.f32 %v873, 64.0
        %v906 = vmul.f32 %v874, 64.0
        %v907 = vmul.f32 %v875, 64.0
        %v908 = vmul.f32 %v876, 64.0
        %v909 = vmul.f32 %v877, 64.0
        %v910 = vmul.f32 %v878, 64.0
        %v911 = vmul.f32 %v879, 64.0
        %v912 = vmul.f32 %v880, 64.0
        %v913 = vmul.f32 %v881, 64.0
        %v914 = vmul.f32 %v882, 64.0
        %v915 = vmul.f32 %v883, 64.0
        %v916 = vmul.f32 %v884, 64.0
        %v917 = vmul.f32 %v885, 64.0
        %v918 = vmul.f32 %v886, 64.0
        %v919 = vmul.f32 %v887, 64.0
        %v920 = vmul.f32 %v888, 64.0
        %v921 = vsub.f32 %v794, %v889
        %v922 = vsub.f32 %v796, %v890
        %v923 = vsub.f32 %v798, %v891
        %v924 = vsub.f32 %v800, %v892
        %v925 = vsub.f32 %v802, %v893
        %v926 = vsub.f32 %v804, %v894
        %v927 = vsub.f32 %v806, %v895
        %v928 = vsub.f32 %v808, %v896
        %v929 = vsub.f32 %v810, %v897
        %v930 = vsub.f32 %v812, %v898
        %v931 = vsub.f32 %v814, %v899
        %v932 = vsub.f32 %v816, %v900
        %v933 = vsub.f32 %v818, %v901
        %v934 = vsub.f32 %v820, %v902
        %v935 = vsub.f32 %v822, %v903
        %v936 = vsub.f32 %v824, %v904
        %v937 = vsub.f32 %v826, %v905
        %v938 = vsub.f32 %v828, %v906
        %v939 = vsub.f32 %v830, %v907
        %v940 = vsub.f32 %v832, %v908
        %v941 = vsub.f32 %v834, %v909
        %v942 = vsub.f32 %v836, %v910
        %v943 = vsub.f32 %v838, %v911
        %v944 = vsub.f32 %v840, %v912
        %v945 = vsub.f32 %v842, %v913
        %v946 = vsub.f32 %v844, %v914
        %v947 = vsub.f32 %v846, %v915
        %v948 = vsub.f32 %v848, %v916
        %v949 = vsub.f32 %v850, %v917
        %v950 = vsub.f32 %v852, %v918
        %v951 = vsub.f32 %v854, %v919
        %v952 = vsub.f32 %v856, %v920
        %v953 = vmul.f32 %v921, 0.015625
        %v954 = vmul.f32 %v922, 0.015625
        %v955 = vmul.f32 %v923, 0.015625
        %v956 = vmul.f32 %v924, 0.015625
        %v957 = vmul.f32 %v925, 0.015625
        %v958 = vmul.f32 %v926, 0.015625
        %v959 = vmul.f32 %v927, 0.015625
        %v960 = vmul.f32 %v928, 0.015625
        %v961 = vmul.f32 %v929, 0.015625
        %v962 = vmul.f32 %v930, 0.015625
        %v963 = vmul.f32 %v931, 0.015625
        %v964 = vmul.f32 %v932, 0.015625
        %v965 = vmul.f32 %v933, 0.015625
        %v966 = vmul.f32 %v934, 0.015625
        %v967 = vmul.f32 %v935, 0.015625
        %v968 = vmul.f32 %v936, 0.015625
        %v969 = vmul.f32 %v937, 0.015625
        %v970 = vmul.f32 %v938, 0.015625
        %v971 = vmul.f32 %v939, 0.015625
        %v972 = vmul.f32 %v940, 0.015625
        %v973 = vmul.f32 %v941, 0.015625
        %v974 = vmul.f32 %v942, 0.015625
        %v975 = vmul.f32 %v943, 0.015625
        %v976 = vmul.f32 %v944, 0.015625
        %v977 = vmul.f32 %v945, 0.015625
        %v978 = vmul.f32 %v946, 0.015625
        %v979 = vmul.f32 %v947, 0.015625
        %v980 = vmul.f32 %v948, 0.015625
        %v981 = vmul.f32 %v949, 0.015625
        %v982 = vmul.f32 %v950, 0.015625
        %v983 = vmul.f32 %v951, 0.015625
        %v984 = vmul.f32 %v952, 0.015625
        %v985 = vadd.f32 %v953, 1e-05
        %v986 = vadd.f32 %v954, 1e-05
        %v987 = vadd.f32 %v955, 1e-05
        %v988 = vadd.f32 %v956, 1e-05
        %v989 = vadd.f32 %v957, 1e-05
        %v990 = vadd.f32 %v958, 1e-05
        %v991 = vadd.f32 %v959, 1e-05
        %v992 = vadd.f32 %v960, 1e-05
        %v993 = vadd.f32 %v961, 1e-05
        %v994 = vadd.f32 %v962, 1e-05
        %v995 = vadd.f32 %v963, 1e-05
        %v996 = vadd.f32 %v964, 1e-05
        %v997 = vadd.f32 %v965, 1e-05
        %v998 = vadd.f32 %v966, 1e-05
        %v999 = vadd.f32 %v967, 1e-05
        %v1000 = vadd.f32 %v968, 1e-05
        %v1001 = vadd.f32 %v969, 1e-05
        %v1002 = vadd.f32 %v970, 1e-05
        %v1003 = vadd.f32 %v971, 1e-05
        %v1004 = vadd.f32 %v972, 1e-05
        %v1005 = vadd.f32 %v973, 1e-05
        %v1006 = vadd.f32 %v974, 1e-05
        %v1007 = vadd.f32 %v975, 1e-05
        %v1008 = vadd.f32 %v976, 1e-05
        %v1009 = vadd.f32 %v977, 1e-05
        %v1010 = vadd.f32 %v978, 1e-05
        %v1011 = vadd.f32 %v979, 1e-05
        %v1012 = vadd.f32 %v980, 1e-05
        %v1013 = vadd.f32 %v981, 1e-05
        %v1014 = vadd.f32 %v982, 1e-05
        %v1015 = vadd.f32 %v983, 1e-05
        %v1016 = vadd.f32 %v984, 1e-05
        %v1017 = vrsqrt.pop %v985
        %v1018 = vrsqrt.pop %v986
        %v1019 = vrsqrt.pop %v987
        %v1020 = vrsqrt.pop %v988
        %v1021 = vrsqrt.pop %v989
        %v1022 = vrsqrt.pop %v990
        %v1023 = vrsqrt.pop %v991
        %v1024 = vrsqrt.pop %v992
        %v1025 = vrsqrt.pop %v993
        %v1026 = vrsqrt.pop %v994
        %v1027 = vrsqrt.pop %v995
        %v1028 = vrsqrt.pop %v996
        %v1029 = vrsqrt.pop %v997
        %v1030 = vrsqrt.pop %v998
        %v1031 = vrsqrt.pop %v999
        %v1032 = vrsqrt.pop %v1000
        %v1033 = vrsqrt.pop %v1001
        %v1034 = vrsqrt.pop %v1002
        %v1035 = vrsqrt.pop %v1003
        %v1036 = vrsqrt.pop %v1004
        %v1037 = vrsqrt.pop %v1005
        %v1038 = vrsqrt.pop %v1006
        %v1039 = vrsqrt.pop %v1007
        %v1040 = vrsqrt.pop %v1008
        %v1041 = vrsqrt.pop %v1009
        %v1042 = vrsqrt.pop %v1010
        %v1043 = vrsqrt.pop %v1011
        %v1044 = vrsqrt.pop %v1012
        %v1045 = vrsqrt.pop %v1013
        %v1046 = vrsqrt.pop %v1014
        %v1047 = vrsqrt.pop %v1015
        %v1048 = vrsqrt.pop %v1016
        %v1049 = vld [vmem:[%s2 + $0x1] sm:$0x1]
        %v1050 = vlaneseq
        %v1051 = vshrl.u32 %v1050, 7
        %v1052 = vsub.s32 0, %v1051
        %v1053 = vrot.slane %v1049, %v1052
        %v1054 = vmul.f32 %v1017, %v1053
        %v1055 = vmul.f32 %v1018, %v1053
        %v1056 = vmul.f32 %v1019, %v1053
        %v1057 = vmul.f32 %v1020, %v1053
        %v1058 = vmul.f32 %v1021, %v1053
        %v1059 = vmul.f32 %v1022, %v1053
        %v1060 = vmul.f32 %v1023, %v1053
        %v1061 = vmul.f32 %v1024, %v1053
        %v1062 = vmul.f32 %v1025, %v1053
        %v1063 = vmul.f32 %v1026, %v1053
        %v1064 = vmul.f32 %v1027, %v1053
        %v1065 = vmul.f32 %v1028, %v1053
        %v1066 = vmul.f32 %v1029, %v1053
        %v1067 = vmul.f32 %v1030, %v1053
        %v1068 = vmul.f32 %v1031, %v1053
        %v1069 = vmul.f32 %v1032, %v1053
        %v1070 = vmul.f32 %v1033, %v1053
        %v1071 = vmul.f32 %v1034, %v1053
        %v1072 = vmul.f32 %v1035, %v1053
        %v1073 = vmul.f32 %v1036, %v1053
        %v1074 = vmul.f32 %v1037, %v1053
        %v1075 = vmul.f32 %v1038, %v1053
        %v1076 = vmul.f32 %v1039, %v1053
        %v1077 = vmul.f32 %v1040, %v1053
        %v1078 = vmul.f32 %v1041, %v1053
        %v1079 = vmul.f32 %v1042, %v1053
        %v1080 = vmul.f32 %v1043, %v1053
        %v1081 = vmul.f32 %v1044, %v1053
        %v1082 = vmul.f32 %v1045, %v1053
        %v1083 = vmul.f32 %v1046, %v1053
        %v1084 = vmul.f32 %v1047, %v1053
        %v1085 = vmul.f32 %v1048, %v1053
        %v1086 = vmul.f32 %v729, %v1054
        %v1087 = vmul.f32 %v730, %v1055
        %v1088 = vmul.f32 %v731, %v1056
        %v1089 = vmul.f32 %v732, %v1057
        %v1090 = vmul.f32 %v733, %v1058
        %v1091 = vmul.f32 %v734, %v1059
        %v1092 = vmul.f32 %v735, %v1060
        %v1093 = vmul.f32 %v736, %v1061
        %v1094 = vmul.f32 %v737, %v1062
        %v1095 = vmul.f32 %v738, %v1063
        %v1096 = vmul.f32 %v739, %v1064
        %v1097 = vmul.f32 %v740, %v1065
        %v1098 = vmul.f32 %v741, %v1066
        %v1099 = vmul.f32 %v742, %v1067
        %v1100 = vmul.f32 %v743, %v1068
        %v1101 = vmul.f32 %v744, %v1069
        %v1102 = vmul.f32 %v745, %v1070
        %v1103 = vmul.f32 %v746, %v1071
        %v1104 = vmul.f32 %v747, %v1072
        %v1105 = vmul.f32 %v748, %v1073
        %v1106 = vmul.f32 %v749, %v1074
        %v1107 = vmul.f32 %v750, %v1075
        %v1108 = vmul.f32 %v751, %v1076
        %v1109 = vmul.f32 %v752, %v1077
        %v1110 = vmul.f32 %v753, %v1078
        %v1111 = vmul.f32 %v754, %v1079
        %v1112 = vmul.f32 %v755, %v1080
        %v1113 = vmul.f32 %v756, %v1081
        %v1114 = vmul.f32 %v757, %v1082
        %v1115 = vmul.f32 %v758, %v1083
        %v1116 = vmul.f32 %v759, %v1084
        %v1117 = vmul.f32 %v760, %v1085
        %v1118 = vld [vmem:[%s2 + $0x2] sm:$0x1]
        %v1119 = vlaneseq
        %v1120 = vshrl.u32 %v1119, 7
        %v1121 = vsub.s32 0, %v1120
        %v1122 = vrot.slane %v1118, %v1121
        %v1123 = vadd.f32 %v1086, %v1122
        %v1124 = vadd.f32 %v1087, %v1122
        %v1125 = vadd.f32 %v1088, %v1122
        %v1126 = vadd.f32 %v1089, %v1122
        %v1127 = vadd.f32 %v1090, %v1122
        %v1128 = vadd.f32 %v1091, %v1122
        %v1129 = vadd.f32 %v1092, %v1122
        %v1130 = vadd.f32 %v1093, %v1122
        %v1131 = vadd.f32 %v1094, %v1122
        %v1132 = vadd.f32 %v1095, %v1122
        %v1133 = vadd.f32 %v1096, %v1122
        %v1134 = vadd.f32 %v1097, %v1122
        %v1135 = vadd.f32 %v1098, %v1122
        %v1136 = vadd.f32 %v1099, %v1122
        %v1137 = vadd.f32 %v1100, %v1122
        %v1138 = vadd.f32 %v1101, %v1122
        %v1139 = vadd.f32 %v1102, %v1122
        %v1140 = vadd.f32 %v1103, %v1122
        %v1141 = vadd.f32 %v1104, %v1122
        %v1142 = vadd.f32 %v1105, %v1122
        %v1143 = vadd.f32 %v1106, %v1122
        %v1144 = vadd.f32 %v1107, %v1122
        %v1145 = vadd.f32 %v1108, %v1122
        %v1146 = vadd.f32 %v1109, %v1122
        %v1147 = vadd.f32 %v1110, %v1122
        %v1148 = vadd.f32 %v1111, %v1122
        %v1149 = vadd.f32 %v1112, %v1122
        %v1150 = vadd.f32 %v1113, %v1122
        %v1151 = vadd.f32 %v1114, %v1122
        %v1152 = vadd.f32 %v1115, %v1122
        %v1153 = vadd.f32 %v1116, %v1122
        %v1154 = vadd.f32 %v1117, %v1122
        %v1155 = vmax.f32 %v1123, 0.0
        %v1156 = vmax.f32 %v1124, 0.0
        %v1157 = vmax.f32 %v1125, 0.0
        %v1158 = vmax.f32 %v1126, 0.0
        %v1159 = vmax.f32 %v1127, 0.0
        %v1160 = vmax.f32 %v1128, 0.0
        %v1161 = vmax.f32 %v1129, 0.0
        %v1162 = vmax.f32 %v1130, 0.0
        %v1163 = vmax.f32 %v1131, 0.0
        %v1164 = vmax.f32 %v1132, 0.0
        %v1165 = vmax.f32 %v1133, 0.0
        %v1166 = vmax.f32 %v1134, 0.0
        %v1167 = vmax.f32 %v1135, 0.0
        %v1168 = vmax.f32 %v1136, 0.0
        %v1169 = vmax.f32 %v1137, 0.0
        %v1170 = vmax.f32 %v1138, 0.0
        %v1171 = vmax.f32 %v1139, 0.0
        %v1172 = vmax.f32 %v1140, 0.0
        %v1173 = vmax.f32 %v1141, 0.0
        %v1174 = vmax.f32 %v1142, 0.0
        %v1175 = vmax.f32 %v1143, 0.0
        %v1176 = vmax.f32 %v1144, 0.0
        %v1177 = vmax.f32 %v1145, 0.0
        %v1178 = vmax.f32 %v1146, 0.0
        %v1179 = vmax.f32 %v1147, 0.0
        %v1180 = vmax.f32 %v1148, 0.0
        %v1181 = vmax.f32 %v1149, 0.0
        %v1182 = vmax.f32 %v1150, 0.0
        %v1183 = vmax.f32 %v1151, 0.0
        %v1184 = vmax.f32 %v1152, 0.0
        %v1185 = vmax.f32 %v1153, 0.0
        %v1186 = vmax.f32 %v1154, 0.0
        %v1187 = vpack.c.bf16 %v1156, %v1155
        %v1188 = vpack.c.bf16 %v1158, %v1157
        %v1189 = vpack.c.bf16 %v1160, %v1159
        %v1190 = vpack.c.bf16 %v1162, %v1161
        %v1191 = vpack.c.bf16 %v1164, %v1163
        %v1192 = vpack.c.bf16 %v1166, %v1165
        %v1193 = vpack.c.bf16 %v1168, %v1167
        %v1194 = vpack.c.bf16 %v1170, %v1169
        %v1195 = vpack.c.bf16 %v1172, %v1171
        %v1196 = vpack.c.bf16 %v1174, %v1173
        %v1197 = vpack.c.bf16 %v1176, %v1175
        %v1198 = vpack.c.bf16 %v1178, %v1177
        %v1199 = vpack.c.bf16 %v1180, %v1179
        %v1200 = vpack.c.bf16 %v1182, %v1181
        %v1201 = vpack.c.bf16 %v1184, %v1183
        %v1202 = vpack.c.bf16 %v1186, %v1185
        %v1203 = vld [vmem:[#allocation7] sm:$0xf]
        %v1204 = vld [vmem:[#allocation7 + $0x4] sm:$0xf]
        %v1205 = vld [vmem:[#allocation7 + $0x8] sm:$0xf]
        %v1206 = vld [vmem:[#allocation7 + $0xc] sm:$0xf]
        %v1207 = vld [vmem:[#allocation7 + $0x10] sm:$0xf]
        %v1208 = vld [vmem:[#allocation7 + $0x14] sm:$0xf]
        %v1209 = vld [vmem:[#allocation7 + $0x18] sm:$0xf]
        %v1210 = vld [vmem:[#allocation7 + $0x1c] sm:$0xf]
        %v1211 = vld [vmem:[#allocation7 + $0x20] sm:$0xf]
        %v1212 = vld [vmem:[#allocation7 + $0x24] sm:$0xf]
        %v1213 = vld [vmem:[#allocation7 + $0x28] sm:$0xf]
        %v1214 = vld [vmem:[#allocation7 + $0x2c] sm:$0xf]
        %v1215 = vld [vmem:[#allocation7 + $0x30] sm:$0xf]
        %v1216 = vld [vmem:[#allocation7 + $0x34] sm:$0xf]
        %v1217 = vld [vmem:[#allocation7 + $0x38] sm:$0xf]
        %v1218 = vld [vmem:[#allocation7 + $0x3c] sm:$0xf]
        %v1219 = vld [vmem:[%s4] sm:$0x1]
        %v1221 = vlaneseq
        %v1222 = vshrl.u32 %v1221, 7
        %v1223 = vsub.s32 0, %v1222
        %v1224 = vrot.slane %v1219, %v1223
        %v1242 = vunpack.c.l.b16 %v1203
        %v1243 = vunpack.c.l.b16 %v1204
        %v1244 = vunpack.c.l.b16 %v1205
        %v1245 = vunpack.c.l.b16 %v1206
        %v1246 = vunpack.c.l.b16 %v1207
        %v1247 = vunpack.c.l.b16 %v1208
        %v1248 = vunpack.c.l.b16 %v1209
        %v1249 = vunpack.c.l.b16 %v1210
        %v1250 = vunpack.c.l.b16 %v1211
        %v1251 = vunpack.c.l.b16 %v1212
        %v1252 = vunpack.c.l.b16 %v1213
        %v1253 = vunpack.c.l.b16 %v1214
        %v1254 = vunpack.c.l.b16 %v1215
        %v1255 = vunpack.c.l.b16 %v1216
        %v1256 = vunpack.c.l.b16 %v1217
        %v1257 = vunpack.c.l.b16 %v1218
        %v1258 = vpack.c.b16 %v1243, %v1242
        %v1259 = vpack.c.b16 %v1245, %v1244
        %v1260 = vpack.c.b16 %v1247, %v1246
        %v1261 = vpack.c.b16 %v1249, %v1248
        %v1262 = vpack.c.b16 %v1251, %v1250
        %v1263 = vpack.c.b16 %v1253, %v1252
        %v1264 = vpack.c.b16 %v1255, %v1254
        %v1265 = vpack.c.b16 %v1257, %v1256
        %1274 = vmatprep.subr.bf16.mxu0 0
        %1275 = vmatpush1.bf16.msra.mxu0 %v1258
        %1276 = vmatprep.subr.bf16.mxu0 0
        %1277 = vmatpush1.bf16.msra.mxu0 %v1259
        %1278 = vmatprep.subr.bf16.mxu0 0
        %1279 = vmatpush1.bf16.msra.mxu0 %v1260
        %1280 = vmatprep.subr.bf16.mxu0 0
        %1281 = vmatpush1.bf16.msra.mxu0 %v1261
        %1282 = vmatprep.subr.bf16.mxu0 0
        %1283 = vmatpush1.bf16.msra.mxu0 %v1262
        %1284 = vmatprep.subr.bf16.mxu0 0
        %1285 = vmatpush1.bf16.msra.mxu0 %v1263
        %1286 = vmatprep.subr.bf16.mxu0 0
        %1287 = vmatpush1.bf16.msra.mxu0 %v1264
        %1288 = vmatprep.subr.bf16.mxu0 0
        %1289 = vmatpush1.bf16.msra.mxu0 %v1265
        %1290 = vmatprep.subr.bf16.mxu0 0
        %1291 = vmatpush1.bf16.msra.mxu0 0
        %1292 = vmatprep.subr.bf16.mxu0 0
        %1293 = vmatpush1.bf16.msra.mxu0 0
        %1294 = vmatprep.subr.bf16.mxu0 0
        %1295 = vmatpush1.bf16.msra.mxu0 0
        %1296 = vmatprep.subr.bf16.mxu0 0
        %1297 = vmatpush1.bf16.msra.mxu0 0
        %1298 = vmatprep.subr.bf16.mxu0 0
        %1299 = vmatpush1.bf16.msra.mxu0 0
        %1300 = vmatprep.subr.bf16.mxu0 0
        %1301 = vmatpush1.bf16.msra.mxu0 0
        %1302 = vmatprep.subr.bf16.mxu0 0
        %1303 = vmatpush1.bf16.msra.mxu0 0
        %1304 = vmatprep.subr.bf16.mxu0 0
        %1305 = vmatpush1.bf16.msra.mxu0 0
        %1306 = vmatprep.mubr.bf16.mxu0 0
        %1307 = vmatmul.mubr.bf16.gmra.mrb[0].mxu0 %v1187
        %v1308 = vpop.f32.mrb[0].mxu0
        %v1309 = vadd.f32 %v1224, %v1308
        %v1310 = vpop.f32.mrb[0].mxu0
        %v1311 = vpop.f32.mrb[0].mxu0
        %v1312 = vadd.f32 %v1224, %v1311
        %v1313 = vpop.f32.mrb[0].mxu0
        %1314 = vmatprep.mubr.bf16.mxu0 0
        %1315 = vmatmul.mubr.bf16.gmra.mrb[0].mxu0 %v1188
        %v1316 = vpop.f32.mrb[0].mxu0
        %v1317 = vadd.f32 %v1224, %v1316
        %v1318 = vpop.f32.mrb[0].mxu0
        %v1319 = vpop.f32.mrb[0].mxu0
        %v1320 = vadd.f32 %v1224, %v1319
        %v1321 = vpop.f32.mrb[0].mxu0
        %1322 = vmatprep.mubr.bf16.mxu0 0
        %1323 = vmatmul.mubr.bf16.gmra.mrb[0].mxu0 %v1189
        %v1324 = vpop.f32.mrb[0].mxu0
        %v1325 = vadd.f32 %v1224, %v1324
        %v1326 = vpop.f32.mrb[0].mxu0
        %v1327 = vpop.f32.mrb[0].mxu0
        %v1328 = vadd.f32 %v1224, %v1327
        %v1329 = vpop.f32.mrb[0].mxu0
        %1330 = vmatprep.mubr.bf16.mxu0 0
        %1331 = vmatmul.mubr.bf16.gmra.mrb[0].mxu0 %v1190
        %v1332 = vpop.f32.mrb[0].mxu0
        %v1333 = vadd.f32 %v1224, %v1332
        %v1334 = vpop.f32.mrb[0].mxu0
        %v1335 = vpop.f32.mrb[0].mxu0
        %v1336 = vadd.f32 %v1224, %v1335
        %v1337 = vpop.f32.mrb[0].mxu0
        %1338 = vmatprep.mubr.bf16.mxu0 0
        %1339 = vmatmul.mubr.bf16.gmra.mrb[0].mxu0 %v1191
        %v1340 = vpop.f32.mrb[0].mxu0
        %v1341 = vadd.f32 %v1224, %v1340
        %v1342 = vpop.f32.mrb[0].mxu0
        %v1343 = vpop.f32.mrb[0].mxu0
        %v1344 = vadd.f32 %v1224, %v1343
        %v1345 = vpop.f32.mrb[0].mxu0
        %1346 = vmatprep.mubr.bf16.mxu0 0
        %1347 = vmatmul.mubr.bf16.gmra.mrb[0].mxu0 %v1192
        %v1348 = vpop.f32.mrb[0].mxu0
        %v1349 = vadd.f32 %v1224, %v1348
        %v1350 = vpop.f32.mrb[0].mxu0
        %v1351 = vpop.f32.mrb[0].mxu0
        %v1352 = vadd.f32 %v1224, %v1351
        %v1353 = vpop.f32.mrb[0].mxu0
        %1354 = vmatprep.mubr.bf16.mxu0 0
        %1355 = vmatmul.mubr.bf16.gmra.mrb[0].mxu0 %v1193
        %v1356 = vpop.f32.mrb[0].mxu0
        %v1357 = vadd.f32 %v1224, %v1356
        %v1358 = vpop.f32.mrb[0].mxu0
        %v1359 = vpop.f32.mrb[0].mxu0
        %v1360 = vadd.f32 %v1224, %v1359
        %v1361 = vpop.f32.mrb[0].mxu0
        %1362 = vmatprep.mubr.bf16.mxu0 0
        %1363 = vmatmul.mubr.bf16.gmra.mrb[0].mxu0 %v1194
        %v1364 = vpop.f32.mrb[0].mxu0
        %v1365 = vadd.f32 %v1224, %v1364
        %v1366 = vpop.f32.mrb[0].mxu0
        %v1367 = vpop.f32.mrb[0].mxu0
        %v1368 = vadd.f32 %v1224, %v1367
        %v1369 = vpop.f32.mrb[0].mxu0
        %1370 = vmatprep.mubr.bf16.mxu0 0
        %1371 = vmatmul.mubr.bf16.gmra.mrb[0].mxu0 %v1195
        %v1372 = vpop.f32.mrb[0].mxu0
        %v1373 = vadd.f32 %v1224, %v1372
        %v1374 = vpop.f32.mrb[0].mxu0
        %v1375 = vpop.f32.mrb[0].mxu0
        %v1376 = vadd.f32 %v1224, %v1375
        %v1377 = vpop.f32.mrb[0].mxu0
        %1378 = vmatprep.mubr.bf16.mxu0 0
        %1379 = vmatmul.mubr.bf16.gmra.mrb[0].mxu0 %v1196
        %v1380 = vpop.f32.mrb[0].mxu0
        %v1381 = vadd.f32 %v1224, %v1380
        %v1382 = vpop.f32.mrb[0].mxu0
        %v1383 = vpop.f32.mrb[0].mxu0
        %v1384 = vadd.f32 %v1224, %v1383
        %v1385 = vpop.f32.mrb[0].mxu0
        %1386 = vmatprep.mubr.bf16.mxu0 0
        %1387 = vmatmul.mubr.bf16.gmra.mrb[0].mxu0 %v1197
        %v1388 = vpop.f32.mrb[0].mxu0
        %v1389 = vadd.f32 %v1224, %v1388
        %v1390 = vpop.f32.mrb[0].mxu0
        %v1391 = vpop.f32.mrb[0].mxu0
        %v1392 = vadd.f32 %v1224, %v1391
        %v1393 = vpop.f32.mrb[0].mxu0
        %1394 = vmatprep.mubr.bf16.mxu0 0
        %1395 = vmatmul.mubr.bf16.gmra.mrb[0].mxu0 %v1198
        %v1396 = vpop.f32.mrb[0].mxu0
        %v1397 = vadd.f32 %v1224, %v1396
        %v1398 = vpop.f32.mrb[0].mxu0
        %v1399 = vpop.f32.mrb[0].mxu0
        %v1400 = vadd.f32 %v1224, %v1399
        %v1401 = vpop.f32.mrb[0].mxu0
        %1402 = vmatprep.mubr.bf16.mxu0 0
        %1403 = vmatmul.mubr.bf16.gmra.mrb[0].mxu0 %v1199
        %v1404 = vpop.f32.mrb[0].mxu0
        %v1405 = vadd.f32 %v1224, %v1404
        %v1406 = vpop.f32.mrb[0].mxu0
        %v1407 = vpop.f32.mrb[0].mxu0
        %v1408 = vadd.f32 %v1224, %v1407
        %v1409 = vpop.f32.mrb[0].mxu0
        %1410 = vmatprep.mubr.bf16.mxu0 0
        %1411 = vmatmul.mubr.bf16.gmra.mrb[0].mxu0 %v1200
        %v1412 = vpop.f32.mrb[0].mxu0
        %v1413 = vadd.f32 %v1224, %v1412
        %v1414 = vpop.f32.mrb[0].mxu0
        %v1415 = vpop.f32.mrb[0].mxu0
        %v1416 = vadd.f32 %v1224, %v1415
        %v1417 = vpop.f32.mrb[0].mxu0
        %1418 = vmatprep.mubr.bf16.mxu0 0
        %1419 = vmatmul.mubr.bf16.gmra.mrb[0].mxu0 %v1201
        %v1420 = vpop.f32.mrb[0].mxu0
        %v1421 = vadd.f32 %v1224, %v1420
        %v1422 = vpop.f32.mrb[0].mxu0
        %v1423 = vpop.f32.mrb[0].mxu0
        %v1424 = vadd.f32 %v1224, %v1423
        %v1425 = vpop.f32.mrb[0].mxu0
        %1426 = vmatprep.mubr.bf16.mxu0 0
        %1427 = vmatmul.mubr.bf16.gmra.mrb[0].mxu0 %v1202
        %v1428 = vpop.f32.mrb[0].mxu0
        %v1429 = vadd.f32 %v1224, %v1428
        %v1430 = vpop.f32.mrb[0].mxu0
        %v1431 = vpop.f32.mrb[0].mxu0
        %v1432 = vadd.f32 %v1224, %v1431
        %v1433 = vpop.f32.mrb[0].mxu0
        %1434 = vdwg.mxu0
        %1435 = vst [vmem:[%s271] sm:$0xff] %v1309
        %1436 = vst [vmem:[%s271 + $0x8] sm:$0xff] %v1312
        %1437 = vst [vmem:[%s271 + $0x10] sm:$0xff] %v1317
        %1438 = vst [vmem:[%s271 + $0x18] sm:$0xff] %v1320
        %1439 = vst [vmem:[%s271 + $0x20] sm:$0xff] %v1325
        %1440 = vst [vmem:[%s271 + $0x28] sm:$0xff] %v1328
        %1441 = vst [vmem:[%s271 + $0x30] sm:$0xff] %v1333
        %1442 = vst [vmem:[%s271 + $0x38] sm:$0xff] %v1336
        %1443 = vst [vmem:[%s271 + $0x40] sm:$0xff] %v1341
        %1444 = vst [vmem:[%s271 + $0x48] sm:$0xff] %v1344
        %1445 = vst [vmem:[%s271 + $0x50] sm:$0xff] %v1349
        %1446 = vst [vmem:[%s271 + $0x58] sm:$0xff] %v1352
        %1447 = vst [vmem:[%s271 + $0x60] sm:$0xff] %v1357
        %1448 = vst [vmem:[%s271 + $0x68] sm:$0xff] %v1360
        %1449 = vst [vmem:[%s271 + $0x70] sm:$0xff] %v1365
        %1450 = vst [vmem:[%s271 + $0x78] sm:$0xff] %v1368
        %1451 = vst [vmem:[%s271 + $0x80] sm:$0xff] %v1373
        %1452 = vst [vmem:[%s271 + $0x88] sm:$0xff] %v1376
        %1453 = vst [vmem:[%s271 + $0x90] sm:$0xff] %v1381
        %1454 = vst [vmem:[%s271 + $0x98] sm:$0xff] %v1384
        %1455 = vst [vmem:[%s271 + $0xa0] sm:$0xff] %v1389
        %1456 = vst [vmem:[%s271 + $0xa8] sm:$0xff] %v1392
        %1457 = vst [vmem:[%s271 + $0xb0] sm:$0xff] %v1397
        %1458 = vst [vmem:[%s271 + $0xb8] sm:$0xff] %v1400
        %1459 = vst [vmem:[%s271 + $0xc0] sm:$0xff] %v1405
        %1460 = vst [vmem:[%s271 + $0xc8] sm:$0xff] %v1408
        %1461 = vst [vmem:[%s271 + $0xd0] sm:$0xff] %v1413
        %1462 = vst [vmem:[%s271 + $0xd8] sm:$0xff] %v1416
        %1463 = vst [vmem:[%s271 + $0xe0] sm:$0xff] %v1421
        %1464 = vst [vmem:[%s271 + $0xe8] sm:$0xff] %v1424
        %1465 = vst [vmem:[%s271 + $0xf0] sm:$0xff] %v1429
        %1466 = vst [vmem:[%s271 + $0xf8] sm:$0xff] %v1432
        %s1467 = sand.u32 %s141, 1
        %s1468 = scalar_lea.sflag [#allocation4], %s1467
        %s1469 = sand.u32 %s141, 1
        %s1470 = smul.addr %s1469, 256
        %s1471 = scalar_lea.vmem [#allocation8], %s1470
        // Predicated region
        $region53: #{tpu_custom_call.1} parent=39 // pred_check
          %p1472 = pneg %p151
        $region54: #{tpu_custom_call.1} parent=39 // pred_check_branch
          %1474 = sbr.rel (%p1472) target = $region56
        $region55: #{tpu_custom_call.1} parent=39 // pred_region
          %s1475 = smul.u32 32, %s23
          %s1477 = ssub.s32 4096, 4096
          %1478 = vsyncadd %s1468, %s1477
          %s1479 = smul.addr %s1475, 128
          %s1480 = scalar_lea.hbm %s5, %s1479
          %s1481 = sshll.u32 %s1471, 4
          %s1482 = int_to_ptr.vmem [resolvable:$true] %s1481
          %1487 = dma.vmem_to_hbm [thread:$0]  %s1482, 4096, %s1480, %s1468, 128, 128, 8
        $region56: #{tpu_custom_call.1} parent=39 // pred_fallthru
          _
      $region40: #{tpu_custom_call.1} parent=5 // pred_fallthru
        _
      %p1488 = scmp.le.s32.totalorder 2, %s18
      // Predicated region
      $region57: #{tpu_custom_call.1} parent=5 // pred_check
        %p1489 = pneg %p1488
      $region58: #{tpu_custom_call.1} parent=5 // pred_check_branch
        %1491 = sbr.rel (%p1489) target = $region60
      $region59: #{tpu_custom_call.1} parent=5 // pred_region
        %s1492 = ssub.s32 %s18, 2
        // Predicated region
        $region61: #{tpu_custom_call.1} parent=59 // pred_check
          %p1493 = pneg %p157
        $region62: #{tpu_custom_call.1} parent=59 // pred_check_branch
          %1495 = sbr.rel (%p1493) target = $region64
        $region63: #{tpu_custom_call.1} parent=59 // pred_region
          %s1496 = sand.u32 %s142, 1
          %s1497 = scalar_lea.sflag [#allocation4], %s1496
          %s1498 = sand.u32 %s142, 1
          %s1499 = smul.addr %s1498, 256
          %s1500 = scalar_lea.vmem [#allocation8], %s1499
          %1501 = dma.done %s1497, 4096
        $region64: #{tpu_custom_call.1} parent=59 // pred_fallthru
          _
      $region60: #{tpu_custom_call.1} parent=5 // pred_fallthru
        _
    $region6: #{tpu_custom_call.1} parent=1 // loop_footer
      %s22 = sadd.s32 1, %s18
    $region7: #{tpu_custom_call.1} parent=1 // loop_footer_branch
      %17 = sbr.rel target = $region3
    $region8: #{tpu_custom_call.1} parent=1 // loop_exit
      _
    %1502 = vsyncpa [#allocation3], 1
    %s1503 = scalar_lea.sflag [#allocation3], 1
    %1504 = vsyncpa %s1503, 1
    %1505 = vsyncpa [#allocation6], 1
    %1506 = vsyncpa [#allocation4], 1
    %s1507 = scalar_lea.sflag [#allocation4], 1
    %1508 = vsyncpa %s1507, 1

</llo_original>
